<compile_context>
chip_gen: v7x
topology: tpu7x:2x2x1
jax: 0.10.0
libtpu: 0.0.40
codegen_flags: <defaults>
</compile_context>

<pallas_src>
import jax
import jax.numpy as jnp
from jax.experimental import pallas as pl
from jax.experimental.pallas import tpu as pltpu

_SQRT_2_OVER_PI = 0.7978845608028654  # sqrt(2/pi), folded constant


def _gelu_new(x):
    # GPT-2 "gelu_new" (tanh approximation), matches ACT2FN["gelu_new"].
    # x*x*x keeps the cube on the VPU; tanh is the only EUP push.
    x3 = x * x * x
    return 0.5 * x * (1.0 + jnp.tanh(_SQRT_2_OVER_PI * (x + 0.044715 * x3)))


# ---------------------------------------------------------------------------
# Kernels
# ---------------------------------------------------------------------------

def mlp_kernel(x_ref, wfc_ref, bfc_ref, wproj_ref, bproj_ref, o_ref):
    """Resident-weights kernel: grid=(grid_m,), full W_fc/W_proj in VMEM."""
    # c_fc: (TM, nx) @ (nx, n_state), bf16 operands, f32 accumulation.
    h = jnp.dot(x_ref[...], wfc_ref[...], preferred_element_type=jnp.float32)
    h = _gelu_new(h + bfc_ref[...].astype(jnp.float32))
    # c_proj: cast intermediate back to the weight dtype (bf16-native MXU path).
    h2 = jnp.dot(h.astype(wproj_ref.dtype), wproj_ref[...],
                 preferred_element_type=jnp.float32)
    h2 = h2 + bproj_ref[...].astype(jnp.float32)
    # TODO(synk): nn.Dropout(resid_pdrop) is identity in eval mode; no RNG mask applied.
    o_ref[...] = h2.astype(o_ref.dtype)


def mlp_kernel_tiled(x_ref, wfc_ref, bfc_ref, wproj_ref, bproj_ref, o_ref, acc_ref):
    """Weight-tiled kernel: grid=(grid_m, grid_h), n_state streamed in tiles of TH.

    out = sum_h gelu(x @ W_fc[:, h] + b_fc[h]) @ W_proj[h, :] + b_proj
    accumulated in an f32 VMEM scratch; output written on the last h step.
    """
    h_idx = pl.program_id(1)

    @pl.when(h_idx == 0)
    def _():
        acc_ref[...] = jnp.zeros_like(acc_ref)

    h = jnp.dot(x_ref[...], wfc_ref[...], preferred_element_type=jnp.float32)
    h = _gelu_new(h + bfc_ref[...].astype(jnp.float32))
    acc_ref[...] += jnp.dot(h.astype(wproj_ref.dtype), wproj_ref[...],
                            preferred_element_type=jnp.float32)

    @pl.when(h_idx == pl.num_programs(1) - 1)
    def _():
        out = acc_ref[...] + bproj_ref[...].astype(jnp.float32)
        # TODO(synk): dropout identity (inference); no RNG mask applied.
        o_ref[...] = out.astype(o_ref.dtype)


# ---------------------------------------------------------------------------
# Generation-aware sizing helpers
# ---------------------------------------------------------------------------

_SINGLE_BUFFER_OK = None


def _single_buffer_supported():
    """One-time feature probe: does this jax pin accept pipeline_mode=pl.Buffered(1)?

    A trivial copy kernel is compiled once; real MLP-kernel lowering errors are never
    masked by this check (the fallback merely double-buffers the resident weights).
    """
    global _SINGLE_BUFFER_OK
    if _SINGLE_BUFFER_OK is None:
        def _probe(x_ref, o_ref):
            o_ref[...] = x_ref[...]

        try:
            fn = pl.pallas_call(
                _probe,
                out_shape=jax.ShapeDtypeStruct((8, 128), jnp.float32),
                grid=(2,),
                in_specs=[pl.BlockSpec((8, 128), lambda i: (0, 0),
                                       pipeline_mode=pl.Buffered(1))],
                out_specs=pl.BlockSpec((8, 128), lambda i: (0, 0)),
            )
            jax.jit(fn).lower(jax.ShapeDtypeStruct((8, 128), jnp.float32)).compile()
            _SINGLE_BUFFER_OK = True
        except Exception:  # feature probe only; the real kernel never goes through here
            _SINGLE_BUFFER_OK = False
    return _SINGLE_BUFFER_OK


def _vmem_budget_bytes():
    """~80% of per-core VMEM (≈51 MiB on v7x, ≈102 MiB on v5e/v6e)."""
    cap = None
    if hasattr(pltpu, "get_tpu_info"):
        try:
            cap = int(pltpu.get_tpu_info().vmem_capacity_bytes)
        except Exception:  # capability query only
            cap = None
    if not cap:
        cap = 64 * 1024 * 1024  # conservative default (v7x per-TC size)
    return int(cap * 0.80)


def _resident_vmem_bytes(tm, nx, n_state, weight_buffers, out_itemsize):
    """VMEM estimate for the resident-weights kernel (bf16 weights, f32 biases)."""
    bf16 = 2
    w = weight_buffers * 2 * nx * n_state * bf16                 # W_fc + W_proj
    b = weight_buffers * 4 * (n_state + nx)                      # f32 biases
    xio = 2 * tm * nx * bf16 + 2 * tm * nx * out_itemsize        # double-buffered x/out
    inter = tm * n_state * (4 + bf16)                            # f32 h + bf16 cast copy
    return w + b + xio + inter


def _choose_tm(m, block_m):
    """Pick a token tile: sublane-aligned, dividing M (avoid jnp.pad), grid_m>=2 if easy."""
    block_m = max(16, (block_m // 16) * 16)
    if m <= block_m:
        # Try to split into two tiles so v7x's second TensorCore gets work.
        half = m // 2
        if m % 2 == 0 and half >= 16 and half % 16 == 0:
            return half, m
        if m % 2 == 0 and half >= 8 and half % 8 == 0:
            return half, m
        return m, m  # single full-extent tile (always a legal block shape)
    for step in (16, 8):
        tm = (block_m // step) * step
        while tm >= step:
            if m % tm == 0:
                return tm, m
            tm -= step
    # Ragged M with no sublane-aligned divisor: pad to the next multiple of 8 only.
    # TODO(synk): could handle the partial last tile in-kernel with a masked store instead.
    m_pad = ((m + 7) // 8) * 8
    tm = (block_m // 8) * 8
    while m_pad % tm != 0:
        tm -= 8
    return tm, m_pad


def _choose_th(n_state):
    """Hidden tile for the weight-tiled kernel: multiple of 128, >=2 grid steps."""
    cap = min(1024, n_state // 2)
    th = (cap // 128) * 128
    while th >= 128:
        if n_state % th == 0:
            return th
        th -= 128
    return n_state


# ---------------------------------------------------------------------------
# pallas_call wrappers
# ---------------------------------------------------------------------------

def _call_resident(x2d, w_fc, b_fc2d, w_proj, b_proj2d, *, tm, out_dtype,
                   single_buffer_weights, vmem_limit):
    m_pad, nx = x2d.shape
    n_state = w_fc.shape[1]
    grid_m = m_pad // tm

    if single_buffer_weights:
        def const_spec(shape):
            # Resident operand: constant block index + single buffering.
            return pl.BlockSpec(shape, lambda i: (0, 0), pipeline_mode=pl.Buffered(1))
    else:
        def const_spec(shape):
            return pl.BlockSpec(shape, lambda i: (0, 0))

    out_isz = jnp.dtype(out_dtype).itemsize
    cost = pl.CostEstimate(
        flops=4 * m_pad * nx * n_state,          # two matmuls, 2*M*K*N each
        transcendentals=m_pad * n_state,         # one tanh per hidden element
        bytes_accessed=(x2d.size * 2 + m_pad * nx * out_isz
                        + (w_fc.size + w_proj.size) * 2
                        + (b_fc2d.size + b_proj2d.size) * 4),
    )

    return pl.pallas_call(
        mlp_kernel,
        out_shape=jax.ShapeDtypeStruct((m_pad, nx), out_dtype),
        grid_spec=pltpu.PrefetchScalarGridSpec(
            num_scalar_prefetch=0,
            grid=(grid_m,),
            in_specs=[
                pl.BlockSpec((tm, nx), lambda i: (i, 0)),   # x tile (pipelined)
                const_spec((nx, n_state)),                  # W_fc   (resident)
                const_spec((1, n_state)),                   # b_fc   (resident)
                const_spec((n_state, nx)),                  # W_proj (resident)
                const_spec((1, nx)),                        # b_proj (resident)
            ],
            out_specs=pl.BlockSpec((tm, nx), lambda i: (i, 0)),
        ),
        compiler_params=pltpu.CompilerParams(
            dimension_semantics=("parallel",),   # v7x: shard token tiles across both TCs
            vmem_limit_bytes=int(vmem_limit),
        ),
        cost_estimate=cost,
    )(x2d, w_fc, b_fc2d, w_proj, b_proj2d)


def _call_weight_tiled(x2d, w_fc, b_fc2d, w_proj, b_proj2d, *, tm, th, out_dtype,
                       vmem_limit):
    m_pad, nx = x2d.shape
    n_state = w_fc.shape[1]
    grid = (m_pad // tm, n_state // th)

    out_isz = jnp.dtype(out_dtype).itemsize
    cost = pl.CostEstimate(
        flops=4 * m_pad * nx * n_state,
        transcendentals=m_pad * n_state,
        bytes_accessed=(x2d.size * 2 + m_pad * nx * out_isz
                        + (w_fc.size + w_proj.size) * 2
                        + (b_fc2d.size + b_proj2d.size) * 4),
    )

    return pl.pallas_call(
        mlp_kernel_tiled,
        out_shape=jax.ShapeDtypeStruct((m_pad, nx), out_dtype),
        grid_spec=pltpu.PrefetchScalarGridSpec(
            num_scalar_prefetch=0,
            grid=grid,
            in_specs=[
                pl.BlockSpec((tm, nx), lambda i, h: (i, 0)),   # x tile (resident over h)
                pl.BlockSpec((nx, th), lambda i, h: (0, h)),   # W_fc column tile
                pl.BlockSpec((1, th), lambda i, h: (0, h)),    # b_fc tile
                pl.BlockSpec((th, nx), lambda i, h: (h, 0)),   # W_proj row tile
                pl.BlockSpec((1, nx), lambda i, h: (0, 0)),    # b_proj (resident)
            ],
            out_specs=pl.BlockSpec((tm, nx), lambda i, h: (i, 0)),  # resident over h
            scratch_shapes=[pltpu.VMEM((tm, nx), jnp.float32)],     # f32 accumulator
        ),
        compiler_params=pltpu.CompilerParams(
            dimension_semantics=("parallel", "arbitrary"),  # reduction (h) axis last
            vmem_limit_bytes=int(vmem_limit),
        ),
        cost_estimate=cost,
    )(x2d, w_fc, b_fc2d, w_proj, b_proj2d)


def mlp_forward(x, w_fc, b_fc, w_proj, b_proj, *, block_m=512, weight_tiling="auto"):
    """x: (B, S, nx); w_fc: (nx, n_state); w_proj: (n_state, nx).

    weight_tiling: "auto" (switch to the weight-tiled kernel when the resident
    design exceeds the VMEM budget), "never", or "always" (for testing).
    """
    B, S, nx = x.shape
    n_state = w_fc.shape[1]
    M = B * S
    out_dtype = x.dtype

    # MXU is bf16-native on v5e/v6e/v7x: feed it bf16 operands (f32 accumulation in
    # the kernel); biases stay f32 for the epilogue.
    x2d = x.reshape(M, nx).astype(jnp.bfloat16)
    w_fc_b = w_fc.astype(jnp.bfloat16)
    w_proj_b = w_proj.astype(jnp.bfloat16)
    b_fc2d = b_fc.reshape(1, n_state).astype(jnp.float32)
    b_proj2d = b_proj.reshape(1, nx).astype(jnp.float32)

    tm, m_pad = _choose_tm(M, block_m)
    if m_pad != M:
        # Only hit when M is not a multiple of 8 and has no aligned divisor; pads a
        # handful of rows rather than a whole tile.
        x2d = jnp.pad(x2d, ((0, m_pad - M), (0, 0)))

    budget = _vmem_budget_bytes()
    single_buf = _single_buffer_supported()
    wbuf = 1 if single_buf else 2
    resident_bytes = _resident_vmem_bytes(tm, nx, n_state, wbuf,
                                          jnp.dtype(out_dtype).itemsize)

    use_tiled = (weight_tiling == "always") or (
        weight_tiling == "auto" and resident_bytes > budget)

    if use_tiled:
        th = _choose_th(n_state)
        out2d = _call_weight_tiled(x2d, w_fc_b, b_fc2d, w_proj_b, b_proj2d,
                                   tm=tm, th=th, out_dtype=out_dtype,
                                   vmem_limit=budget)
    else:
        out2d = _call_resident(x2d, w_fc_b, b_fc2d, w_proj_b, b_proj2d,
                               tm=tm, out_dtype=out_dtype,
                               single_buffer_weights=single_buf,
                               vmem_limit=budget)

    if m_pad != M:
        out2d = out2d[:M]
    return out2d.reshape(B, S, nx)


def mlp_reference(x, w_fc, b_fc, w_proj, b_proj):
    xf = x.astype(jnp.float32)
    h = jnp.einsum("bsn,nh->bsh", xf, w_fc.astype(jnp.float32)) + b_fc
    h = _gelu_new(h)
    return jnp.einsum("bsh,hn->bsn", h, w_proj.astype(jnp.float32)) + b_proj


if __name__ == "__main__":
    # Small GPT-2-like config, 256-aligned so the 2x256^2 MXU on v6e/v7x is filled:
    # n_embd=256, n_state=4*n_embd=1024, batch=2, seq=128 -> M=256 tokens.
    B, S, nx = 2, 128, 256
    n_state = 4 * nx

    key = jax.random.PRNGKey(0)
    kx, kwfc, kbfc, kwp, kbp = jax.random.split(key, 5)

    x = jax.random.normal(kx, (B, S, nx), dtype=jnp.float32)
    # Conv1D init in HF: weight ~ N(0, 0.02), bias zeros; keep deterministic here.
    w_fc = 0.02 * jax.random.normal(kwfc, (nx, n_state), dtype=jnp.float32)
    b_fc = 0.01 * jax.random.normal(kbfc, (n_state,), dtype=jnp.float32)
    w_proj = 0.02 * jax.random.normal(kwp, (n_state, nx), dtype=jnp.float32)
    b_proj = 0.01 * jax.random.normal(kbp, (nx,), dtype=jnp.float32)

    ref = mlp_reference(x, w_fc, b_fc, w_proj, b_proj)

    # 1) f32 in/out, bf16 MXU operands, 2-step token grid (tm = M//2, both v7x TCs busy).
    out = jax.block_until_ready(mlp_forward(x, w_fc, b_fc, w_proj, b_proj))
    assert out.shape == (B, S, nx)
    assert jnp.allclose(out, ref, atol=5e-2, rtol=5e-2), "f32 mismatch vs reference"

    # 2) ragged token count (M=200): full-extent tile, no jnp.pad HBM copy.
    out_r = jax.block_until_ready(mlp_forward(x[:, :100], w_fc, b_fc, w_proj, b_proj))
    assert out_r.shape == (B, 100, nx)
    assert jnp.allclose(out_r, ref[:, :100], atol=5e-2, rtol=5e-2), "ragged mismatch"

    # 3) bf16 input path (bf16 output).
    out_b = jax.block_until_ready(
        mlp_forward(x.astype(jnp.bfloat16), w_fc.astype(jnp.bfloat16), b_fc,
                    w_proj.astype(jnp.bfloat16), b_proj))
    assert out_b.dtype == jnp.bfloat16
    assert jnp.allclose(out_b.astype(jnp.float32), ref, atol=7e-2, rtol=7e-2), \
        "bf16 mismatch vs reference"

    # 4) weight-tiled fallback kernel (as selected automatically when resident weights
    #    exceed the per-core VMEM budget, e.g. GPT-2 XL on v7x), forced here for coverage.
    out_t = jax.block_until_ready(
        mlp_forward(x, w_fc, b_fc, w_proj, b_proj, weight_tiling="always"))
    assert jnp.allclose(out_t, ref, atol=5e-2, rtol=5e-2), "weight-tiled mismatch"

    print("KERNEL_OK")
</pallas_src>

<mosaic_0001>
module attributes {stable_mosaic.version = 11 : i64} {
  func.func @mlp_kernel(%arg0: i32, %arg1: memref<128x256xbf16, #tpu.memory_space<vmem>>, %arg2: memref<256x1024xbf16, #tpu.memory_space<vmem>>, %arg3: memref<1x1024xf32, #tpu.memory_space<vmem>>, %arg4: memref<1024x256xbf16, #tpu.memory_space<vmem>>, %arg5: memref<1x256xf32, #tpu.memory_space<vmem>>, %arg6: memref<128x256xf32, #tpu.memory_space<vmem>>) attributes {dimension_semantics = [#tpu.dimension_semantics<parallel>], iteration_bounds = array<i64: 2>, scalar_prefetch = 0 : i64, scratch_operands = 0 : i64, tpu.core_type = #tpu.core_type<tc>, window_params = [{transform_indices = @transform_0, window_bounds = array<i64: 128, 256>}, {pipeline_mode = #tpu.pipeline_mode<synchronous>, transform_indices = @transform_1, window_bounds = array<i64: 256, 1024>}, {pipeline_mode = #tpu.pipeline_mode<synchronous>, transform_indices = @transform_2, window_bounds = array<i64: 1, 1024>}, {pipeline_mode = #tpu.pipeline_mode<synchronous>, transform_indices = @transform_3, window_bounds = array<i64: 1024, 256>}, {pipeline_mode = #tpu.pipeline_mode<synchronous>, transform_indices = @transform_4, window_bounds = array<i64: 1, 256>}, {transform_indices = @transform_5, window_bounds = array<i64: 128, 256>}]} {
    %c0 = arith.constant 0 : index
    %c0_0 = arith.constant 0 : index
    %0 = vector.load %arg1[%c0, %c0_0] : memref<128x256xbf16, #tpu.memory_space<vmem>>, vector<128x256xbf16>
    %c0_1 = arith.constant 0 : index
    %c0_2 = arith.constant 0 : index
    %1 = vector.load %arg2[%c0_1, %c0_2] : memref<256x1024xbf16, #tpu.memory_space<vmem>>, vector<256x1024xbf16>
    %cst = arith.constant dense<0.000000e+00> : vector<128x1024xf32>
    %2 = tpu.matmul %0, %1, %cst {dimension_numbers = #tpu.dot_dimension_numbers<[1], [0], [0], [1], [0, 0, 1, 1], [], []>} : vector<128x256xbf16>, vector<256x1024xbf16>, vector<128x1024xf32> -> vector<128x1024xf32>
    %c0_3 = arith.constant 0 : index
    %c0_4 = arith.constant 0 : index
    %3 = vector.load %arg3[%c0_3, %c0_4] : memref<1x1024xf32, #tpu.memory_space<vmem>>, vector<1x1024xf32>
    %4 = vector.broadcast %3 : vector<1x1024xf32> to vector<128x1024xf32>
    %5 = arith.addf %2, %4 : vector<128x1024xf32>
    %6 = arith.mulf %5, %5 : vector<128x1024xf32>
    %7 = arith.mulf %6, %5 : vector<128x1024xf32>
    %cst_5 = arith.constant 5.000000e-01 : f32
    %8 = vector.broadcast %cst_5 : f32 to vector<128x1024xf32>
    %9 = arith.mulf %8, %5 : vector<128x1024xf32>
    %cst_6 = arith.constant 4.471500e-02 : f32
    %10 = vector.broadcast %cst_6 : f32 to vector<128x1024xf32>
    %11 = arith.mulf %10, %7 : vector<128x1024xf32>
    %12 = arith.addf %5, %11 : vector<128x1024xf32>
    %cst_7 = arith.constant 0.797884583 : f32
    %13 = vector.broadcast %cst_7 : f32 to vector<128x1024xf32>
    %14 = arith.mulf %13, %12 : vector<128x1024xf32>
    %15 = math.tanh %14 : vector<128x1024xf32>
    %cst_8 = arith.constant 1.000000e+00 : f32
    %16 = vector.broadcast %cst_8 : f32 to vector<128x1024xf32>
    %17 = arith.addf %16, %15 : vector<128x1024xf32>
    %18 = arith.mulf %9, %17 : vector<128x1024xf32>
    %19 = arith.truncf %18 : vector<128x1024xf32> to vector<128x1024xbf16>
    %c0_9 = arith.constant 0 : index
    %c0_10 = arith.constant 0 : index
    %20 = vector.load %arg4[%c0_9, %c0_10] : memref<1024x256xbf16, #tpu.memory_space<vmem>>, vector<1024x256xbf16>
    %cst_11 = arith.constant dense<0.000000e+00> : vector<128x256xf32>
    %21 = tpu.matmul %19, %20, %cst_11 {dimension_numbers = #tpu.dot_dimension_numbers<[1], [0], [0], [1], [0, 0, 1, 1], [], []>} : vector<128x1024xbf16>, vector<1024x256xbf16>, vector<128x256xf32> -> vector<128x256xf32>
    %c0_12 = arith.constant 0 : index
    %c0_13 = arith.constant 0 : index
    %22 = vector.load %arg5[%c0_12, %c0_13] : memref<1x256xf32, #tpu.memory_space<vmem>>, vector<1x256xf32>
    %23 = vector.broadcast %22 : vector<1x256xf32> to vector<128x256xf32>
    %24 = arith.addf %21, %23 : vector<128x256xf32>
    %c0_14 = arith.constant 0 : index
    %c0_15 = arith.constant 0 : index
    %25 = vector.load %arg6[%c0_14, %c0_15] : memref<128x256xf32, #tpu.memory_space<vmem>>, vector<128x256xf32>
    tpu.vector_store %arg6[%c0_14, %c0_15], %24 {strides = array<i32>} : memref<128x256xf32, #tpu.memory_space<vmem>>, vector<128x256xf32>,
    return
  }
  func.func @transform_0(%arg0: i32) -> (i32, i32) {
    %c0_i32 = arith.constant 0 : i32
    %c0_i32_0 = arith.constant 0 : i32
    return %arg0, %c0_i32 : i32, i32
  }
  func.func @transform_1(%arg0: i32) -> (i32, i32) {
    %c0_i32 = arith.constant 0 : i32
    %c0_i32_0 = arith.constant 0 : i32
    %c0_i32_1 = arith.constant 0 : i32
    return %c0_i32, %c0_i32_0 : i32, i32
  }
  func.func @transform_2(%arg0: i32) -> (i32, i32) {
    %c0_i32 = arith.constant 0 : i32
    %c0_i32_0 = arith.constant 0 : i32
    %c0_i32_1 = arith.constant 0 : i32
    return %c0_i32, %c0_i32_0 : i32, i32
  }
  func.func @transform_3(%arg0: i32) -> (i32, i32) {
    %c0_i32 = arith.constant 0 : i32
    %c0_i32_0 = arith.constant 0 : i32
    %c0_i32_1 = arith.constant 0 : i32
    return %c0_i32, %c0_i32_0 : i32, i32
  }
  func.func @transform_4(%arg0: i32) -> (i32, i32) {
    %c0_i32 = arith.constant 0 : i32
    %c0_i32_0 = arith.constant 0 : i32
    %c0_i32_1 = arith.constant 0 : i32
    return %c0_i32, %c0_i32_0 : i32, i32
  }
  func.func @transform_5(%arg0: i32) -> (i32, i32) {
    %c0_i32 = arith.constant 0 : i32
    %c0_i32_0 = arith.constant 0 : i32
    return %arg0, %c0_i32 : i32, i32
  }
}

</mosaic_0001>

<llo_original>
// kernel: tpu_custom_call.1
$region0: #{tpu_custom_call.1}
  #allocation0 [shape = 'u32[]', space=smem, size = 0x4, offset = 0x4, fixed_abs, tag = 'smem constant byte address 0x4 - core index']
  #allocation1 [shape = 'u32[144,128]{1,0:T(1,128)}', space=vmem, size = 0x12000, scoped, tag = 'internal scratch']
  %s0 = inlined_call_operand.hbm [shape: bf16[256,256], index: 0, kind: input, shape index: {}]
  %s1 = inlined_call_operand.hbm [shape: bf16[256,1024], index: 1, kind: input, shape index: {}]
  %s2 = inlined_call_operand.hbm [shape: f32[1,1024], index: 2, kind: input, shape index: {}]
  %s3 = inlined_call_operand.hbm [shape: bf16[1024,256], index: 3, kind: input, shape index: {}]
  %s4 = inlined_call_operand.vmem [shape: f32[1,256], index: 4, kind: input, shape index: {}]
  %s5 = inlined_call_operand.hbm [shape: f32[256,256], index: 5, kind: output, shape index: {}]
  %s6 = sld [smem:[#allocation0]]
  $region69: #{tpu_custom_call.1} parent=0
    _
  %s8 = ssub.s32 1, %s6
  %s9 = scalar_select 0, %s8, %s6
  $region1: #{tpu_custom_call.1} parent=0
    #allocation2 [shape = 'u8[131072]{0}', space=vmem, size = 0x20000, scoped, tag = 'input window, operand 0']
    #allocation3 [shape = 's32[2]{0}', space=sflag, size = 0x8, scoped, tag = 'scoped memory for tpu_custom_call.1']
    #allocation4 [shape = 's32[2]{0}', space=sflag, size = 0x8, scoped, tag = 'scoped memory for tpu_custom_call.1']
    #allocation5 [shape = 'u8[524288]{0}', space=vmem, size = 0x80000, scoped, tag = 'input window, operand 1, single buffered']
    #allocation6 [shape = 's32[1]{0}', space=sflag, size = 0x4, scoped, tag = 'scoped memory for tpu_custom_call.1']
    #allocation7 [shape = 'u8[4096]{0}', space=vmem, size = 0x1000, scoped, tag = 'input window, operand 2, single buffered']
    #allocation8 [shape = 'u8[524288]{0}', space=vmem, size = 0x80000, scoped, tag = 'input window, operand 3, single buffered']
    #allocation9 [shape = 's32[1]{0}', space=sflag, size = 0x4, scoped, tag = 'scoped memory for tpu_custom_call.1']
    #allocation10 [shape = 'u8[262144]{0}', space=vmem, size = 0x40000, scoped, tag = 'output window, operand 0']
    %10 = vsyncpa [#allocation3], 0
    %s11 = scalar_lea.sflag [#allocation3], 1
    %12 = vsyncpa %s11, 0
    %13 = vsyncpa [#allocation6], 0
    %14 = vsyncpa [#allocation9], 0
    %15 = vsyncpa [#allocation4], 0
    %s16 = scalar_lea.sflag [#allocation4], 1
    %17 = vsyncpa %s16, 0
    loop: start=0, step=1, limit=4
    $region2: #{tpu_custom_call.1} parent=1 // loop_pre_header
      _
    $region3: #{tpu_custom_call.1} parent=1 // loop_header
      %s19 = sphi 0, %s23
      %p20 = scmp.ge.s32.totalorder %s19, 4
      %s29 = sphi 0, %s31
      %s32 = sphi 0, %s29
      %s33 = sphi 0, %s32
      %s49 = sphi 0, %s33
      %s53 = sphi 0, %s53
      %s55 = sphi 0, %s53
      %s56 = sphi 0, %s55
      %s70 = sphi 0, %s56
      %s74 = sphi 0, %s74
      %s76 = sphi 0, %s74
      %s77 = sphi 0, %s76
      %s91 = sphi 0, %s77
      %s95 = sphi 0, %s95
      %s97 = sphi 0, %s95
      %s98 = sphi 0, %s97
      %s112 = sphi 0, %s98
      %s116 = sphi 0, %s116
      %s118 = sphi 0, %s116
      %s119 = sphi 0, %s118
      %s133 = sphi 0, %s119
      %s139 = sphi 0, %s141
      %s142 = sphi 0, %s139
      %s143 = sphi 0, %s142
      %s159 = sphi 0, %s143
    $region4: #{tpu_custom_call.1} parent=1 // loop_header_branch
      %22 = sbr.rel (%p20) target = $region8
    $region5: #{tpu_custom_call.1} parent=1 // loop_body
      %s24 = ssub.s32 %s19, 1
      %s25 = ssub.s32 %s19, 2
      %s26 = sadd.s32 %s19, 1
      %s27 = ssub.s32 %s19, %s26
      %p28 = scmp.eq.s32.totalorder %s27, 0
      %s30 = sadd.s32 %s29, 1
      %s31 = scalar_select %p28, %s29, %s30
      %p34 = pneg %p28
      %p35 = scmp.eq.s32.totalorder %s19, 1
      %p36 = por %p34, %p35
      %p37 = scmp.ne.s32.totalorder %s29, %s32
      %p38 = scmp.eq.s32.totalorder %s19, 0
      %p39 = por %p37, %p38
      %p40 = scmp.ne.s32.totalorder %s29, %s32
      %p41 = scmp.eq.s32.totalorder %s24, 1
      %p42 = por %p40, %p41
      %p43 = scmp.ne.s32.totalorder %s32, %s33
      %p44 = scmp.eq.s32.totalorder %s24, 0
      %p45 = por %p43, %p44
      %p46 = scmp.ne.s32.totalorder %s32, %s33
      %p47 = scmp.eq.s32.totalorder %s25, 1
      %p48 = por %p46, %p47
      %p50 = scmp.ne.s32.totalorder %s33, %s49
      %p51 = scmp.eq.s32.totalorder %s25, 0
      %p52 = por %p50, %p51
      %s54 = sadd.s32 %s53, 1
      %p57 = scmp.eq.s32.totalorder %s19, 1
      %p58 = scmp.ne.s32.totalorder %s53, %s55
      %p59 = scmp.eq.s32.totalorder %s19, 0
      %p60 = por %p58, %p59
      %p61 = scmp.ne.s32.totalorder %s53, %s55
      %p62 = scmp.eq.s32.totalorder %s24, 1
      %p63 = por %p61, %p62
      %p64 = scmp.ne.s32.totalorder %s55, %s56
      %p65 = scmp.eq.s32.totalorder %s24, 0
      %p66 = por %p64, %p65
      %p67 = scmp.ne.s32.totalorder %s55, %s56
      %p68 = scmp.eq.s32.totalorder %s25, 1
      %p69 = por %p67, %p68
      %p71 = scmp.ne.s32.totalorder %s56, %s70
      %p72 = scmp.eq.s32.totalorder %s25, 0
      %p73 = por %p71, %p72
      %s75 = sadd.s32 %s74, 1
      %p78 = scmp.eq.s32.totalorder %s19, 1
      %p79 = scmp.ne.s32.totalorder %s74, %s76
      %p80 = scmp.eq.s32.totalorder %s19, 0
      %p81 = por %p79, %p80
      %p82 = scmp.ne.s32.totalorder %s74, %s76
      %p83 = scmp.eq.s32.totalorder %s24, 1
      %p84 = por %p82, %p83
      %p85 = scmp.ne.s32.totalorder %s76, %s77
      %p86 = scmp.eq.s32.totalorder %s24, 0
      %p87 = por %p85, %p86
      %p88 = scmp.ne.s32.totalorder %s76, %s77
      %p89 = scmp.eq.s32.totalorder %s25, 1
      %p90 = por %p88, %p89
      %p92 = scmp.ne.s32.totalorder %s77, %s91
      %p93 = scmp.eq.s32.totalorder %s25, 0
      %p94 = por %p92, %p93
      %s96 = sadd.s32 %s95, 1
      %p99 = scmp.eq.s32.totalorder %s19, 1
      %p100 = scmp.ne.s32.totalorder %s95, %s97
      %p101 = scmp.eq.s32.totalorder %s19, 0
      %p102 = por %p100, %p101
      %p103 = scmp.ne.s32.totalorder %s95, %s97
      %p104 = scmp.eq.s32.totalorder %s24, 1
      %p105 = por %p103, %p104
      %p106 = scmp.ne.s32.totalorder %s97, %s98
      %p107 = scmp.eq.s32.totalorder %s24, 0
      %p108 = por %p106, %p107
      %p109 = scmp.ne.s32.totalorder %s97, %s98
      %p110 = scmp.eq.s32.totalorder %s25, 1
      %p111 = por %p109, %p110
      %p113 = scmp.ne.s32.totalorder %s98, %s112
      %p114 = scmp.eq.s32.totalorder %s25, 0
      %p115 = por %p113, %p114
      %s117 = sadd.s32 %s116, 1
      %p120 = scmp.eq.s32.totalorder %s19, 1
      %p121 = scmp.ne.s32.totalorder %s116, %s118
      %p122 = scmp.eq.s32.totalorder %s19, 0
      %p123 = por %p121, %p122
      %p124 = scmp.ne.s32.totalorder %s116, %s118
      %p125 = scmp.eq.s32.totalorder %s24, 1
      %p126 = por %p124, %p125
      %p127 = scmp.ne.s32.totalorder %s118, %s119
      %p128 = scmp.eq.s32.totalorder %s24, 0
      %p129 = por %p127, %p128
      %p130 = scmp.ne.s32.totalorder %s118, %s119
      %p131 = scmp.eq.s32.totalorder %s25, 1
      %p132 = por %p130, %p131
      %p134 = scmp.ne.s32.totalorder %s119, %s133
      %p135 = scmp.eq.s32.totalorder %s25, 0
      %p136 = por %p134, %p135
      %s137 = ssub.s32 %s19, %s26
      %p138 = scmp.eq.s32.totalorder %s137, 0
      %s140 = sadd.s32 %s139, 1
      %s141 = scalar_select %p138, %s139, %s140
      %p144 = pneg %p138
      %p145 = scmp.eq.s32.totalorder %s19, 1
      %p146 = por %p144, %p145
      %p147 = scmp.ne.s32.totalorder %s139, %s142
      %p148 = scmp.eq.s32.totalorder %s19, 0
      %p149 = por %p147, %p148
      %p150 = scmp.ne.s32.totalorder %s139, %s142
      %p151 = scmp.eq.s32.totalorder %s24, 1
      %p152 = por %p150, %p151
      %p153 = scmp.ne.s32.totalorder %s142, %s143
      %p154 = scmp.eq.s32.totalorder %s24, 0
      %p155 = por %p153, %p154
      %p156 = scmp.ne.s32.totalorder %s142, %s143
      %p157 = scmp.eq.s32.totalorder %s25, 1
      %p158 = por %p156, %p157
      %p160 = scmp.ne.s32.totalorder %s143, %s159
      %p161 = scmp.eq.s32.totalorder %s25, 0
      %p162 = por %p160, %p161
      %p163 = scmp.le.s32.totalorder 1, %s19
      %p164 = scmp.lt.s32.totalorder %s19, 3
      %p165 = pnand %p163, %p164
      %p166 = pneg %p165
      // Predicated region
      $region9: #{tpu_custom_call.1} parent=5 // pred_check
        _
      $region10: #{tpu_custom_call.1} parent=5 // pred_check_branch
        %168 = sbr.rel (%p165) target = $region12
      $region11: #{tpu_custom_call.1} parent=5 // pred_region
        %s169 = ssub.s32 %s19, 1
        // Predicated region
        $region13: #{tpu_custom_call.1} parent=11 // pred_check
          %p170 = pneg %p66
        $region14: #{tpu_custom_call.1} parent=11 // pred_check_branch
          %172 = sbr.rel (%p170) target = $region16
        $region15: #{tpu_custom_call.1} parent=11 // pred_region
          %s174 = ssub.s32 16384, 16384
          %175 = vsyncadd [#allocation6], %s174
          %s176 = sshll.u32 [#allocation5], 4
          %s177 = int_to_ptr.vmem [resolvable:$true] %s176
          %182 = dma.hbm_to_vmem [thread:$0]  %s1, 16384, %s177, [#allocation6], 512, 512, 32
        $region16: #{tpu_custom_call.1} parent=11 // pred_fallthru
          _
        // Predicated region
        $region17: #{tpu_custom_call.1} parent=11 // pred_check
          %p183 = pneg %p87
        $region18: #{tpu_custom_call.1} parent=11 // pred_check_branch
          %185 = sbr.rel (%p183) target = $region20
        $region19: #{tpu_custom_call.1} parent=11 // pred_region
          %s187 = ssub.s32 128, 128
          %188 = vsyncadd [#allocation6], %s187
          %s190 = sshll.u32 [#allocation7], 4
          %s191 = int_to_ptr.vmem [resolvable:$true] %s190
          %193 = dma.hbm_to_vmem [thread:$0]  %s2, 128, %s191, [#allocation6]
        $region20: #{tpu_custom_call.1} parent=11 // pred_fallthru
          _
        // Predicated region
        $region21: #{tpu_custom_call.1} parent=11 // pred_check
          %p194 = pneg %p108
        $region22: #{tpu_custom_call.1} parent=11 // pred_check_branch
          %196 = sbr.rel (%p194) target = $region24
        $region23: #{tpu_custom_call.1} parent=11 // pred_region
          %s198 = ssub.s32 16384, 16384
          %199 = vsyncadd [#allocation9], %s198
          %s200 = sshll.u32 [#allocation8], 4
          %s201 = int_to_ptr.vmem [resolvable:$true] %s200
          %206 = dma.hbm_to_vmem [thread:$0]  %s3, 16384, %s201, [#allocation9], 128, 128, 8
        $region24: #{tpu_custom_call.1} parent=11 // pred_fallthru
          _
        // Predicated region
        $region25: #{tpu_custom_call.1} parent=11 // pred_check
          %p207 = pneg %p129
        $region26: #{tpu_custom_call.1} parent=11 // pred_check_branch
          %209 = sbr.rel (%p207) target = $region28
        $region27: #{tpu_custom_call.1} parent=11 // pred_region
          _
        $region28: #{tpu_custom_call.1} parent=11 // pred_fallthru
          _
      $region12: #{tpu_custom_call.1} parent=5 // pred_fallthru
        _
      %p210 = scmp.lt.s32.totalorder %s19, 2
      // Predicated region
      $region29: #{tpu_custom_call.1} parent=5 // pred_check
        %p211 = pneg %p210
      $region30: #{tpu_custom_call.1} parent=5 // pred_check_branch
        %213 = sbr.rel (%p211) target = $region32
      $region31: #{tpu_custom_call.1} parent=5 // pred_region
        // Predicated region
        $region33: #{tpu_custom_call.1} parent=31 // pred_check
          %p214 = pneg %p39
        $region34: #{tpu_custom_call.1} parent=31 // pred_check_branch
          %216 = sbr.rel (%p214) target = $region36
        $region35: #{tpu_custom_call.1} parent=31 // pred_region
          %s217 = sand.u32 %s29, 1
          %s218 = scalar_lea.sflag [#allocation3], %s217
          %s219 = sand.u32 %s29, 1
          %s220 = smul.addr %s219, 128
          %s221 = scalar_lea.vmem [#allocation2], %s220
          %s222 = smul.u32 16, %s19
          %s224 = ssub.s32 2048, 2048
          %225 = vsyncadd %s218, %s224
          %s226 = smul.addr %s222, 2
          %s227 = smul.addr %s226, 64
          %s228 = scalar_lea.hbm %s0, %s227
          %s229 = sshll.u32 %s221, 4
          %s230 = int_to_ptr.vmem [resolvable:$true] %s229
          %235 = dma.hbm_to_vmem [thread:$0]  %s228, 2048, %s230, %s218, 128, 128, 8
        $region36: #{tpu_custom_call.1} parent=31 // pred_fallthru
          _
      $region32: #{tpu_custom_call.1} parent=5 // pred_fallthru
        _
      %p236 = scmp.le.s32.totalorder 1, %s19
      %p237 = scmp.lt.s32.totalorder %s19, 3
      %p238 = pnand %p236, %p237
      %p239 = pneg %p238
      // Predicated region
      $region37: #{tpu_custom_call.1} parent=5 // pred_check
        _
      $region38: #{tpu_custom_call.1} parent=5 // pred_check_branch
        %241 = sbr.rel (%p238) target = $region40
      $region39: #{tpu_custom_call.1} parent=5 // pred_region
        %s242 = ssub.s32 %s19, 1
        %s243 = sand.u32 %s32, 1
        %s244 = scalar_lea.sflag [#allocation3], %s243
        %s245 = sand.u32 %s32, 1
        %s246 = smul.addr %s245, 128
        %s247 = scalar_lea.vmem [#allocation2], %s246
        // Predicated region
        $region41: #{tpu_custom_call.1} parent=39 // pred_check
          %p248 = pneg %p45
        $region42: #{tpu_custom_call.1} parent=39 // pred_check_branch
          %250 = sbr.rel (%p248) target = $region44
        $region43: #{tpu_custom_call.1} parent=39 // pred_region
          %251 = dma.done %s244, 2048
        $region44: #{tpu_custom_call.1} parent=39 // pred_fallthru
          _
        // Predicated region
        $region45: #{tpu_custom_call.1} parent=39 // pred_check
          %p252 = pneg %p66
        $region46: #{tpu_custom_call.1} parent=39 // pred_check_branch
          %254 = sbr.rel (%p252) target = $region48
        $region47: #{tpu_custom_call.1} parent=39 // pred_region
          %255 = dma.done [#allocation6], 16384
        $region48: #{tpu_custom_call.1} parent=39 // pred_fallthru
          _
        // Predicated region
        $region49: #{tpu_custom_call.1} parent=39 // pred_check
          %p256 = pneg %p87
        $region50: #{tpu_custom_call.1} parent=39 // pred_check_branch
          %258 = sbr.rel (%p256) target = $region52
        $region51: #{tpu_custom_call.1} parent=39 // pred_region
          %259 = dma.done [#allocation6], 128
        $region52: #{tpu_custom_call.1} parent=39 // pred_fallthru
          _
        // Predicated region
        $region53: #{tpu_custom_call.1} parent=39 // pred_check
          %p260 = pneg %p108
        $region54: #{tpu_custom_call.1} parent=39 // pred_check_branch
          %262 = sbr.rel (%p260) target = $region56
        $region55: #{tpu_custom_call.1} parent=39 // pred_region
          %263 = dma.done [#allocation9], 16384
        $region56: #{tpu_custom_call.1} parent=39 // pred_fallthru
          _
        %s264 = sand.u32 %s32, 1
        %s265 = scalar_lea.sflag [#allocation3], %s264
        %s266 = sand.u32 %s32, 1
        %s267 = smul.addr %s266, 128
        %s268 = scalar_lea.vmem [#allocation2], %s267
        %p269 = pneg %p45
        %p270 = pneg %p42
        %p271 = pneg %p66
        %p272 = pneg %p63
        %p273 = pneg %p87
        %p274 = pneg %p84
        %p275 = pneg %p108
        %p276 = pneg %p105
        %p277 = pneg %p129
        %p278 = pneg %p126
        %p279 = pneg %p155
        %p280 = pneg %p152
        %s281 = sand.u32 %s142, 1
        %s282 = scalar_lea.sflag [#allocation4], %s281
        %s283 = sand.u32 %s142, 1
        %s284 = smul.addr %s283, 256
        %s285 = scalar_lea.vmem [#allocation10], %s284
        %s286 = smul.u32 16, %s24
        %s287 = smul.u32 16, %s24
        %v288 = vld [vmem:[%s247] sm:$0xff]
        %v289 = vld [vmem:[%s247 + $0x8] sm:$0xff]
        %v290 = vld [vmem:[%s247 + $0x10] sm:$0xff]
        %v291 = vld [vmem:[%s247 + $0x18] sm:$0xff]
        %v292 = vld [vmem:[%s247 + $0x20] sm:$0xff]
        %v293 = vld [vmem:[%s247 + $0x28] sm:$0xff]
        %v294 = vld [vmem:[%s247 + $0x30] sm:$0xff]
        %v295 = vld [vmem:[%s247 + $0x38] sm:$0xff]
        %v296 = vld [vmem:[%s247 + $0x40] sm:$0xff]
        %v297 = vld [vmem:[%s247 + $0x48] sm:$0xff]
        %v298 = vld [vmem:[%s247 + $0x50] sm:$0xff]
        %v299 = vld [vmem:[%s247 + $0x58] sm:$0xff]
        %v300 = vld [vmem:[%s247 + $0x60] sm:$0xff]
        %v301 = vld [vmem:[%s247 + $0x68] sm:$0xff]
        %v302 = vld [vmem:[%s247 + $0x70] sm:$0xff]
        %v303 = vld [vmem:[%s247 + $0x78] sm:$0xff]
        %v304 = vld [vmem:[#allocation5] sm:$0xff]
        %v305 = vld [vmem:[#allocation5 + $0x8] sm:$0xff]
        %v306 = vld [vmem:[#allocation5 + $0x10] sm:$0xff]
        %v307 = vld [vmem:[#allocation5 + $0x18] sm:$0xff]
        %v308 = vld [vmem:[#allocation5 + $0x20] sm:$0xff]
        %v309 = vld [vmem:[#allocation5 + $0x28] sm:$0xff]
        %v310 = vld [vmem:[#allocation5 + $0x30] sm:$0xff]
        %v311 = vld [vmem:[#allocation5 + $0x38] sm:$0xff]
        %v312 = vld [vmem:[#allocation5 + $0x40] sm:$0xff]
        %v313 = vld [vmem:[#allocation5 + $0x48] sm:$0xff]
        %v314 = vld [vmem:[#allocation5 + $0x50] sm:$0xff]
        %v315 = vld [vmem:[#allocation5 + $0x58] sm:$0xff]
        %v316 = vld [vmem:[#allocation5 + $0x60] sm:$0xff]
        %v317 = vld [vmem:[#allocation5 + $0x68] sm:$0xff]
        %v318 = vld [vmem:[#allocation5 + $0x70] sm:$0xff]
        %v319 = vld [vmem:[#allocation5 + $0x78] sm:$0xff]
        %v320 = vld [vmem:[#allocation5 + $0x80] sm:$0xff]
        %v321 = vld [vmem:[#allocation5 + $0x88] sm:$0xff]
        %v322 = vld [vmem:[#allocation5 + $0x90] sm:$0xff]
        %v323 = vld [vmem:[#allocation5 + $0x98] sm:$0xff]
        %v324 = vld [vmem:[#allocation5 + $0xa0] sm:$0xff]
        %v325 = vld [vmem:[#allocation5 + $0xa8] sm:$0xff]
        %v326 = vld [vmem:[#allocation5 + $0xb0] sm:$0xff]
        %v327 = vld [vmem:[#allocation5 + $0xb8] sm:$0xff]
        %v328 = vld [vmem:[#allocation5 + $0xc0] sm:$0xff]
        %v329 = vld [vmem:[#allocation5 + $0xc8] sm:$0xff]
        %v330 = vld [vmem:[#allocation5 + $0xd0] sm:$0xff]
        %v331 = vld [vmem:[#allocation5 + $0xd8] sm:$0xff]
        %v332 = vld [vmem:[#allocation5 + $0xe0] sm:$0xff]
        %v333 = vld [vmem:[#allocation5 + $0xe8] sm:$0xff]
        %v334 = vld [vmem:[#allocation5 + $0xf0] sm:$0xff]
        %v335 = vld [vmem:[#allocation5 + $0xf8] sm:$0xff]
        %v336 = vld [vmem:[#allocation5 + $0x100] sm:$0xff]
        %v337 = vld [vmem:[#allocation5 + $0x108] sm:$0xff]
        %v338 = vld [vmem:[#allocation5 + $0x110] sm:$0xff]
        %v339 = vld [vmem:[#allocation5 + $0x118] sm:$0xff]
        %v340 = vld [vmem:[#allocation5 + $0x120] sm:$0xff]
        %v341 = vld [vmem:[#allocation5 + $0x128] sm:$0xff]
        %v342 = vld [vmem:[#allocation5 + $0x130] sm:$0xff]
        %v343 = vld [vmem:[#allocation5 + $0x138] sm:$0xff]
        %v344 = vld [vmem:[#allocation5 + $0x140] sm:$0xff]
        %v345 = vld [vmem:[#allocation5 + $0x148] sm:$0xff]
        %v346 = vld [vmem:[#allocation5 + $0x150] sm:$0xff]
        %v347 = vld [vmem:[#allocation5 + $0x158] sm:$0xff]
        %v348 = vld [vmem:[#allocation5 + $0x160] sm:$0xff]
        %v349 = vld [vmem:[#allocation5 + $0x168] sm:$0xff]
        %v350 = vld [vmem:[#allocation5 + $0x170] sm:$0xff]
        %v351 = vld [vmem:[#allocation5 + $0x178] sm:$0xff]
        %v352 = vld [vmem:[#allocation5 + $0x180] sm:$0xff]
        %v353 = vld [vmem:[#allocation5 + $0x188] sm:$0xff]
        %v354 = vld [vmem:[#allocation5 + $0x190] sm:$0xff]
        %v355 = vld [vmem:[#allocation5 + $0x198] sm:$0xff]
        %v356 = vld [vmem:[#allocation5 + $0x1a0] sm:$0xff]
        %v357 = vld [vmem:[#allocation5 + $0x1a8] sm:$0xff]
        %v358 = vld [vmem:[#allocation5 + $0x1b0] sm:$0xff]
        %v359 = vld [vmem:[#allocation5 + $0x1b8] sm:$0xff]
        %v360 = vld [vmem:[#allocation5 + $0x1c0] sm:$0xff]
        %v361 = vld [vmem:[#allocation5 + $0x1c8] sm:$0xff]
        %v362 = vld [vmem:[#allocation5 + $0x1d0] sm:$0xff]
        %v363 = vld [vmem:[#allocation5 + $0x1d8] sm:$0xff]
        %v364 = vld [vmem:[#allocation5 + $0x1e0] sm:$0xff]
        %v365 = vld [vmem:[#allocation5 + $0x1e8] sm:$0xff]
        %v366 = vld [vmem:[#allocation5 + $0x1f0] sm:$0xff]
        %v367 = vld [vmem:[#allocation5 + $0x1f8] sm:$0xff]
        %v368 = vld [vmem:[#allocation5 + $0x200] sm:$0xff]
        %v369 = vld [vmem:[#allocation5 + $0x208] sm:$0xff]
        %v370 = vld [vmem:[#allocation5 + $0x210] sm:$0xff]
        %v371 = vld [vmem:[#allocation5 + $0x218] sm:$0xff]
        %v372 = vld [vmem:[#allocation5 + $0x220] sm:$0xff]
        %v373 = vld [vmem:[#allocation5 + $0x228] sm:$0xff]
        %v374 = vld [vmem:[#allocation5 + $0x230] sm:$0xff]
        %v375 = vld [vmem:[#allocation5 + $0x238] sm:$0xff]
        %v376 = vld [vmem:[#allocation5 + $0x240] sm:$0xff]
        %v377 = vld [vmem:[#allocation5 + $0x248] sm:$0xff]
        %v378 = vld [vmem:[#allocation5 + $0x250] sm:$0xff]
        %v379 = vld [vmem:[#allocation5 + $0x258] sm:$0xff]
        %v380 = vld [vmem:[#allocation5 + $0x260] sm:$0xff]
        %v381 = vld [vmem:[#allocation5 + $0x268] sm:$0xff]
        %v382 = vld [vmem:[#allocation5 + $0x270] sm:$0xff]
        %v383 = vld [vmem:[#allocation5 + $0x278] sm:$0xff]
        %v384 = vld [vmem:[#allocation5 + $0x280] sm:$0xff]
        %v385 = vld [vmem:[#allocation5 + $0x288] sm:$0xff]
        %v386 = vld [vmem:[#allocation5 + $0x290] sm:$0xff]
        %v387 = vld [vmem:[#allocation5 + $0x298] sm:$0xff]
        %v388 = vld [vmem:[#allocation5 + $0x2a0] sm:$0xff]
        %v389 = vld [vmem:[#allocation5 + $0x2a8] sm:$0xff]
        %v390 = vld [vmem:[#allocation5 + $0x2b0] sm:$0xff]
        %v391 = vld [vmem:[#allocation5 + $0x2b8] sm:$0xff]
        %v392 = vld [vmem:[#allocation5 + $0x2c0] sm:$0xff]
        %v393 = vld [vmem:[#allocation5 + $0x2c8] sm:$0xff]
        %v394 = vld [vmem:[#allocation5 + $0x2d0] sm:$0xff]
        %v395 = vld [vmem:[#allocation5 + $0x2d8] sm:$0xff]
        %v396 = vld [vmem:[#allocation5 + $0x2e0] sm:$0xff]
        %v397 = vld [vmem:[#allocation5 + $0x2e8] sm:$0xff]
        %v398 = vld [vmem:[#allocation5 + $0x2f0] sm:$0xff]
        %v399 = vld [vmem:[#allocation5 + $0x2f8] sm:$0xff]
        %v400 = vld [vmem:[#allocation5 + $0x300] sm:$0xff]
        %v401 = vld [vmem:[#allocation5 + $0x308] sm:$0xff]
        %v402 = vld [vmem:[#allocation5 + $0x310] sm:$0xff]
        %v403 = vld [vmem:[#allocation5 + $0x318] sm:$0xff]
        %v404 = vld [vmem:[#allocation5 + $0x320] sm:$0xff]
        %v405 = vld [vmem:[#allocation5 + $0x328] sm:$0xff]
        %v406 = vld [vmem:[#allocation5 + $0x330] sm:$0xff]
        %v407 = vld [vmem:[#allocation5 + $0x338] sm:$0xff]
        %v408 = vld [vmem:[#allocation5 + $0x340] sm:$0xff]
        %v409 = vld [vmem:[#allocation5 + $0x348] sm:$0xff]
        %v410 = vld [vmem:[#allocation5 + $0x350] sm:$0xff]
        %v411 = vld [vmem:[#allocation5 + $0x358] sm:$0xff]
        %v412 = vld [vmem:[#allocation5 + $0x360] sm:$0xff]
        %v413 = vld [vmem:[#allocation5 + $0x368] sm:$0xff]
        %v414 = vld [vmem:[#allocation5 + $0x370] sm:$0xff]
        %v415 = vld [vmem:[#allocation5 + $0x378] sm:$0xff]
        %v416 = vld [vmem:[#allocation5 + $0x380] sm:$0xff]
        %v417 = vld [vmem:[#allocation5 + $0x388] sm:$0xff]
        %v418 = vld [vmem:[#allocation5 + $0x390] sm:$0xff]
        %v419 = vld [vmem:[#allocation5 + $0x398] sm:$0xff]
        %v420 = vld [vmem:[#allocation5 + $0x3a0] sm:$0xff]
        %v421 = vld [vmem:[#allocation5 + $0x3a8] sm:$0xff]
        %v422 = vld [vmem:[#allocation5 + $0x3b0] sm:$0xff]
        %v423 = vld [vmem:[#allocation5 + $0x3b8] sm:$0xff]
        %v424 = vld [vmem:[#allocation5 + $0x3c0] sm:$0xff]
        %v425 = vld [vmem:[#allocation5 + $0x3c8] sm:$0xff]
        %v426 = vld [vmem:[#allocation5 + $0x3d0] sm:$0xff]
        %v427 = vld [vmem:[#allocation5 + $0x3d8] sm:$0xff]
        %v428 = vld [vmem:[#allocation5 + $0x3e0] sm:$0xff]
        %v429 = vld [vmem:[#allocation5 + $0x3e8] sm:$0xff]
        %v430 = vld [vmem:[#allocation5 + $0x3f0] sm:$0xff]
        %v431 = vld [vmem:[#allocation5 + $0x3f8] sm:$0xff]
        %v432 = vld [vmem:[#allocation7] sm:$0xff]
        %v434 = vlaneseq
        %v435 = vshrl.u32 %v434, 7
        %v436 = vsub.s32 0, %v435
        %v437 = vrot.slane %v432, %v436
        %v438 = vlaneseq
        %v439 = vshrl.u32 %v438, 7
        %v440 = vsub.s32 1, %v439
        %v441 = vrot.slane %v432, %v440
        %v442 = vlaneseq
        %v443 = vshrl.u32 %v442, 7
        %v444 = vsub.s32 2, %v443
        %v445 = vrot.slane %v432, %v444
        %v446 = vlaneseq
        %v447 = vshrl.u32 %v446, 7
        %v448 = vsub.s32 3, %v447
        %v449 = vrot.slane %v432, %v448
        %v450 = vlaneseq
        %v451 = vshrl.u32 %v450, 7
        %v452 = vsub.s32 4, %v451
        %v453 = vrot.slane %v432, %v452
        %v454 = vlaneseq
        %v455 = vshrl.u32 %v454, 7
        %v456 = vsub.s32 5, %v455
        %v457 = vrot.slane %v432, %v456
        %v458 = vlaneseq
        %v459 = vshrl.u32 %v458, 7
        %v460 = vsub.s32 6, %v459
        %v461 = vrot.slane %v432, %v460
        %v462 = vlaneseq
        %v463 = vshrl.u32 %v462, 7
        %v464 = vsub.s32 7, %v463
        %v465 = vrot.slane %v432, %v464
        %v490 = vunpack.c.l.b16 %v288
        %v491 = vunpack.c.h.b16 %v288
        %v492 = vunpack.c.l.b16 %v289
        %v493 = vunpack.c.h.b16 %v289
        %v494 = vunpack.c.l.b16 %v290
        %v495 = vunpack.c.h.b16 %v290
        %v496 = vunpack.c.l.b16 %v291
        %v497 = vunpack.c.h.b16 %v291
        %v498 = vunpack.c.l.b16 %v292
        %v499 = vunpack.c.h.b16 %v292
        %v500 = vunpack.c.l.b16 %v293
        %v501 = vunpack.c.h.b16 %v293
        %v502 = vunpack.c.l.b16 %v294
        %v503 = vunpack.c.h.b16 %v294
        %v504 = vunpack.c.l.b16 %v295
        %v505 = vunpack.c.h.b16 %v295
        %v506 = vunpack.c.l.b16 %v296
        %v507 = vunpack.c.h.b16 %v296
        %v508 = vunpack.c.l.b16 %v297
        %v509 = vunpack.c.h.b16 %v297
        %v510 = vunpack.c.l.b16 %v298
        %v511 = vunpack.c.h.b16 %v298
        %v512 = vunpack.c.l.b16 %v299
        %v513 = vunpack.c.h.b16 %v299
        %v514 = vunpack.c.l.b16 %v300
        %v515 = vunpack.c.h.b16 %v300
        %v516 = vunpack.c.l.b16 %v301
        %v517 = vunpack.c.h.b16 %v301
        %v518 = vunpack.c.l.b16 %v302
        %v519 = vunpack.c.h.b16 %v302
        %v520 = vunpack.c.l.b16 %v303
        %v521 = vunpack.c.h.b16 %v303
        %v522 = vpack.c.b16 %v492, %v490
        %v523 = vpack.c.b16 %v493, %v491
        %v524 = vpack.c.b16 %v496, %v494
        %v525 = vpack.c.b16 %v497, %v495
        %v526 = vpack.c.b16 %v500, %v498
        %v527 = vpack.c.b16 %v501, %v499
        %v528 = vpack.c.b16 %v504, %v502
        %v529 = vpack.c.b16 %v505, %v503
        %v530 = vpack.c.b16 %v508, %v506
        %v531 = vpack.c.b16 %v509, %v507
        %v532 = vpack.c.b16 %v512, %v510
        %v533 = vpack.c.b16 %v513, %v511
        %v534 = vpack.c.b16 %v516, %v514
        %v535 = vpack.c.b16 %v517, %v515
        %v536 = vpack.c.b16 %v520, %v518
        %v537 = vpack.c.b16 %v521, %v519
        %v682 = vunpack.c.l.b16 %v304
        %v683 = vunpack.c.h.b16 %v304
        %v684 = vunpack.c.l.b16 %v305
        %v685 = vunpack.c.h.b16 %v305
        %v686 = vunpack.c.l.b16 %v306
        %v687 = vunpack.c.h.b16 %v306
        %v688 = vunpack.c.l.b16 %v307
        %v689 = vunpack.c.h.b16 %v307
        %v690 = vunpack.c.l.b16 %v308
        %v691 = vunpack.c.h.b16 %v308
        %v692 = vunpack.c.l.b16 %v309
        %v693 = vunpack.c.h.b16 %v309
        %v694 = vunpack.c.l.b16 %v310
        %v695 = vunpack.c.h.b16 %v310
        %v696 = vunpack.c.l.b16 %v311
        %v697 = vunpack.c.h.b16 %v311
        %v698 = vunpack.c.l.b16 %v312
        %v699 = vunpack.c.h.b16 %v312
        %v700 = vunpack.c.l.b16 %v313
        %v701 = vunpack.c.h.b16 %v313
        %v702 = vunpack.c.l.b16 %v314
        %v703 = vunpack.c.h.b16 %v314
        %v704 = vunpack.c.l.b16 %v315
        %v705 = vunpack.c.h.b16 %v315
        %v706 = vunpack.c.l.b16 %v316
        %v707 = vunpack.c.h.b16 %v316
        %v708 = vunpack.c.l.b16 %v317
        %v709 = vunpack.c.h.b16 %v317
        %v710 = vunpack.c.l.b16 %v318
        %v711 = vunpack.c.h.b16 %v318
        %v712 = vunpack.c.l.b16 %v319
        %v713 = vunpack.c.h.b16 %v319
        %v714 = vunpack.c.l.b16 %v320
        %v715 = vunpack.c.h.b16 %v320
        %v716 = vunpack.c.l.b16 %v321
        %v717 = vunpack.c.h.b16 %v321
        %v718 = vunpack.c.l.b16 %v322
        %v719 = vunpack.c.h.b16 %v322
        %v720 = vunpack.c.l.b16 %v323
        %v721 = vunpack.c.h.b16 %v323
        %v722 = vunpack.c.l.b16 %v324
        %v723 = vunpack.c.h.b16 %v324
        %v724 = vunpack.c.l.b16 %v325
        %v725 = vunpack.c.h.b16 %v325
        %v726 = vunpack.c.l.b16 %v326
        %v727 = vunpack.c.h.b16 %v326
        %v728 = vunpack.c.l.b16 %v327
        %v729 = vunpack.c.h.b16 %v327
        %v730 = vunpack.c.l.b16 %v328
        %v731 = vunpack.c.h.b16 %v328
        %v732 = vunpack.c.l.b16 %v329
        %v733 = vunpack.c.h.b16 %v329
        %v734 = vunpack.c.l.b16 %v330
        %v735 = vunpack.c.h.b16 %v330
        %v736 = vunpack.c.l.b16 %v331
        %v737 = vunpack.c.h.b16 %v331
        %v738 = vunpack.c.l.b16 %v332
        %v739 = vunpack.c.h.b16 %v332
        %v740 = vunpack.c.l.b16 %v333
        %v741 = vunpack.c.h.b16 %v333
        %v742 = vunpack.c.l.b16 %v334
        %v743 = vunpack.c.h.b16 %v334
        %v744 = vunpack.c.l.b16 %v335
        %v745 = vunpack.c.h.b16 %v335
        %v746 = vunpack.c.l.b16 %v336
        %v747 = vunpack.c.h.b16 %v336
        %v748 = vunpack.c.l.b16 %v337
        %v749 = vunpack.c.h.b16 %v337
        %v750 = vunpack.c.l.b16 %v338
        %v751 = vunpack.c.h.b16 %v338
        %v752 = vunpack.c.l.b16 %v339
        %v753 = vunpack.c.h.b16 %v339
        %v754 = vunpack.c.l.b16 %v340
        %v755 = vunpack.c.h.b16 %v340
        %v756 = vunpack.c.l.b16 %v341
        %v757 = vunpack.c.h.b16 %v341
        %v758 = vunpack.c.l.b16 %v342
        %v759 = vunpack.c.h.b16 %v342
        %v760 = vunpack.c.l.b16 %v343
        %v761 = vunpack.c.h.b16 %v343
        %v762 = vunpack.c.l.b16 %v344
        %v763 = vunpack.c.h.b16 %v344
        %v764 = vunpack.c.l.b16 %v345
        %v765 = vunpack.c.h.b16 %v345
        %v766 = vunpack.c.l.b16 %v346
        %v767 = vunpack.c.h.b16 %v346
        %v768 = vunpack.c.l.b16 %v347
        %v769 = vunpack.c.h.b16 %v347
        %v770 = vunpack.c.l.b16 %v348
        %v771 = vunpack.c.h.b16 %v348
        %v772 = vunpack.c.l.b16 %v349
        %v773 = vunpack.c.h.b16 %v349
        %v774 = vunpack.c.l.b16 %v350
        %v775 = vunpack.c.h.b16 %v350
        %v776 = vunpack.c.l.b16 %v351
        %v777 = vunpack.c.h.b16 %v351
        %v778 = vunpack.c.l.b16 %v352
        %v779 = vunpack.c.h.b16 %v352
        %v780 = vunpack.c.l.b16 %v353
        %v781 = vunpack.c.h.b16 %v353
        %v782 = vunpack.c.l.b16 %v354
        %v783 = vunpack.c.h.b16 %v354
        %v784 = vunpack.c.l.b16 %v355
        %v785 = vunpack.c.h.b16 %v355
        %v786 = vunpack.c.l.b16 %v356
        %v787 = vunpack.c.h.b16 %v356
        %v788 = vunpack.c.l.b16 %v357
        %v789 = vunpack.c.h.b16 %v357
        %v790 = vunpack.c.l.b16 %v358
        %v791 = vunpack.c.h.b16 %v358
        %v792 = vunpack.c.l.b16 %v359
        %v793 = vunpack.c.h.b16 %v359
        %v794 = vunpack.c.l.b16 %v360
        %v795 = vunpack.c.h.b16 %v360
        %v796 = vunpack.c.l.b16 %v361
        %v797 = vunpack.c.h.b16 %v361
        %v798 = vunpack.c.l.b16 %v362
        %v799 = vunpack.c.h.b16 %v362
        %v800 = vunpack.c.l.b16 %v363
        %v801 = vunpack.c.h.b16 %v363
        %v802 = vunpack.c.l.b16 %v364
        %v803 = vunpack.c.h.b16 %v364
        %v804 = vunpack.c.l.b16 %v365
        %v805 = vunpack.c.h.b16 %v365
        %v806 = vunpack.c.l.b16 %v366
        %v807 = vunpack.c.h.b16 %v366
        %v808 = vunpack.c.l.b16 %v367
        %v809 = vunpack.c.h.b16 %v367
        %v810 = vunpack.c.l.b16 %v368
        %v811 = vunpack.c.h.b16 %v368
        %v812 = vunpack.c.l.b16 %v369
        %v813 = vunpack.c.h.b16 %v369
        %v814 = vunpack.c.l.b16 %v370
        %v815 = vunpack.c.h.b16 %v370
        %v816 = vunpack.c.l.b16 %v371
        %v817 = vunpack.c.h.b16 %v371
        %v818 = vunpack.c.l.b16 %v372
        %v819 = vunpack.c.h.b16 %v372
        %v820 = vunpack.c.l.b16 %v373
        %v821 = vunpack.c.h.b16 %v373
        %v822 = vunpack.c.l.b16 %v374
        %v823 = vunpack.c.h.b16 %v374
        %v824 = vunpack.c.l.b16 %v375
        %v825 = vunpack.c.h.b16 %v375
        %v826 = vunpack.c.l.b16 %v376
        %v827 = vunpack.c.h.b16 %v376
        %v828 = vunpack.c.l.b16 %v377
        %v829 = vunpack.c.h.b16 %v377
        %v830 = vunpack.c.l.b16 %v378
        %v831 = vunpack.c.h.b16 %v378
        %v832 = vunpack.c.l.b16 %v379
        %v833 = vunpack.c.h.b16 %v379
        %v834 = vunpack.c.l.b16 %v380
        %v835 = vunpack.c.h.b16 %v380
        %v836 = vunpack.c.l.b16 %v381
        %v837 = vunpack.c.h.b16 %v381
        %v838 = vunpack.c.l.b16 %v382
        %v839 = vunpack.c.h.b16 %v382
        %v840 = vunpack.c.l.b16 %v383
        %v841 = vunpack.c.h.b16 %v383
        %v842 = vunpack.c.l.b16 %v384
        %v843 = vunpack.c.h.b16 %v384
        %v844 = vunpack.c.l.b16 %v385
        %v845 = vunpack.c.h.b16 %v385
        %v846 = vunpack.c.l.b16 %v386
        %v847 = vunpack.c.h.b16 %v386
        %v848 = vunpack.c.l.b16 %v387
        %v849 = vunpack.c.h.b16 %v387
        %v850 = vunpack.c.l.b16 %v388
        %v851 = vunpack.c.h.b16 %v388
        %v852 = vunpack.c.l.b16 %v389
        %v853 = vunpack.c.h.b16 %v389
        %v854 = vunpack.c.l.b16 %v390
        %v855 = vunpack.c.h.b16 %v390
        %v856 = vunpack.c.l.b16 %v391
        %v857 = vunpack.c.h.b16 %v391
        %v858 = vunpack.c.l.b16 %v392
        %v859 = vunpack.c.h.b16 %v392
        %v860 = vunpack.c.l.b16 %v393
        %v861 = vunpack.c.h.b16 %v393
        %v862 = vunpack.c.l.b16 %v394
        %v863 = vunpack.c.h.b16 %v394
        %v864 = vunpack.c.l.b16 %v395
        %v865 = vunpack.c.h.b16 %v395
        %v866 = vunpack.c.l.b16 %v396
        %v867 = vunpack.c.h.b16 %v396
        %v868 = vunpack.c.l.b16 %v397
        %v869 = vunpack.c.h.b16 %v397
        %v870 = vunpack.c.l.b16 %v398
        %v871 = vunpack.c.h.b16 %v398
        %v872 = vunpack.c.l.b16 %v399
        %v873 = vunpack.c.h.b16 %v399
        %v874 = vunpack.c.l.b16 %v400
        %v875 = vunpack.c.h.b16 %v400
        %v876 = vunpack.c.l.b16 %v401
        %v877 = vunpack.c.h.b16 %v401
        %v878 = vunpack.c.l.b16 %v402
        %v879 = vunpack.c.h.b16 %v402
        %v880 = vunpack.c.l.b16 %v403
        %v881 = vunpack.c.h.b16 %v403
        %v882 = vunpack.c.l.b16 %v404
        %v883 = vunpack.c.h.b16 %v404
        %v884 = vunpack.c.l.b16 %v405
        %v885 = vunpack.c.h.b16 %v405
        %v886 = vunpack.c.l.b16 %v406
        %v887 = vunpack.c.h.b16 %v406
        %v888 = vunpack.c.l.b16 %v407
        %v889 = vunpack.c.h.b16 %v407
        %v890 = vunpack.c.l.b16 %v408
        %v891 = vunpack.c.h.b16 %v408
        %v892 = vunpack.c.l.b16 %v409
        %v893 = vunpack.c.h.b16 %v409
        %v894 = vunpack.c.l.b16 %v410
        %v895 = vunpack.c.h.b16 %v410
        %v896 = vunpack.c.l.b16 %v411
        %v897 = vunpack.c.h.b16 %v411
        %v898 = vunpack.c.l.b16 %v412
        %v899 = vunpack.c.h.b16 %v412
        %v900 = vunpack.c.l.b16 %v413
        %v901 = vunpack.c.h.b16 %v413
        %v902 = vunpack.c.l.b16 %v414
        %v903 = vunpack.c.h.b16 %v414
        %v904 = vunpack.c.l.b16 %v415
        %v905 = vunpack.c.h.b16 %v415
        %v906 = vunpack.c.l.b16 %v416
        %v907 = vunpack.c.h.b16 %v416
        %v908 = vunpack.c.l.b16 %v417
        %v909 = vunpack.c.h.b16 %v417
        %v910 = vunpack.c.l.b16 %v418
        %v911 = vunpack.c.h.b16 %v418
        %v912 = vunpack.c.l.b16 %v419
        %v913 = vunpack.c.h.b16 %v419
        %v914 = vunpack.c.l.b16 %v420
        %v915 = vunpack.c.h.b16 %v420
        %v916 = vunpack.c.l.b16 %v421
        %v917 = vunpack.c.h.b16 %v421
        %v918 = vunpack.c.l.b16 %v422
        %v919 = vunpack.c.h.b16 %v422
        %v920 = vunpack.c.l.b16 %v423
        %v921 = vunpack.c.h.b16 %v423
        %v922 = vunpack.c.l.b16 %v424
        %v923 = vunpack.c.h.b16 %v424
        %v924 = vunpack.c.l.b16 %v425
        %v925 = vunpack.c.h.b16 %v425
        %v926 = vunpack.c.l.b16 %v426
        %v927 = vunpack.c.h.b16 %v426
        %v928 = vunpack.c.l.b16 %v427
        %v929 = vunpack.c.h.b16 %v427
        %v930 = vunpack.c.l.b16 %v428
        %v931 = vunpack.c.h.b16 %v428
        %v932 = vunpack.c.l.b16 %v429
        %v933 = vunpack.c.h.b16 %v429
        %v934 = vunpack.c.l.b16 %v430
        %v935 = vunpack.c.h.b16 %v430
        %v936 = vunpack.c.l.b16 %v431
        %v937 = vunpack.c.h.b16 %v431
        %v938 = vpack.c.b16 %v690, %v682
        %v939 = vpack.c.b16 %v691, %v683
        %v940 = vpack.c.b16 %v692, %v684
        %v941 = vpack.c.b16 %v693, %v685
        %v942 = vpack.c.b16 %v694, %v686
        %v943 = vpack.c.b16 %v695, %v687
        %v944 = vpack.c.b16 %v696, %v688
        %v945 = vpack.c.b16 %v697, %v689
        %v946 = vpack.c.b16 %v706, %v698
        %v947 = vpack.c.b16 %v707, %v699
        %v948 = vpack.c.b16 %v708, %v700
        %v949 = vpack.c.b16 %v709, %v701
        %v950 = vpack.c.b16 %v710, %v702
        %v951 = vpack.c.b16 %v711, %v703
        %v952 = vpack.c.b16 %v712, %v704
        %v953 = vpack.c.b16 %v713, %v705
        %v954 = vpack.c.b16 %v722, %v714
        %v955 = vpack.c.b16 %v723, %v715
        %v956 = vpack.c.b16 %v724, %v716
        %v957 = vpack.c.b16 %v725, %v717
        %v958 = vpack.c.b16 %v726, %v718
        %v959 = vpack.c.b16 %v727, %v719
        %v960 = vpack.c.b16 %v728, %v720
        %v961 = vpack.c.b16 %v729, %v721
        %v962 = vpack.c.b16 %v738, %v730
        %v963 = vpack.c.b16 %v739, %v731
        %v964 = vpack.c.b16 %v740, %v732
        %v965 = vpack.c.b16 %v741, %v733
        %v966 = vpack.c.b16 %v742, %v734
        %v967 = vpack.c.b16 %v743, %v735
        %v968 = vpack.c.b16 %v744, %v736
        %v969 = vpack.c.b16 %v745, %v737
        %v970 = vpack.c.b16 %v754, %v746
        %v971 = vpack.c.b16 %v755, %v747
        %v972 = vpack.c.b16 %v756, %v748
        %v973 = vpack.c.b16 %v757, %v749
        %v974 = vpack.c.b16 %v758, %v750
        %v975 = vpack.c.b16 %v759, %v751
        %v976 = vpack.c.b16 %v760, %v752
        %v977 = vpack.c.b16 %v761, %v753
        %v978 = vpack.c.b16 %v770, %v762
        %v979 = vpack.c.b16 %v771, %v763
        %v980 = vpack.c.b16 %v772, %v764
        %v981 = vpack.c.b16 %v773, %v765
        %v982 = vpack.c.b16 %v774, %v766
        %v983 = vpack.c.b16 %v775, %v767
        %v984 = vpack.c.b16 %v776, %v768
        %v985 = vpack.c.b16 %v777, %v769
        %v986 = vpack.c.b16 %v786, %v778
        %v987 = vpack.c.b16 %v787, %v779
        %v988 = vpack.c.b16 %v788, %v780
        %v989 = vpack.c.b16 %v789, %v781
        %v990 = vpack.c.b16 %v790, %v782
        %v991 = vpack.c.b16 %v791, %v783
        %v992 = vpack.c.b16 %v792, %v784
        %v993 = vpack.c.b16 %v793, %v785
        %v994 = vpack.c.b16 %v802, %v794
        %v995 = vpack.c.b16 %v803, %v795
        %v996 = vpack.c.b16 %v804, %v796
        %v997 = vpack.c.b16 %v805, %v797
        %v998 = vpack.c.b16 %v806, %v798
        %v999 = vpack.c.b16 %v807, %v799
        %v1000 = vpack.c.b16 %v808, %v800
        %v1001 = vpack.c.b16 %v809, %v801
        %v1002 = vpack.c.b16 %v818, %v810
        %v1003 = vpack.c.b16 %v819, %v811
        %v1004 = vpack.c.b16 %v820, %v812
        %v1005 = vpack.c.b16 %v821, %v813
        %v1006 = vpack.c.b16 %v822, %v814
        %v1007 = vpack.c.b16 %v823, %v815
        %v1008 = vpack.c.b16 %v824, %v816
        %v1009 = vpack.c.b16 %v825, %v817
        %v1010 = vpack.c.b16 %v834, %v826
        %v1011 = vpack.c.b16 %v835, %v827
        %v1012 = vpack.c.b16 %v836, %v828
        %v1013 = vpack.c.b16 %v837, %v829
        %v1014 = vpack.c.b16 %v838, %v830
        %v1015 = vpack.c.b16 %v839, %v831
        %v1016 = vpack.c.b16 %v840, %v832
        %v1017 = vpack.c.b16 %v841, %v833
        %v1018 = vpack.c.b16 %v850, %v842
        %v1019 = vpack.c.b16 %v851, %v843
        %v1020 = vpack.c.b16 %v852, %v844
        %v1021 = vpack.c.b16 %v853, %v845
        %v1022 = vpack.c.b16 %v854, %v846
        %v1023 = vpack.c.b16 %v855, %v847
        %v1024 = vpack.c.b16 %v856, %v848
        %v1025 = vpack.c.b16 %v857, %v849
        %v1026 = vpack.c.b16 %v866, %v858
        %v1027 = vpack.c.b16 %v867, %v859
        %v1028 = vpack.c.b16 %v868, %v860
        %v1029 = vpack.c.b16 %v869, %v861
        %v1030 = vpack.c.b16 %v870, %v862
        %v1031 = vpack.c.b16 %v871, %v863
        %v1032 = vpack.c.b16 %v872, %v864
        %v1033 = vpack.c.b16 %v873, %v865
        %v1034 = vpack.c.b16 %v882, %v874
        %v1035 = vpack.c.b16 %v883, %v875
        %v1036 = vpack.c.b16 %v884, %v876
        %v1037 = vpack.c.b16 %v885, %v877
        %v1038 = vpack.c.b16 %v886, %v878
        %v1039 = vpack.c.b16 %v887, %v879
        %v1040 = vpack.c.b16 %v888, %v880
        %v1041 = vpack.c.b16 %v889, %v881
        %v1042 = vpack.c.b16 %v898, %v890
        %v1043 = vpack.c.b16 %v899, %v891
        %v1044 = vpack.c.b16 %v900, %v892
        %v1045 = vpack.c.b16 %v901, %v893
        %v1046 = vpack.c.b16 %v902, %v894
        %v1047 = vpack.c.b16 %v903, %v895
        %v1048 = vpack.c.b16 %v904, %v896
        %v1049 = vpack.c.b16 %v905, %v897
        %v1050 = vpack.c.b16 %v914, %v906
        %v1051 = vpack.c.b16 %v915, %v907
        %v1052 = vpack.c.b16 %v916, %v908
        %v1053 = vpack.c.b16 %v917, %v909
        %v1054 = vpack.c.b16 %v918, %v910
        %v1055 = vpack.c.b16 %v919, %v911
        %v1056 = vpack.c.b16 %v920, %v912
        %v1057 = vpack.c.b16 %v921, %v913
        %v1058 = vpack.c.b16 %v930, %v922
        %v1059 = vpack.c.b16 %v931, %v923
        %v1060 = vpack.c.b16 %v932, %v924
        %v1061 = vpack.c.b16 %v933, %v925
        %v1062 = vpack.c.b16 %v934, %v926
        %v1063 = vpack.c.b16 %v935, %v927
        %v1064 = vpack.c.b16 %v936, %v928
        %v1065 = vpack.c.b16 %v937, %v929
        %1194 = vmatprep.subr.bf16.mxu0 %v939
        %1195 = vmatpush1.bf16.msra.mxu0 %v938
        %1196 = vmatprep.subr.bf16.mxu0 %v947
        %1197 = vmatpush1.bf16.msra.mxu0 %v946
        %1198 = vmatprep.subr.bf16.mxu0 %v955
        %1199 = vmatpush1.bf16.msra.mxu0 %v954
        %1200 = vmatprep.subr.bf16.mxu0 %v963
        %1201 = vmatpush1.bf16.msra.mxu0 %v962
        %1202 = vmatprep.subr.bf16.mxu0 %v971
        %1203 = vmatpush1.bf16.msra.mxu0 %v970
        %1204 = vmatprep.subr.bf16.mxu0 %v979
        %1205 = vmatpush1.bf16.msra.mxu0 %v978
        %1206 = vmatprep.subr.bf16.mxu0 %v987
        %1207 = vmatpush1.bf16.msra.mxu0 %v986
        %1208 = vmatprep.subr.bf16.mxu0 %v995
        %1209 = vmatpush1.bf16.msra.mxu0 %v994
        %1210 = vmatprep.subr.bf16.mxu0 %v1003
        %1211 = vmatpush1.bf16.msra.mxu0 %v1002
        %1212 = vmatprep.subr.bf16.mxu0 %v1011
        %1213 = vmatpush1.bf16.msra.mxu0 %v1010
        %1214 = vmatprep.subr.bf16.mxu0 %v1019
        %1215 = vmatpush1.bf16.msra.mxu0 %v1018
        %1216 = vmatprep.subr.bf16.mxu0 %v1027
        %1217 = vmatpush1.bf16.msra.mxu0 %v1026
        %1218 = vmatprep.subr.bf16.mxu0 %v1035
        %1219 = vmatpush1.bf16.msra.mxu0 %v1034
        %1220 = vmatprep.subr.bf16.mxu0 %v1043
        %1221 = vmatpush1.bf16.msra.mxu0 %v1042
        %1222 = vmatprep.subr.bf16.mxu0 %v1051
        %1223 = vmatpush1.bf16.msra.mxu0 %v1050
        %1224 = vmatprep.subr.bf16.mxu0 %v1059
        %1225 = vmatpush1.bf16.msra.mxu0 %v1058
        %1226 = vmatprep.mubr.bf16.mxu0 %v523
        %1227 = vmatmul.mubr.bf16.gmra.mrb[0].mxu0 %v522
        %v1228 = vpop.f32.mrb[0].mxu0
        %v1229 = vadd.f32 %v437, %v1228
        %v1230 = vpop.f32.mrb[0].mxu0
        %v1231 = vadd.f32 %v441, %v1230
        %v1232 = vpop.f32.mrb[0].mxu0
        %v1233 = vadd.f32 %v437, %v1232
        %v1234 = vpop.f32.mrb[0].mxu0
        %v1235 = vadd.f32 %v441, %v1234
        %1236 = vmatprep.mubr.bf16.mxu0 %v525
        %1237 = vmatmul.mubr.bf16.gmra.mrb[0].mxu0 %v524
        %v1238 = vpop.f32.mrb[0].mxu0
        %v1239 = vadd.f32 %v437, %v1238
        %v1240 = vpop.f32.mrb[0].mxu0
        %v1241 = vadd.f32 %v441, %v1240
        %v1242 = vpop.f32.mrb[0].mxu0
        %v1243 = vadd.f32 %v437, %v1242
        %v1244 = vpop.f32.mrb[0].mxu0
        %v1245 = vadd.f32 %v441, %v1244
        %1246 = vmatprep.mubr.bf16.mxu0 %v527
        %1247 = vmatmul.mubr.bf16.gmra.mrb[0].mxu0 %v526
        %v1248 = vpop.f32.mrb[0].mxu0
        %v1249 = vadd.f32 %v437, %v1248
        %v1250 = vpop.f32.mrb[0].mxu0
        %v1251 = vadd.f32 %v441, %v1250
        %v1252 = vpop.f32.mrb[0].mxu0
        %v1253 = vadd.f32 %v437, %v1252
        %v1254 = vpop.f32.mrb[0].mxu0
        %v1255 = vadd.f32 %v441, %v1254
        %1256 = vmatprep.mubr.bf16.mxu0 %v529
        %1257 = vmatmul.mubr.bf16.gmra.mrb[0].mxu0 %v528
        %v1258 = vpop.f32.mrb[0].mxu0
        %v1259 = vadd.f32 %v437, %v1258
        %v1260 = vpop.f32.mrb[0].mxu0
        %v1261 = vadd.f32 %v441, %v1260
        %v1262 = vpop.f32.mrb[0].mxu0
        %v1263 = vadd.f32 %v437, %v1262
        %v1264 = vpop.f32.mrb[0].mxu0
        %v1265 = vadd.f32 %v441, %v1264
        %1266 = vmatprep.mubr.bf16.mxu0 %v531
        %1267 = vmatmul.mubr.bf16.gmra.mrb[0].mxu0 %v530
        %v1268 = vpop.f32.mrb[0].mxu0
        %v1269 = vadd.f32 %v437, %v1268
        %v1270 = vpop.f32.mrb[0].mxu0
        %v1271 = vadd.f32 %v441, %v1270
        %v1272 = vpop.f32.mrb[0].mxu0
        %v1273 = vadd.f32 %v437, %v1272
        %v1274 = vpop.f32.mrb[0].mxu0
        %v1275 = vadd.f32 %v441, %v1274
        %1276 = vmatprep.mubr.bf16.mxu0 %v533
        %1277 = vmatmul.mubr.bf16.gmra.mrb[0].mxu0 %v532
        %v1278 = vpop.f32.mrb[0].mxu0
        %v1279 = vadd.f32 %v437, %v1278
        %v1280 = vpop.f32.mrb[0].mxu0
        %v1281 = vadd.f32 %v441, %v1280
        %v1282 = vpop.f32.mrb[0].mxu0
        %v1283 = vadd.f32 %v437, %v1282
        %v1284 = vpop.f32.mrb[0].mxu0
        %v1285 = vadd.f32 %v441, %v1284
        %1286 = vmatprep.mubr.bf16.mxu0 %v535
        %1287 = vmatmul.mubr.bf16.gmra.mrb[0].mxu0 %v534
        %v1288 = vpop.f32.mrb[0].mxu0
        %v1289 = vadd.f32 %v437, %v1288
        %v1290 = vpop.f32.mrb[0].mxu0
        %v1291 = vadd.f32 %v441, %v1290
        %v1292 = vpop.f32.mrb[0].mxu0
        %v1293 = vadd.f32 %v437, %v1292
        %v1294 = vpop.f32.mrb[0].mxu0
        %v1295 = vadd.f32 %v441, %v1294
        %1296 = vmatprep.mubr.bf16.mxu0 %v537
        %1297 = vmatmul.mubr.bf16.gmra.mrb[0].mxu0 %v536
        %v1298 = vpop.f32.mrb[0].mxu0
        %v1299 = vadd.f32 %v437, %v1298
        %v1300 = vpop.f32.mrb[0].mxu0
        %v1301 = vadd.f32 %v441, %v1300
        %v1302 = vpop.f32.mrb[0].mxu0
        %v1303 = vadd.f32 %v437, %v1302
        %v1304 = vpop.f32.mrb[0].mxu0
        %v1305 = vadd.f32 %v441, %v1304
        %1306 = vdwg.mxu0
        %1307 = vmatprep.subr.bf16.mxu0 %v941
        %1308 = vmatpush1.bf16.msra.mxu0 %v940
        %1309 = vmatprep.subr.bf16.mxu0 %v949
        %1310 = vmatpush1.bf16.msra.mxu0 %v948
        %1311 = vmatprep.subr.bf16.mxu0 %v957
        %1312 = vmatpush1.bf16.msra.mxu0 %v956
        %1313 = vmatprep.subr.bf16.mxu0 %v965
        %1314 = vmatpush1.bf16.msra.mxu0 %v964
        %1315 = vmatprep.subr.bf16.mxu0 %v973
        %1316 = vmatpush1.bf16.msra.mxu0 %v972
        %1317 = vmatprep.subr.bf16.mxu0 %v981
        %1318 = vmatpush1.bf16.msra.mxu0 %v980
        %1319 = vmatprep.subr.bf16.mxu0 %v989
        %1320 = vmatpush1.bf16.msra.mxu0 %v988
        %1321 = vmatprep.subr.bf16.mxu0 %v997
        %1322 = vmatpush1.bf16.msra.mxu0 %v996
        %1323 = vmatprep.subr.bf16.mxu0 %v1005
        %1324 = vmatpush1.bf16.msra.mxu0 %v1004
        %1325 = vmatprep.subr.bf16.mxu0 %v1013
        %1326 = vmatpush1.bf16.msra.mxu0 %v1012
        %1327 = vmatprep.subr.bf16.mxu0 %v1021
        %1328 = vmatpush1.bf16.msra.mxu0 %v1020
        %1329 = vmatprep.subr.bf16.mxu0 %v1029
        %1330 = vmatpush1.bf16.msra.mxu0 %v1028
        %1331 = vmatprep.subr.bf16.mxu0 %v1037
        %1332 = vmatpush1.bf16.msra.mxu0 %v1036
        %1333 = vmatprep.subr.bf16.mxu0 %v1045
        %1334 = vmatpush1.bf16.msra.mxu0 %v1044
        %1335 = vmatprep.subr.bf16.mxu0 %v1053
        %1336 = vmatpush1.bf16.msra.mxu0 %v1052
        %1337 = vmatprep.subr.bf16.mxu0 %v1061
        %1338 = vmatpush1.bf16.msra.mxu0 %v1060
        %1339 = vmatprep.mubr.bf16.mxu0 %v523
        %1340 = vmatmul.mubr.bf16.gmra.mrb[0].mxu0 %v522
        %v1341 = vpop.f32.mrb[0].mxu0
        %v1342 = vadd.f32 %v445, %v1341
        %v1343 = vpop.f32.mrb[0].mxu0
        %v1344 = vadd.f32 %v449, %v1343
        %v1345 = vpop.f32.mrb[0].mxu0
        %v1346 = vadd.f32 %v445, %v1345
        %v1347 = vpop.f32.mrb[0].mxu0
        %v1348 = vadd.f32 %v449, %v1347
        %1349 = vmatprep.mubr.bf16.mxu0 %v525
        %1350 = vmatmul.mubr.bf16.gmra.mrb[0].mxu0 %v524
        %v1351 = vpop.f32.mrb[0].mxu0
        %v1352 = vadd.f32 %v445, %v1351
        %v1353 = vpop.f32.mrb[0].mxu0
        %v1354 = vadd.f32 %v449, %v1353
        %v1355 = vpop.f32.mrb[0].mxu0
        %v1356 = vadd.f32 %v445, %v1355
        %v1357 = vpop.f32.mrb[0].mxu0
        %v1358 = vadd.f32 %v449, %v1357
        %1359 = vmatprep.mubr.bf16.mxu0 %v527
        %1360 = vmatmul.mubr.bf16.gmra.mrb[0].mxu0 %v526
        %v1361 = vpop.f32.mrb[0].mxu0
        %v1362 = vadd.f32 %v445, %v1361
        %v1363 = vpop.f32.mrb[0].mxu0
        %v1364 = vadd.f32 %v449, %v1363
        %v1365 = vpop.f32.mrb[0].mxu0
        %v1366 = vadd.f32 %v445, %v1365
        %v1367 = vpop.f32.mrb[0].mxu0
        %v1368 = vadd.f32 %v449, %v1367
        %1369 = vmatprep.mubr.bf16.mxu0 %v529
        %1370 = vmatmul.mubr.bf16.gmra.mrb[0].mxu0 %v528
        %v1371 = vpop.f32.mrb[0].mxu0
        %v1372 = vadd.f32 %v445, %v1371
        %v1373 = vpop.f32.mrb[0].mxu0
        %v1374 = vadd.f32 %v449, %v1373
        %v1375 = vpop.f32.mrb[0].mxu0
        %v1376 = vadd.f32 %v445, %v1375
        %v1377 = vpop.f32.mrb[0].mxu0
        %v1378 = vadd.f32 %v449, %v1377
        %1379 = vmatprep.mubr.bf16.mxu0 %v531
        %1380 = vmatmul.mubr.bf16.gmra.mrb[0].mxu0 %v530
        %v1381 = vpop.f32.mrb[0].mxu0
        %v1382 = vadd.f32 %v445, %v1381
        %v1383 = vpop.f32.mrb[0].mxu0
        %v1384 = vadd.f32 %v449, %v1383
        %v1385 = vpop.f32.mrb[0].mxu0
        %v1386 = vadd.f32 %v445, %v1385
        %v1387 = vpop.f32.mrb[0].mxu0
        %v1388 = vadd.f32 %v449, %v1387
        %1389 = vmatprep.mubr.bf16.mxu0 %v533
        %1390 = vmatmul.mubr.bf16.gmra.mrb[0].mxu0 %v532
        %v1391 = vpop.f32.mrb[0].mxu0
        %v1392 = vadd.f32 %v445, %v1391
        %v1393 = vpop.f32.mrb[0].mxu0
        %v1394 = vadd.f32 %v449, %v1393
        %v1395 = vpop.f32.mrb[0].mxu0
        %v1396 = vadd.f32 %v445, %v1395
        %v1397 = vpop.f32.mrb[0].mxu0
        %v1398 = vadd.f32 %v449, %v1397
        %1399 = vmatprep.mubr.bf16.mxu0 %v535
        %1400 = vmatmul.mubr.bf16.gmra.mrb[0].mxu0 %v534
        %v1401 = vpop.f32.mrb[0].mxu0
        %v1402 = vadd.f32 %v445, %v1401
        %v1403 = vpop.f32.mrb[0].mxu0
        %v1404 = vadd.f32 %v449, %v1403
        %v1405 = vpop.f32.mrb[0].mxu0
        %v1406 = vadd.f32 %v445, %v1405
        %v1407 = vpop.f32.mrb[0].mxu0
        %v1408 = vadd.f32 %v449, %v1407
        %1409 = vmatprep.mubr.bf16.mxu0 %v537
        %1410 = vmatmul.mubr.bf16.gmra.mrb[0].mxu0 %v536
        %v1411 = vpop.f32.mrb[0].mxu0
        %v1412 = vadd.f32 %v445, %v1411
        %v1413 = vpop.f32.mrb[0].mxu0
        %v1414 = vadd.f32 %v449, %v1413
        %v1415 = vpop.f32.mrb[0].mxu0
        %v1416 = vadd.f32 %v445, %v1415
        %v1417 = vpop.f32.mrb[0].mxu0
        %v1418 = vadd.f32 %v449, %v1417
        %1419 = vdwg.mxu0
        %1420 = vmatprep.subr.bf16.mxu0 %v943
        %1421 = vmatpush1.bf16.msra.mxu0 %v942
        %1422 = vmatprep.subr.bf16.mxu0 %v951
        %1423 = vmatpush1.bf16.msra.mxu0 %v950
        %1424 = vmatprep.subr.bf16.mxu0 %v959
        %1425 = vmatpush1.bf16.msra.mxu0 %v958
        %1426 = vmatprep.subr.bf16.mxu0 %v967
        %1427 = vmatpush1.bf16.msra.mxu0 %v966
        %1428 = vmatprep.subr.bf16.mxu0 %v975
        %1429 = vmatpush1.bf16.msra.mxu0 %v974
        %1430 = vmatprep.subr.bf16.mxu0 %v983
        %1431 = vmatpush1.bf16.msra.mxu0 %v982
        %1432 = vmatprep.subr.bf16.mxu0 %v991
        %1433 = vmatpush1.bf16.msra.mxu0 %v990
        %1434 = vmatprep.subr.bf16.mxu0 %v999
        %1435 = vmatpush1.bf16.msra.mxu0 %v998
        %1436 = vmatprep.subr.bf16.mxu0 %v1007
        %1437 = vmatpush1.bf16.msra.mxu0 %v1006
        %1438 = vmatprep.subr.bf16.mxu0 %v1015
        %1439 = vmatpush1.bf16.msra.mxu0 %v1014
        %1440 = vmatprep.subr.bf16.mxu0 %v1023
        %1441 = vmatpush1.bf16.msra.mxu0 %v1022
        %1442 = vmatprep.subr.bf16.mxu0 %v1031
        %1443 = vmatpush1.bf16.msra.mxu0 %v1030
        %1444 = vmatprep.subr.bf16.mxu0 %v1039
        %1445 = vmatpush1.bf16.msra.mxu0 %v1038
        %1446 = vmatprep.subr.bf16.mxu0 %v1047
        %1447 = vmatpush1.bf16.msra.mxu0 %v1046
        %1448 = vmatprep.subr.bf16.mxu0 %v1055
        %1449 = vmatpush1.bf16.msra.mxu0 %v1054
        %1450 = vmatprep.subr.bf16.mxu0 %v1063
        %1451 = vmatpush1.bf16.msra.mxu0 %v1062
        %1452 = vmatprep.mubr.bf16.mxu0 %v523
        %1453 = vmatmul.mubr.bf16.gmra.mrb[0].mxu0 %v522
        %v1454 = vpop.f32.mrb[0].mxu0
        %v1455 = vadd.f32 %v453, %v1454
        %v1456 = vpop.f32.mrb[0].mxu0
        %v1457 = vadd.f32 %v457, %v1456
        %v1458 = vpop.f32.mrb[0].mxu0
        %v1459 = vadd.f32 %v453, %v1458
        %v1460 = vpop.f32.mrb[0].mxu0
        %v1461 = vadd.f32 %v457, %v1460
        %1462 = vmatprep.mubr.bf16.mxu0 %v525
        %1463 = vmatmul.mubr.bf16.gmra.mrb[0].mxu0 %v524
        %v1464 = vpop.f32.mrb[0].mxu0
        %v1465 = vadd.f32 %v453, %v1464
        %v1466 = vpop.f32.mrb[0].mxu0
        %v1467 = vadd.f32 %v457, %v1466
        %v1468 = vpop.f32.mrb[0].mxu0
        %v1469 = vadd.f32 %v453, %v1468
        %v1470 = vpop.f32.mrb[0].mxu0
        %v1471 = vadd.f32 %v457, %v1470
        %1472 = vmatprep.mubr.bf16.mxu0 %v527
        %1473 = vmatmul.mubr.bf16.gmra.mrb[0].mxu0 %v526
        %v1474 = vpop.f32.mrb[0].mxu0
        %v1475 = vadd.f32 %v453, %v1474
        %v1476 = vpop.f32.mrb[0].mxu0
        %v1477 = vadd.f32 %v457, %v1476
        %v1478 = vpop.f32.mrb[0].mxu0
        %v1479 = vadd.f32 %v453, %v1478
        %v1480 = vpop.f32.mrb[0].mxu0
        %v1481 = vadd.f32 %v457, %v1480
        %1482 = vmatprep.mubr.bf16.mxu0 %v529
        %1483 = vmatmul.mubr.bf16.gmra.mrb[0].mxu0 %v528
        %v1484 = vpop.f32.mrb[0].mxu0
        %v1485 = vadd.f32 %v453, %v1484
        %v1486 = vpop.f32.mrb[0].mxu0
        %v1487 = vadd.f32 %v457, %v1486
        %v1488 = vpop.f32.mrb[0].mxu0
        %v1489 = vadd.f32 %v453, %v1488
        %v1490 = vpop.f32.mrb[0].mxu0
        %v1491 = vadd.f32 %v457, %v1490
        %1492 = vmatprep.mubr.bf16.mxu0 %v531
        %1493 = vmatmul.mubr.bf16.gmra.mrb[0].mxu0 %v530
        %v1494 = vpop.f32.mrb[0].mxu0
        %v1495 = vadd.f32 %v453, %v1494
        %v1496 = vpop.f32.mrb[0].mxu0
        %v1497 = vadd.f32 %v457, %v1496
        %v1498 = vpop.f32.mrb[0].mxu0
        %v1499 = vadd.f32 %v453, %v1498
        %v1500 = vpop.f32.mrb[0].mxu0
        %v1501 = vadd.f32 %v457, %v1500
        %1502 = vmatprep.mubr.bf16.mxu0 %v533
        %1503 = vmatmul.mubr.bf16.gmra.mrb[0].mxu0 %v532
        %v1504 = vpop.f32.mrb[0].mxu0
        %v1505 = vadd.f32 %v453, %v1504
        %v1506 = vpop.f32.mrb[0].mxu0
        %v1507 = vadd.f32 %v457, %v1506
        %v1508 = vpop.f32.mrb[0].mxu0
        %v1509 = vadd.f32 %v453, %v1508
        %v1510 = vpop.f32.mrb[0].mxu0
        %v1511 = vadd.f32 %v457, %v1510
        %1512 = vmatprep.mubr.bf16.mxu0 %v535
        %1513 = vmatmul.mubr.bf16.gmra.mrb[0].mxu0 %v534
        %v1514 = vpop.f32.mrb[0].mxu0
        %v1515 = vadd.f32 %v453, %v1514
        %v1516 = vpop.f32.mrb[0].mxu0
        %v1517 = vadd.f32 %v457, %v1516
        %v1518 = vpop.f32.mrb[0].mxu0
        %v1519 = vadd.f32 %v453, %v1518
        %v1520 = vpop.f32.mrb[0].mxu0
        %v1521 = vadd.f32 %v457, %v1520
        %1522 = vmatprep.mubr.bf16.mxu0 %v537
        %1523 = vmatmul.mubr.bf16.gmra.mrb[0].mxu0 %v536
        %v1524 = vpop.f32.mrb[0].mxu0
        %v1525 = vadd.f32 %v453, %v1524
        %v1526 = vpop.f32.mrb[0].mxu0
        %v1527 = vadd.f32 %v457, %v1526
        %v1528 = vpop.f32.mrb[0].mxu0
        %v1529 = vadd.f32 %v453, %v1528
        %v1530 = vpop.f32.mrb[0].mxu0
        %v1531 = vadd.f32 %v457, %v1530
        %1532 = vdwg.mxu0
        %1533 = vmatprep.subr.bf16.mxu0 %v945
        %1534 = vmatpush1.bf16.msra.mxu0 %v944
        %1535 = vmatprep.subr.bf16.mxu0 %v953
        %1536 = vmatpush1.bf16.msra.mxu0 %v952
        %1537 = vmatprep.subr.bf16.mxu0 %v961
        %1538 = vmatpush1.bf16.msra.mxu0 %v960
        %1539 = vmatprep.subr.bf16.mxu0 %v969
        %1540 = vmatpush1.bf16.msra.mxu0 %v968
        %1541 = vmatprep.subr.bf16.mxu0 %v977
        %1542 = vmatpush1.bf16.msra.mxu0 %v976
        %1543 = vmatprep.subr.bf16.mxu0 %v985
        %1544 = vmatpush1.bf16.msra.mxu0 %v984
        %1545 = vmatprep.subr.bf16.mxu0 %v993
        %1546 = vmatpush1.bf16.msra.mxu0 %v992
        %1547 = vmatprep.subr.bf16.mxu0 %v1001
        %1548 = vmatpush1.bf16.msra.mxu0 %v1000
        %1549 = vmatprep.subr.bf16.mxu0 %v1009
        %1550 = vmatpush1.bf16.msra.mxu0 %v1008
        %1551 = vmatprep.subr.bf16.mxu0 %v1017
        %1552 = vmatpush1.bf16.msra.mxu0 %v1016
        %1553 = vmatprep.subr.bf16.mxu0 %v1025
        %1554 = vmatpush1.bf16.msra.mxu0 %v1024
        %1555 = vmatprep.subr.bf16.mxu0 %v1033
        %1556 = vmatpush1.bf16.msra.mxu0 %v1032
        %1557 = vmatprep.subr.bf16.mxu0 %v1041
        %1558 = vmatpush1.bf16.msra.mxu0 %v1040
        %1559 = vmatprep.subr.bf16.mxu0 %v1049
        %1560 = vmatpush1.bf16.msra.mxu0 %v1048
        %1561 = vmatprep.subr.bf16.mxu0 %v1057
        %1562 = vmatpush1.bf16.msra.mxu0 %v1056
        %1563 = vmatprep.subr.bf16.mxu0 %v1065
        %1564 = vmatpush1.bf16.msra.mxu0 %v1064
        %1565 = vmatprep.mubr.bf16.mxu0 %v523
        %1566 = vmatmul.mubr.bf16.gmra.mrb[0].mxu0 %v522
        %v1567 = vpop.f32.mrb[0].mxu0
        %v1568 = vadd.f32 %v461, %v1567
        %v1569 = vpop.f32.mrb[0].mxu0
        %v1570 = vadd.f32 %v465, %v1569
        %v1571 = vpop.f32.mrb[0].mxu0
        %v1572 = vadd.f32 %v461, %v1571
        %v1573 = vpop.f32.mrb[0].mxu0
        %v1574 = vadd.f32 %v465, %v1573
        %1575 = vmatprep.mubr.bf16.mxu0 %v525
        %1576 = vmatmul.mubr.bf16.gmra.mrb[0].mxu0 %v524
        %v1577 = vpop.f32.mrb[0].mxu0
        %v1578 = vadd.f32 %v461, %v1577
        %v1579 = vpop.f32.mrb[0].mxu0
        %v1580 = vadd.f32 %v465, %v1579
        %v1581 = vpop.f32.mrb[0].mxu0
        %v1582 = vadd.f32 %v461, %v1581
        %v1583 = vpop.f32.mrb[0].mxu0
        %v1584 = vadd.f32 %v465, %v1583
        %1585 = vmatprep.mubr.bf16.mxu0 %v527
        %1586 = vmatmul.mubr.bf16.gmra.mrb[0].mxu0 %v526
        %v1587 = vpop.f32.mrb[0].mxu0
        %v1588 = vadd.f32 %v461, %v1587
        %v1589 = vpop.f32.mrb[0].mxu0
        %v1590 = vadd.f32 %v465, %v1589
        %v1591 = vpop.f32.mrb[0].mxu0
        %v1592 = vadd.f32 %v461, %v1591
        %v1593 = vpop.f32.mrb[0].mxu0
        %v1594 = vadd.f32 %v465, %v1593
        %1595 = vmatprep.mubr.bf16.mxu0 %v529
        %1596 = vmatmul.mubr.bf16.gmra.mrb[0].mxu0 %v528
        %v1597 = vpop.f32.mrb[0].mxu0
        %v1598 = vadd.f32 %v461, %v1597
        %v1599 = vpop.f32.mrb[0].mxu0
        %v1600 = vadd.f32 %v465, %v1599
        %v1601 = vpop.f32.mrb[0].mxu0
        %v1602 = vadd.f32 %v461, %v1601
        %v1603 = vpop.f32.mrb[0].mxu0
        %v1604 = vadd.f32 %v465, %v1603
        %1605 = vmatprep.mubr.bf16.mxu0 %v531
        %1606 = vmatmul.mubr.bf16.gmra.mrb[0].mxu0 %v530
        %v1607 = vpop.f32.mrb[0].mxu0
        %v1608 = vadd.f32 %v461, %v1607
        %v1609 = vpop.f32.mrb[0].mxu0
        %v1610 = vadd.f32 %v465, %v1609
        %v1611 = vpop.f32.mrb[0].mxu0
        %v1612 = vadd.f32 %v461, %v1611
        %v1613 = vpop.f32.mrb[0].mxu0
        %v1614 = vadd.f32 %v465, %v1613
        %1615 = vmatprep.mubr.bf16.mxu0 %v533
        %1616 = vmatmul.mubr.bf16.gmra.mrb[0].mxu0 %v532
        %v1617 = vpop.f32.mrb[0].mxu0
        %v1618 = vadd.f32 %v461, %v1617
        %v1619 = vpop.f32.mrb[0].mxu0
        %v1620 = vadd.f32 %v465, %v1619
        %v1621 = vpop.f32.mrb[0].mxu0
        %v1622 = vadd.f32 %v461, %v1621
        %v1623 = vpop.f32.mrb[0].mxu0
        %v1624 = vadd.f32 %v465, %v1623
        %1625 = vmatprep.mubr.bf16.mxu0 %v535
        %1626 = vmatmul.mubr.bf16.gmra.mrb[0].mxu0 %v534
        %v1627 = vpop.f32.mrb[0].mxu0
        %v1628 = vadd.f32 %v461, %v1627
        %v1629 = vpop.f32.mrb[0].mxu0
        %v1630 = vadd.f32 %v465, %v1629
        %v1631 = vpop.f32.mrb[0].mxu0
        %v1632 = vadd.f32 %v461, %v1631
        %v1633 = vpop.f32.mrb[0].mxu0
        %v1634 = vadd.f32 %v465, %v1633
        %1635 = vmatprep.mubr.bf16.mxu0 %v537
        %1636 = vmatmul.mubr.bf16.gmra.mrb[0].mxu0 %v536
        %v1637 = vpop.f32.mrb[0].mxu0
        %v1638 = vadd.f32 %v461, %v1637
        %v1639 = vpop.f32.mrb[0].mxu0
        %v1640 = vadd.f32 %v465, %v1639
        %v1641 = vpop.f32.mrb[0].mxu0
        %v1642 = vadd.f32 %v461, %v1641
        %v1643 = vpop.f32.mrb[0].mxu0
        %v1644 = vadd.f32 %v465, %v1643
        %1645 = vdwg.mxu0
        %v1646 = vmul.f32 %v1229, %v1229
        %v1647 = vmul.f32 %v1231, %v1231
        %v1648 = vmul.f32 %v1342, %v1342
        %v1649 = vmul.f32 %v1344, %v1344
        %v1650 = vmul.f32 %v1455, %v1455
        %v1651 = vmul.f32 %v1457, %v1457
        %v1652 = vmul.f32 %v1568, %v1568
        %v1653 = vmul.f32 %v1570, %v1570
        %v1654 = vmul.f32 %v1233, %v1233
        %v1655 = vmul.f32 %v1235, %v1235
        %v1656 = vmul.f32 %v1346, %v1346
        %v1657 = vmul.f32 %v1348, %v1348
        %v1658 = vmul.f32 %v1459, %v1459
        %v1659 = vmul.f32 %v1461, %v1461
        %v1660 = vmul.f32 %v1572, %v1572
        %v1661 = vmul.f32 %v1574, %v1574
        %v1662 = vmul.f32 %v1239, %v1239
        %v1663 = vmul.f32 %v1241, %v1241
        %v1664 = vmul.f32 %v1352, %v1352
        %v1665 = vmul.f32 %v1354, %v1354
        %v1666 = vmul.f32 %v1465, %v1465
        %v1667 = vmul.f32 %v1467, %v1467
        %v1668 = vmul.f32 %v1578, %v1578
        %v1669 = vmul.f32 %v1580, %v1580
        %v1670 = vmul.f32 %v1243, %v1243
        %v1671 = vmul.f32 %v1245, %v1245
        %v1672 = vmul.f32 %v1356, %v1356
        %v1673 = vmul.f32 %v1358, %v1358
        %v1674 = vmul.f32 %v1469, %v1469
        %v1675 = vmul.f32 %v1471, %v1471
        %v1676 = vmul.f32 %v1582, %v1582
        %v1677 = vmul.f32 %v1584, %v1584
        %v1678 = vmul.f32 %v1249, %v1249
        %v1679 = vmul.f32 %v1251, %v1251
        %v1680 = vmul.f32 %v1362, %v1362
        %v1681 = vmul.f32 %v1364, %v1364
        %v1682 = vmul.f32 %v1475, %v1475
        %v1683 = vmul.f32 %v1477, %v1477
        %v1684 = vmul.f32 %v1588, %v1588
        %v1685 = vmul.f32 %v1590, %v1590
        %v1686 = vmul.f32 %v1253, %v1253
        %v1687 = vmul.f32 %v1255, %v1255
        %v1688 = vmul.f32 %v1366, %v1366
        %v1689 = vmul.f32 %v1368, %v1368
        %v1690 = vmul.f32 %v1479, %v1479
        %v1691 = vmul.f32 %v1481, %v1481
        %v1692 = vmul.f32 %v1592, %v1592
        %v1693 = vmul.f32 %v1594, %v1594
        %v1694 = vmul.f32 %v1259, %v1259
        %v1695 = vmul.f32 %v1261, %v1261
        %v1696 = vmul.f32 %v1372, %v1372
        %v1697 = vmul.f32 %v1374, %v1374
        %v1698 = vmul.f32 %v1485, %v1485
        %v1699 = vmul.f32 %v1487, %v1487
        %v1700 = vmul.f32 %v1598, %v1598
        %v1701 = vmul.f32 %v1600, %v1600
        %v1702 = vmul.f32 %v1263, %v1263
        %v1703 = vmul.f32 %v1265, %v1265
        %v1704 = vmul.f32 %v1376, %v1376
        %v1705 = vmul.f32 %v1378, %v1378
        %v1706 = vmul.f32 %v1489, %v1489
        %v1707 = vmul.f32 %v1491, %v1491
        %v1708 = vmul.f32 %v1602, %v1602
        %v1709 = vmul.f32 %v1604, %v1604
        %v1710 = vmul.f32 %v1269, %v1269
        %v1711 = vmul.f32 %v1271, %v1271
        %v1712 = vmul.f32 %v1382, %v1382
        %v1713 = vmul.f32 %v1384, %v1384
        %v1714 = vmul.f32 %v1495, %v1495
        %v1715 = vmul.f32 %v1497, %v1497
        %v1716 = vmul.f32 %v1608, %v1608
        %v1717 = vmul.f32 %v1610, %v1610
        %v1718 = vmul.f32 %v1273, %v1273
        %v1719 = vmul.f32 %v1275, %v1275
        %v1720 = vmul.f32 %v1386, %v1386
        %v1721 = vmul.f32 %v1388, %v1388
        %v1722 = vmul.f32 %v1499, %v1499
        %v1723 = vmul.f32 %v1501, %v1501
        %v1724 = vmul.f32 %v1612, %v1612
        %v1725 = vmul.f32 %v1614, %v1614
        %v1726 = vmul.f32 %v1279, %v1279
        %v1727 = vmul.f32 %v1281, %v1281
        %v1728 = vmul.f32 %v1392, %v1392
        %v1729 = vmul.f32 %v1394, %v1394
        %v1730 = vmul.f32 %v1505, %v1505
        %v1731 = vmul.f32 %v1507, %v1507
        %v1732 = vmul.f32 %v1618, %v1618
        %v1733 = vmul.f32 %v1620, %v1620
        %v1734 = vmul.f32 %v1283, %v1283
        %v1735 = vmul.f32 %v1285, %v1285
        %v1736 = vmul.f32 %v1396, %v1396
        %v1737 = vmul.f32 %v1398, %v1398
        %v1738 = vmul.f32 %v1509, %v1509
        %v1739 = vmul.f32 %v1511, %v1511
        %v1740 = vmul.f32 %v1622, %v1622
        %v1741 = vmul.f32 %v1624, %v1624
        %v1742 = vmul.f32 %v1289, %v1289
        %v1743 = vmul.f32 %v1291, %v1291
        %v1744 = vmul.f32 %v1402, %v1402
        %v1745 = vmul.f32 %v1404, %v1404
        %v1746 = vmul.f32 %v1515, %v1515
        %v1747 = vmul.f32 %v1517, %v1517
        %v1748 = vmul.f32 %v1628, %v1628
        %v1749 = vmul.f32 %v1630, %v1630
        %v1750 = vmul.f32 %v1293, %v1293
        %v1751 = vmul.f32 %v1295, %v1295
        %v1752 = vmul.f32 %v1406, %v1406
        %v1753 = vmul.f32 %v1408, %v1408
        %v1754 = vmul.f32 %v1519, %v1519
        %v1755 = vmul.f32 %v1521, %v1521
        %v1756 = vmul.f32 %v1632, %v1632
        %v1757 = vmul.f32 %v1634, %v1634
        %v1758 = vmul.f32 %v1299, %v1299
        %v1759 = vmul.f32 %v1301, %v1301
        %v1760 = vmul.f32 %v1412, %v1412
        %v1761 = vmul.f32 %v1414, %v1414
        %v1762 = vmul.f32 %v1525, %v1525
        %v1763 = vmul.f32 %v1527, %v1527
        %v1764 = vmul.f32 %v1638, %v1638
        %v1765 = vmul.f32 %v1640, %v1640
        %v1766 = vmul.f32 %v1303, %v1303
        %v1767 = vmul.f32 %v1305, %v1305
        %v1768 = vmul.f32 %v1416, %v1416
        %v1769 = vmul.f32 %v1418, %v1418
        %v1770 = vmul.f32 %v1529, %v1529
        %v1771 = vmul.f32 %v1531, %v1531
        %v1772 = vmul.f32 %v1642, %v1642
        %v1773 = vmul.f32 %v1644, %v1644
        %v1774 = vmul.f32 %v1646, %v1229
        %v1775 = vmul.f32 %v1647, %v1231
        %v1776 = vmul.f32 %v1648, %v1342
        %v1777 = vmul.f32 %v1649, %v1344
        %v1778 = vmul.f32 %v1650, %v1455
        %v1779 = vmul.f32 %v1651, %v1457
        %v1780 = vmul.f32 %v1652, %v1568
        %v1781 = vmul.f32 %v1653, %v1570
        %v1782 = vmul.f32 %v1654, %v1233
        %v1783 = vmul.f32 %v1655, %v1235
        %v1784 = vmul.f32 %v1656, %v1346
        %v1785 = vmul.f32 %v1657, %v1348
        %v1786 = vmul.f32 %v1658, %v1459
        %v1787 = vmul.f32 %v1659, %v1461
        %v1788 = vmul.f32 %v1660, %v1572
        %v1789 = vmul.f32 %v1661, %v1574
        %v1790 = vmul.f32 %v1662, %v1239
        %v1791 = vmul.f32 %v1663, %v1241
        %v1792 = vmul.f32 %v1664, %v1352
        %v1793 = vmul.f32 %v1665, %v1354
        %v1794 = vmul.f32 %v1666, %v1465
        %v1795 = vmul.f32 %v1667, %v1467
        %v1796 = vmul.f32 %v1668, %v1578
        %v1797 = vmul.f32 %v1669, %v1580
        %v1798 = vmul.f32 %v1670, %v1243
        %v1799 = vmul.f32 %v1671, %v1245
        %v1800 = vmul.f32 %v1672, %v1356
        %v1801 = vmul.f32 %v1673, %v1358
        %v1802 = vmul.f32 %v1674, %v1469
        %v1803 = vmul.f32 %v1675, %v1471
        %v1804 = vmul.f32 %v1676, %v1582
        %v1805 = vmul.f32 %v1677, %v1584
        %v1806 = vmul.f32 %v1678, %v1249
        %v1807 = vmul.f32 %v1679, %v1251
        %v1808 = vmul.f32 %v1680, %v1362
        %v1809 = vmul.f32 %v1681, %v1364
        %v1810 = vmul.f32 %v1682, %v1475
        %v1811 = vmul.f32 %v1683, %v1477
        %v1812 = vmul.f32 %v1684, %v1588
        %v1813 = vmul.f32 %v1685, %v1590
        %v1814 = vmul.f32 %v1686, %v1253
        %v1815 = vmul.f32 %v1687, %v1255
        %v1816 = vmul.f32 %v1688, %v1366
        %v1817 = vmul.f32 %v1689, %v1368
        %v1818 = vmul.f32 %v1690, %v1479
        %v1819 = vmul.f32 %v1691, %v1481
        %v1820 = vmul.f32 %v1692, %v1592
        %v1821 = vmul.f32 %v1693, %v1594
        %v1822 = vmul.f32 %v1694, %v1259
        %v1823 = vmul.f32 %v1695, %v1261
        %v1824 = vmul.f32 %v1696, %v1372
        %v1825 = vmul.f32 %v1697, %v1374
        %v1826 = vmul.f32 %v1698, %v1485
        %v1827 = vmul.f32 %v1699, %v1487
        %v1828 = vmul.f32 %v1700, %v1598
        %v1829 = vmul.f32 %v1701, %v1600
        %v1830 = vmul.f32 %v1702, %v1263
        %v1831 = vmul.f32 %v1703, %v1265
        %v1832 = vmul.f32 %v1704, %v1376
        %v1833 = vmul.f32 %v1705, %v1378
        %v1834 = vmul.f32 %v1706, %v1489
        %v1835 = vmul.f32 %v1707, %v1491
        %v1836 = vmul.f32 %v1708, %v1602
        %v1837 = vmul.f32 %v1709, %v1604
        %v1838 = vmul.f32 %v1710, %v1269
        %v1839 = vmul.f32 %v1711, %v1271
        %v1840 = vmul.f32 %v1712, %v1382
        %v1841 = vmul.f32 %v1713, %v1384
        %v1842 = vmul.f32 %v1714, %v1495
        %v1843 = vmul.f32 %v1715, %v1497
        %v1844 = vmul.f32 %v1716, %v1608
        %v1845 = vmul.f32 %v1717, %v1610
        %v1846 = vmul.f32 %v1718, %v1273
        %v1847 = vmul.f32 %v1719, %v1275
        %v1848 = vmul.f32 %v1720, %v1386
        %v1849 = vmul.f32 %v1721, %v1388
        %v1850 = vmul.f32 %v1722, %v1499
        %v1851 = vmul.f32 %v1723, %v1501
        %v1852 = vmul.f32 %v1724, %v1612
        %v1853 = vmul.f32 %v1725, %v1614
        %v1854 = vmul.f32 %v1726, %v1279
        %v1855 = vmul.f32 %v1727, %v1281
        %v1856 = vmul.f32 %v1728, %v1392
        %v1857 = vmul.f32 %v1729, %v1394
        %v1858 = vmul.f32 %v1730, %v1505
        %v1859 = vmul.f32 %v1731, %v1507
        %v1860 = vmul.f32 %v1732, %v1618
        %v1861 = vmul.f32 %v1733, %v1620
        %v1862 = vmul.f32 %v1734, %v1283
        %v1863 = vmul.f32 %v1735, %v1285
        %v1864 = vmul.f32 %v1736, %v1396
        %v1865 = vmul.f32 %v1737, %v1398
        %v1866 = vmul.f32 %v1738, %v1509
        %v1867 = vmul.f32 %v1739, %v1511
        %v1868 = vmul.f32 %v1740, %v1622
        %v1869 = vmul.f32 %v1741, %v1624
        %v1870 = vmul.f32 %v1742, %v1289
        %v1871 = vmul.f32 %v1743, %v1291
        %v1872 = vmul.f32 %v1744, %v1402
        %v1873 = vmul.f32 %v1745, %v1404
        %v1874 = vmul.f32 %v1746, %v1515
        %v1875 = vmul.f32 %v1747, %v1517
        %v1876 = vmul.f32 %v1748, %v1628
        %v1877 = vmul.f32 %v1749, %v1630
        %v1878 = vmul.f32 %v1750, %v1293
        %v1879 = vmul.f32 %v1751, %v1295
        %v1880 = vmul.f32 %v1752, %v1406
        %v1881 = vmul.f32 %v1753, %v1408
        %v1882 = vmul.f32 %v1754, %v1519
        %v1883 = vmul.f32 %v1755, %v1521
        %v1884 = vmul.f32 %v1756, %v1632
        %v1885 = vmul.f32 %v1757, %v1634
        %v1886 = vmul.f32 %v1758, %v1299
        %v1887 = vmul.f32 %v1759, %v1301
        %v1888 = vmul.f32 %v1760, %v1412
        %v1889 = vmul.f32 %v1761, %v1414
        %v1890 = vmul.f32 %v1762, %v1525
        %v1891 = vmul.f32 %v1763, %v1527
        %v1892 = vmul.f32 %v1764, %v1638
        %v1893 = vmul.f32 %v1765, %v1640
        %v1894 = vmul.f32 %v1766, %v1303
        %v1895 = vmul.f32 %v1767, %v1305
        %v1896 = vmul.f32 %v1768, %v1416
        %v1897 = vmul.f32 %v1769, %v1418
        %v1898 = vmul.f32 %v1770, %v1529
        %v1899 = vmul.f32 %v1771, %v1531
        %v1900 = vmul.f32 %v1772, %v1642
        %v1901 = vmul.f32 %v1773, %v1644
        %v1902 = vmul.f32 %v1229, 0.5
        %v1903 = vmul.f32 %v1231, 0.5
        %v1904 = vmul.f32 %v1342, 0.5
        %v1905 = vmul.f32 %v1344, 0.5
        %v1906 = vmul.f32 %v1455, 0.5
        %v1907 = vmul.f32 %v1457, 0.5
        %v1908 = vmul.f32 %v1568, 0.5
        %v1909 = vmul.f32 %v1570, 0.5
        %v1910 = vmul.f32 %v1233, 0.5
        %v1911 = vmul.f32 %v1235, 0.5
        %v1912 = vmul.f32 %v1346, 0.5
        %v1913 = vmul.f32 %v1348, 0.5
        %v1914 = vmul.f32 %v1459, 0.5
        %v1915 = vmul.f32 %v1461, 0.5
        %v1916 = vmul.f32 %v1572, 0.5
        %v1917 = vmul.f32 %v1574, 0.5
        %v1918 = vmul.f32 %v1239, 0.5
        %v1919 = vmul.f32 %v1241, 0.5
        %v1920 = vmul.f32 %v1352, 0.5
        %v1921 = vmul.f32 %v1354, 0.5
        %v1922 = vmul.f32 %v1465, 0.5
        %v1923 = vmul.f32 %v1467, 0.5
        %v1924 = vmul.f32 %v1578, 0.5
        %v1925 = vmul.f32 %v1580, 0.5
        %v1926 = vmul.f32 %v1243, 0.5
        %v1927 = vmul.f32 %v1245, 0.5
        %v1928 = vmul.f32 %v1356, 0.5
        %v1929 = vmul.f32 %v1358, 0.5
        %v1930 = vmul.f32 %v1469, 0.5
        %v1931 = vmul.f32 %v1471, 0.5
        %v1932 = vmul.f32 %v1582, 0.5
        %v1933 = vmul.f32 %v1584, 0.5
        %v1934 = vmul.f32 %v1249, 0.5
        %v1935 = vmul.f32 %v1251, 0.5
        %v1936 = vmul.f32 %v1362, 0.5
        %v1937 = vmul.f32 %v1364, 0.5
        %v1938 = vmul.f32 %v1475, 0.5
        %v1939 = vmul.f32 %v1477, 0.5
        %v1940 = vmul.f32 %v1588, 0.5
        %v1941 = vmul.f32 %v1590, 0.5
        %v1942 = vmul.f32 %v1253, 0.5
        %v1943 = vmul.f32 %v1255, 0.5
        %v1944 = vmul.f32 %v1366, 0.5
        %v1945 = vmul.f32 %v1368, 0.5
        %v1946 = vmul.f32 %v1479, 0.5
        %v1947 = vmul.f32 %v1481, 0.5
        %v1948 = vmul.f32 %v1592, 0.5
        %v1949 = vmul.f32 %v1594, 0.5
        %v1950 = vmul.f32 %v1259, 0.5
        %v1951 = vmul.f32 %v1261, 0.5
        %v1952 = vmul.f32 %v1372, 0.5
        %v1953 = vmul.f32 %v1374, 0.5
        %v1954 = vmul.f32 %v1485, 0.5
        %v1955 = vmul.f32 %v1487, 0.5
        %v1956 = vmul.f32 %v1598, 0.5
        %v1957 = vmul.f32 %v1600, 0.5
        %v1958 = vmul.f32 %v1263, 0.5
        %v1959 = vmul.f32 %v1265, 0.5
        %v1960 = vmul.f32 %v1376, 0.5
        %v1961 = vmul.f32 %v1378, 0.5
        %v1962 = vmul.f32 %v1489, 0.5
        %v1963 = vmul.f32 %v1491, 0.5
        %v1964 = vmul.f32 %v1602, 0.5
        %v1965 = vmul.f32 %v1604, 0.5
        %v1966 = vmul.f32 %v1269, 0.5
        %v1967 = vmul.f32 %v1271, 0.5
        %v1968 = vmul.f32 %v1382, 0.5
        %v1969 = vmul.f32 %v1384, 0.5
        %v1970 = vmul.f32 %v1495, 0.5
        %v1971 = vmul.f32 %v1497, 0.5
        %v1972 = vmul.f32 %v1608, 0.5
        %v1973 = vmul.f32 %v1610, 0.5
        %v1974 = vmul.f32 %v1273, 0.5
        %v1975 = vmul.f32 %v1275, 0.5
        %v1976 = vmul.f32 %v1386, 0.5
        %v1977 = vmul.f32 %v1388, 0.5
        %v1978 = vmul.f32 %v1499, 0.5
        %v1979 = vmul.f32 %v1501, 0.5
        %v1980 = vmul.f32 %v1612, 0.5
        %v1981 = vmul.f32 %v1614, 0.5
        %v1982 = vmul.f32 %v1279, 0.5
        %v1983 = vmul.f32 %v1281, 0.5
        %v1984 = vmul.f32 %v1392, 0.5
        %v1985 = vmul.f32 %v1394, 0.5
        %v1986 = vmul.f32 %v1505, 0.5
        %v1987 = vmul.f32 %v1507, 0.5
        %v1988 = vmul.f32 %v1618, 0.5
        %v1989 = vmul.f32 %v1620, 0.5
        %v1990 = vmul.f32 %v1283, 0.5
        %v1991 = vmul.f32 %v1285, 0.5
        %v1992 = vmul.f32 %v1396, 0.5
        %v1993 = vmul.f32 %v1398, 0.5
        %v1994 = vmul.f32 %v1509, 0.5
        %v1995 = vmul.f32 %v1511, 0.5
        %v1996 = vmul.f32 %v1622, 0.5
        %v1997 = vmul.f32 %v1624, 0.5
        %v1998 = vmul.f32 %v1289, 0.5
        %v1999 = vmul.f32 %v1291, 0.5
        %v2000 = vmul.f32 %v1402, 0.5
        %v2001 = vmul.f32 %v1404, 0.5
        %v2002 = vmul.f32 %v1515, 0.5
        %v2003 = vmul.f32 %v1517, 0.5
        %v2004 = vmul.f32 %v1628, 0.5
        %v2005 = vmul.f32 %v1630, 0.5
        %v2006 = vmul.f32 %v1293, 0.5
        %v2007 = vmul.f32 %v1295, 0.5
        %v2008 = vmul.f32 %v1406, 0.5
        %v2009 = vmul.f32 %v1408, 0.5
        %v2010 = vmul.f32 %v1519, 0.5
        %v2011 = vmul.f32 %v1521, 0.5
        %v2012 = vmul.f32 %v1632, 0.5
        %v2013 = vmul.f32 %v1634, 0.5
        %v2014 = vmul.f32 %v1299, 0.5
        %v2015 = vmul.f32 %v1301, 0.5
        %v2016 = vmul.f32 %v1412, 0.5
        %v2017 = vmul.f32 %v1414, 0.5
        %v2018 = vmul.f32 %v1525, 0.5
        %v2019 = vmul.f32 %v1527, 0.5
        %v2020 = vmul.f32 %v1638, 0.5
        %v2021 = vmul.f32 %v1640, 0.5
        %v2022 = vmul.f32 %v1303, 0.5
        %v2023 = vmul.f32 %v1305, 0.5
        %v2024 = vmul.f32 %v1416, 0.5
        %v2025 = vmul.f32 %v1418, 0.5
        %v2026 = vmul.f32 %v1529, 0.5
        %v2027 = vmul.f32 %v1531, 0.5
        %v2028 = vmul.f32 %v1642, 0.5
        %v2029 = vmul.f32 %v1644, 0.5
        %v2030 = vmul.f32 %v1774, 0.044715
        %v2031 = vmul.f32 %v1775, 0.044715
        %v2032 = vmul.f32 %v1776, 0.044715
        %v2033 = vmul.f32 %v1777, 0.044715
        %v2034 = vmul.f32 %v1778, 0.044715
        %v2035 = vmul.f32 %v1779, 0.044715
        %v2036 = vmul.f32 %v1780, 0.044715
        %v2037 = vmul.f32 %v1781, 0.044715
        %v2038 = vmul.f32 %v1782, 0.044715
        %v2039 = vmul.f32 %v1783, 0.044715
        %v2040 = vmul.f32 %v1784, 0.044715
        %v2041 = vmul.f32 %v1785, 0.044715
        %v2042 = vmul.f32 %v1786, 0.044715
        %v2043 = vmul.f32 %v1787, 0.044715
        %v2044 = vmul.f32 %v1788, 0.044715
        %v2045 = vmul.f32 %v1789, 0.044715
        %v2046 = vmul.f32 %v1790, 0.044715
        %v2047 = vmul.f32 %v1791, 0.044715
        %v2048 = vmul.f32 %v1792, 0.044715
        %v2049 = vmul.f32 %v1793, 0.044715
        %v2050 = vmul.f32 %v1794, 0.044715
        %v2051 = vmul.f32 %v1795, 0.044715
        %v2052 = vmul.f32 %v1796, 0.044715
        %v2053 = vmul.f32 %v1797, 0.044715
        %v2054 = vmul.f32 %v1798, 0.044715
        %v2055 = vmul.f32 %v1799, 0.044715
        %v2056 = vmul.f32 %v1800, 0.044715
        %v2057 = vmul.f32 %v1801, 0.044715
        %v2058 = vmul.f32 %v1802, 0.044715
        %v2059 = vmul.f32 %v1803, 0.044715
        %v2060 = vmul.f32 %v1804, 0.044715
        %v2061 = vmul.f32 %v1805, 0.044715
        %v2062 = vmul.f32 %v1806, 0.044715
        %v2063 = vmul.f32 %v1807, 0.044715
        %v2064 = vmul.f32 %v1808, 0.044715
        %v2065 = vmul.f32 %v1809, 0.044715
        %v2066 = vmul.f32 %v1810, 0.044715
        %v2067 = vmul.f32 %v1811, 0.044715
        %v2068 = vmul.f32 %v1812, 0.044715
        %v2069 = vmul.f32 %v1813, 0.044715
        %v2070 = vmul.f32 %v1814, 0.044715
        %v2071 = vmul.f32 %v1815, 0.044715
        %v2072 = vmul.f32 %v1816, 0.044715
        %v2073 = vmul.f32 %v1817, 0.044715
        %v2074 = vmul.f32 %v1818, 0.044715
        %v2075 = vmul.f32 %v1819, 0.044715
        %v2076 = vmul.f32 %v1820, 0.044715
        %v2077 = vmul.f32 %v1821, 0.044715
        %v2078 = vmul.f32 %v1822, 0.044715
        %v2079 = vmul.f32 %v1823, 0.044715
        %v2080 = vmul.f32 %v1824, 0.044715
        %v2081 = vmul.f32 %v1825, 0.044715
        %v2082 = vmul.f32 %v1826, 0.044715
        %v2083 = vmul.f32 %v1827, 0.044715
        %v2084 = vmul.f32 %v1828, 0.044715
        %v2085 = vmul.f32 %v1829, 0.044715
        %v2086 = vmul.f32 %v1830, 0.044715
        %v2087 = vmul.f32 %v1831, 0.044715
        %v2088 = vmul.f32 %v1832, 0.044715
        %v2089 = vmul.f32 %v1833, 0.044715
        %v2090 = vmul.f32 %v1834, 0.044715
        %v2091 = vmul.f32 %v1835, 0.044715
        %v2092 = vmul.f32 %v1836, 0.044715
        %v2093 = vmul.f32 %v1837, 0.044715
        %v2094 = vmul.f32 %v1838, 0.044715
        %v2095 = vmul.f32 %v1839, 0.044715
        %v2096 = vmul.f32 %v1840, 0.044715
        %v2097 = vmul.f32 %v1841, 0.044715
        %v2098 = vmul.f32 %v1842, 0.044715
        %v2099 = vmul.f32 %v1843, 0.044715
        %v2100 = vmul.f32 %v1844, 0.044715
        %v2101 = vmul.f32 %v1845, 0.044715
        %v2102 = vmul.f32 %v1846, 0.044715
        %v2103 = vmul.f32 %v1847, 0.044715
        %v2104 = vmul.f32 %v1848, 0.044715
        %v2105 = vmul.f32 %v1849, 0.044715
        %v2106 = vmul.f32 %v1850, 0.044715
        %v2107 = vmul.f32 %v1851, 0.044715
        %v2108 = vmul.f32 %v1852, 0.044715
        %v2109 = vmul.f32 %v1853, 0.044715
        %v2110 = vmul.f32 %v1854, 0.044715
        %v2111 = vmul.f32 %v1855, 0.044715
        %v2112 = vmul.f32 %v1856, 0.044715
        %v2113 = vmul.f32 %v1857, 0.044715
        %v2114 = vmul.f32 %v1858, 0.044715
        %v2115 = vmul.f32 %v1859, 0.044715
        %v2116 = vmul.f32 %v1860, 0.044715
        %v2117 = vmul.f32 %v1861, 0.044715
        %v2118 = vmul.f32 %v1862, 0.044715
        %v2119 = vmul.f32 %v1863, 0.044715
        %v2120 = vmul.f32 %v1864, 0.044715
        %v2121 = vmul.f32 %v1865, 0.044715
        %v2122 = vmul.f32 %v1866, 0.044715
        %v2123 = vmul.f32 %v1867, 0.044715
        %v2124 = vmul.f32 %v1868, 0.044715
        %v2125 = vmul.f32 %v1869, 0.044715
        %v2126 = vmul.f32 %v1870, 0.044715
        %v2127 = vmul.f32 %v1871, 0.044715
        %v2128 = vmul.f32 %v1872, 0.044715
        %v2129 = vmul.f32 %v1873, 0.044715
        %v2130 = vmul.f32 %v1874, 0.044715
        %v2131 = vmul.f32 %v1875, 0.044715
        %v2132 = vmul.f32 %v1876, 0.044715
        %v2133 = vmul.f32 %v1877, 0.044715
        %v2134 = vmul.f32 %v1878, 0.044715
        %v2135 = vmul.f32 %v1879, 0.044715
        %v2136 = vmul.f32 %v1880, 0.044715
        %v2137 = vmul.f32 %v1881, 0.044715
        %v2138 = vmul.f32 %v1882, 0.044715
        %v2139 = vmul.f32 %v1883, 0.044715
        %v2140 = vmul.f32 %v1884, 0.044715
        %v2141 = vmul.f32 %v1885, 0.044715
        %v2142 = vmul.f32 %v1886, 0.044715
        %v2143 = vmul.f32 %v1887, 0.044715
        %v2144 = vmul.f32 %v1888, 0.044715
        %v2145 = vmul.f32 %v1889, 0.044715
        %v2146 = vmul.f32 %v1890, 0.044715
        %v2147 = vmul.f32 %v1891, 0.044715
        %v2148 = vmul.f32 %v1892, 0.044715
        %v2149 = vmul.f32 %v1893, 0.044715
        %v2150 = vmul.f32 %v1894, 0.044715
        %v2151 = vmul.f32 %v1895, 0.044715
        %v2152 = vmul.f32 %v1896, 0.044715
        %v2153 = vmul.f32 %v1897, 0.044715
        %v2154 = vmul.f32 %v1898, 0.044715
        %v2155 = vmul.f32 %v1899, 0.044715
        %v2156 = vmul.f32 %v1900, 0.044715
        %v2157 = vmul.f32 %v1901, 0.044715
        %v2158 = vadd.f32 %v1229, %v2030
        %v2159 = vadd.f32 %v1231, %v2031
        %v2160 = vadd.f32 %v1342, %v2032
        %v2161 = vadd.f32 %v1344, %v2033
        %v2162 = vadd.f32 %v1455, %v2034
        %v2163 = vadd.f32 %v1457, %v2035
        %v2164 = vadd.f32 %v1568, %v2036
        %v2165 = vadd.f32 %v1570, %v2037
        %v2166 = vadd.f32 %v1233, %v2038
        %v2167 = vadd.f32 %v1235, %v2039
        %v2168 = vadd.f32 %v1346, %v2040
        %v2169 = vadd.f32 %v1348, %v2041
        %v2170 = vadd.f32 %v1459, %v2042
        %v2171 = vadd.f32 %v1461, %v2043
        %v2172 = vadd.f32 %v1572, %v2044
        %v2173 = vadd.f32 %v1574, %v2045
        %v2174 = vadd.f32 %v1239, %v2046
        %v2175 = vadd.f32 %v1241, %v2047
        %v2176 = vadd.f32 %v1352, %v2048
        %v2177 = vadd.f32 %v1354, %v2049
        %v2178 = vadd.f32 %v1465, %v2050
        %v2179 = vadd.f32 %v1467, %v2051
        %v2180 = vadd.f32 %v1578, %v2052
        %v2181 = vadd.f32 %v1580, %v2053
        %v2182 = vadd.f32 %v1243, %v2054
        %v2183 = vadd.f32 %v1245, %v2055
        %v2184 = vadd.f32 %v1356, %v2056
        %v2185 = vadd.f32 %v1358, %v2057
        %v2186 = vadd.f32 %v1469, %v2058
        %v2187 = vadd.f32 %v1471, %v2059
        %v2188 = vadd.f32 %v1582, %v2060
        %v2189 = vadd.f32 %v1584, %v2061
        %v2190 = vadd.f32 %v1249, %v2062
        %v2191 = vadd.f32 %v1251, %v2063
        %v2192 = vadd.f32 %v1362, %v2064
        %v2193 = vadd.f32 %v1364, %v2065
        %v2194 = vadd.f32 %v1475, %v2066
        %v2195 = vadd.f32 %v1477, %v2067
        %v2196 = vadd.f32 %v1588, %v2068
        %v2197 = vadd.f32 %v1590, %v2069
        %v2198 = vadd.f32 %v1253, %v2070
        %v2199 = vadd.f32 %v1255, %v2071
        %v2200 = vadd.f32 %v1366, %v2072
        %v2201 = vadd.f32 %v1368, %v2073
        %v2202 = vadd.f32 %v1479, %v2074
        %v2203 = vadd.f32 %v1481, %v2075
        %v2204 = vadd.f32 %v1592, %v2076
        %v2205 = vadd.f32 %v1594, %v2077
        %v2206 = vadd.f32 %v1259, %v2078
        %v2207 = vadd.f32 %v1261, %v2079
        %v2208 = vadd.f32 %v1372, %v2080
        %v2209 = vadd.f32 %v1374, %v2081
        %v2210 = vadd.f32 %v1485, %v2082
        %v2211 = vadd.f32 %v1487, %v2083
        %v2212 = vadd.f32 %v1598, %v2084
        %v2213 = vadd.f32 %v1600, %v2085
        %v2214 = vadd.f32 %v1263, %v2086
        %v2215 = vadd.f32 %v1265, %v2087
        %v2216 = vadd.f32 %v1376, %v2088
        %v2217 = vadd.f32 %v1378, %v2089
        %v2218 = vadd.f32 %v1489, %v2090
        %v2219 = vadd.f32 %v1491, %v2091
        %v2220 = vadd.f32 %v1602, %v2092
        %v2221 = vadd.f32 %v1604, %v2093
        %v2222 = vadd.f32 %v1269, %v2094
        %v2223 = vadd.f32 %v1271, %v2095
        %v2224 = vadd.f32 %v1382, %v2096
        %v2225 = vadd.f32 %v1384, %v2097
        %v2226 = vadd.f32 %v1495, %v2098
        %v2227 = vadd.f32 %v1497, %v2099
        %v2228 = vadd.f32 %v1608, %v2100
        %v2229 = vadd.f32 %v1610, %v2101
        %v2230 = vadd.f32 %v1273, %v2102
        %v2231 = vadd.f32 %v1275, %v2103
        %v2232 = vadd.f32 %v1386, %v2104
        %v2233 = vadd.f32 %v1388, %v2105
        %v2234 = vadd.f32 %v1499, %v2106
        %v2235 = vadd.f32 %v1501, %v2107
        %v2236 = vadd.f32 %v1612, %v2108
        %v2237 = vadd.f32 %v1614, %v2109
        %v2238 = vadd.f32 %v1279, %v2110
        %v2239 = vadd.f32 %v1281, %v2111
        %v2240 = vadd.f32 %v1392, %v2112
        %v2241 = vadd.f32 %v1394, %v2113
        %v2242 = vadd.f32 %v1505, %v2114
        %v2243 = vadd.f32 %v1507, %v2115
        %v2244 = vadd.f32 %v1618, %v2116
        %v2245 = vadd.f32 %v1620, %v2117
        %v2246 = vadd.f32 %v1283, %v2118
        %v2247 = vadd.f32 %v1285, %v2119
        %v2248 = vadd.f32 %v1396, %v2120
        %v2249 = vadd.f32 %v1398, %v2121
        %v2250 = vadd.f32 %v1509, %v2122
        %v2251 = vadd.f32 %v1511, %v2123
        %v2252 = vadd.f32 %v1622, %v2124
        %v2253 = vadd.f32 %v1624, %v2125
        %v2254 = vadd.f32 %v1289, %v2126
        %v2255 = vadd.f32 %v1291, %v2127
        %v2256 = vadd.f32 %v1402, %v2128
        %v2257 = vadd.f32 %v1404, %v2129
        %v2258 = vadd.f32 %v1515, %v2130
        %v2259 = vadd.f32 %v1517, %v2131
        %v2260 = vadd.f32 %v1628, %v2132
        %v2261 = vadd.f32 %v1630, %v2133
        %v2262 = vadd.f32 %v1293, %v2134
        %v2263 = vadd.f32 %v1295, %v2135
        %v2264 = vadd.f32 %v1406, %v2136
        %v2265 = vadd.f32 %v1408, %v2137
        %v2266 = vadd.f32 %v1519, %v2138
        %v2267 = vadd.f32 %v1521, %v2139
        %v2268 = vadd.f32 %v1632, %v2140
        %v2269 = vadd.f32 %v1634, %v2141
        %v2270 = vadd.f32 %v1299, %v2142
        %v2271 = vadd.f32 %v1301, %v2143
        %v2272 = vadd.f32 %v1412, %v2144
        %v2273 = vadd.f32 %v1414, %v2145
        %v2274 = vadd.f32 %v1525, %v2146
        %v2275 = vadd.f32 %v1527, %v2147
        %v2276 = vadd.f32 %v1638, %v2148
        %v2277 = vadd.f32 %v1640, %v2149
        %v2278 = vadd.f32 %v1303, %v2150
        %v2279 = vadd.f32 %v1305, %v2151
        %v2280 = vadd.f32 %v1416, %v2152
        %v2281 = vadd.f32 %v1418, %v2153
        %v2282 = vadd.f32 %v1529, %v2154
        %v2283 = vadd.f32 %v1531, %v2155
        %v2284 = vadd.f32 %v1642, %v2156
        %v2285 = vadd.f32 %v1644, %v2157
        %v2286 = vmul.f32 %v2158, 0.7978846
        %v2287 = vmul.f32 %v2159, 0.7978846
        %v2288 = vmul.f32 %v2160, 0.7978846
        %v2289 = vmul.f32 %v2161, 0.7978846
        %v2290 = vmul.f32 %v2162, 0.7978846
        %v2291 = vmul.f32 %v2163, 0.7978846
        %v2292 = vmul.f32 %v2164, 0.7978846
        %v2293 = vmul.f32 %v2165, 0.7978846
        %v2294 = vmul.f32 %v2166, 0.7978846
        %v2295 = vmul.f32 %v2167, 0.7978846
        %v2296 = vmul.f32 %v2168, 0.7978846
        %v2297 = vmul.f32 %v2169, 0.7978846
        %v2298 = vmul.f32 %v2170, 0.7978846
        %v2299 = vmul.f32 %v2171, 0.7978846
        %v2300 = vmul.f32 %v2172, 0.7978846
        %v2301 = vmul.f32 %v2173, 0.7978846
        %v2302 = vmul.f32 %v2174, 0.7978846
        %v2303 = vmul.f32 %v2175, 0.7978846
        %v2304 = vmul.f32 %v2176, 0.7978846
        %v2305 = vmul.f32 %v2177, 0.7978846
        %v2306 = vmul.f32 %v2178, 0.7978846
        %v2307 = vmul.f32 %v2179, 0.7978846
        %v2308 = vmul.f32 %v2180, 0.7978846
        %v2309 = vmul.f32 %v2181, 0.7978846
        %v2310 = vmul.f32 %v2182, 0.7978846
        %v2311 = vmul.f32 %v2183, 0.7978846
        %v2312 = vmul.f32 %v2184, 0.7978846
        %v2313 = vmul.f32 %v2185, 0.7978846
        %v2314 = vmul.f32 %v2186, 0.7978846
        %v2315 = vmul.f32 %v2187, 0.7978846
        %v2316 = vmul.f32 %v2188, 0.7978846
        %v2317 = vmul.f32 %v2189, 0.7978846
        %v2318 = vmul.f32 %v2190, 0.7978846
        %v2319 = vmul.f32 %v2191, 0.7978846
        %v2320 = vmul.f32 %v2192, 0.7978846
        %v2321 = vmul.f32 %v2193, 0.7978846
        %v2322 = vmul.f32 %v2194, 0.7978846
        %v2323 = vmul.f32 %v2195, 0.7978846
        %v2324 = vmul.f32 %v2196, 0.7978846
        %v2325 = vmul.f32 %v2197, 0.7978846
        %v2326 = vmul.f32 %v2198, 0.7978846
        %v2327 = vmul.f32 %v2199, 0.7978846
        %v2328 = vmul.f32 %v2200, 0.7978846
        %v2329 = vmul.f32 %v2201, 0.7978846
        %v2330 = vmul.f32 %v2202, 0.7978846
        %v2331 = vmul.f32 %v2203, 0.7978846
        %v2332 = vmul.f32 %v2204, 0.7978846
        %v2333 = vmul.f32 %v2205, 0.7978846
        %v2334 = vmul.f32 %v2206, 0.7978846
        %v2335 = vmul.f32 %v2207, 0.7978846
        %v2336 = vmul.f32 %v2208, 0.7978846
        %v2337 = vmul.f32 %v2209, 0.7978846
        %v2338 = vmul.f32 %v2210, 0.7978846
        %v2339 = vmul.f32 %v2211, 0.7978846
        %v2340 = vmul.f32 %v2212, 0.7978846
        %v2341 = vmul.f32 %v2213, 0.7978846
        %v2342 = vmul.f32 %v2214, 0.7978846
        %v2343 = vmul.f32 %v2215, 0.7978846
        %v2344 = vmul.f32 %v2216, 0.7978846
        %v2345 = vmul.f32 %v2217, 0.7978846
        %v2346 = vmul.f32 %v2218, 0.7978846
        %v2347 = vmul.f32 %v2219, 0.7978846
        %v2348 = vmul.f32 %v2220, 0.7978846
        %v2349 = vmul.f32 %v2221, 0.7978846
        %v2350 = vmul.f32 %v2222, 0.7978846
        %v2351 = vmul.f32 %v2223, 0.7978846
        %v2352 = vmul.f32 %v2224, 0.7978846
        %v2353 = vmul.f32 %v2225, 0.7978846
        %v2354 = vmul.f32 %v2226, 0.7978846
        %v2355 = vmul.f32 %v2227, 0.7978846
        %v2356 = vmul.f32 %v2228, 0.7978846
        %v2357 = vmul.f32 %v2229, 0.7978846
        %v2358 = vmul.f32 %v2230, 0.7978846
        %v2359 = vmul.f32 %v2231, 0.7978846
        %v2360 = vmul.f32 %v2232, 0.7978846
        %v2361 = vmul.f32 %v2233, 0.7978846
        %v2362 = vmul.f32 %v2234, 0.7978846
        %v2363 = vmul.f32 %v2235, 0.7978846
        %v2364 = vmul.f32 %v2236, 0.7978846
        %v2365 = vmul.f32 %v2237, 0.7978846
        %v2366 = vmul.f32 %v2238, 0.7978846
        %v2367 = vmul.f32 %v2239, 0.7978846
        %v2368 = vmul.f32 %v2240, 0.7978846
        %v2369 = vmul.f32 %v2241, 0.7978846
        %v2370 = vmul.f32 %v2242, 0.7978846
        %v2371 = vmul.f32 %v2243, 0.7978846
        %v2372 = vmul.f32 %v2244, 0.7978846
        %v2373 = vmul.f32 %v2245, 0.7978846
        %v2374 = vmul.f32 %v2246, 0.7978846
        %v2375 = vmul.f32 %v2247, 0.7978846
        %v2376 = vmul.f32 %v2248, 0.7978846
        %v2377 = vmul.f32 %v2249, 0.7978846
        %v2378 = vmul.f32 %v2250, 0.7978846
        %v2379 = vmul.f32 %v2251, 0.7978846
        %v2380 = vmul.f32 %v2252, 0.7978846
        %v2381 = vmul.f32 %v2253, 0.7978846
        %v2382 = vmul.f32 %v2254, 0.7978846
        %v2383 = vmul.f32 %v2255, 0.7978846
        %v2384 = vmul.f32 %v2256, 0.7978846
        %v2385 = vmul.f32 %v2257, 0.7978846
        %v2386 = vmul.f32 %v2258, 0.7978846
        %v2387 = vmul.f32 %v2259, 0.7978846
        %v2388 = vmul.f32 %v2260, 0.7978846
        %v2389 = vmul.f32 %v2261, 0.7978846
        %v2390 = vmul.f32 %v2262, 0.7978846
        %v2391 = vmul.f32 %v2263, 0.7978846
        %v2392 = vmul.f32 %v2264, 0.7978846
        %v2393 = vmul.f32 %v2265, 0.7978846
        %v2394 = vmul.f32 %v2266, 0.7978846
        %v2395 = vmul.f32 %v2267, 0.7978846
        %v2396 = vmul.f32 %v2268, 0.7978846
        %v2397 = vmul.f32 %v2269, 0.7978846
        %v2398 = vmul.f32 %v2270, 0.7978846
        %v2399 = vmul.f32 %v2271, 0.7978846
        %v2400 = vmul.f32 %v2272, 0.7978846
        %v2401 = vmul.f32 %v2273, 0.7978846
        %v2402 = vmul.f32 %v2274, 0.7978846
        %v2403 = vmul.f32 %v2275, 0.7978846
        %v2404 = vmul.f32 %v2276, 0.7978846
        %v2405 = vmul.f32 %v2277, 0.7978846
        %v2406 = vmul.f32 %v2278, 0.7978846
        %v2407 = vmul.f32 %v2279, 0.7978846
        %v2408 = vmul.f32 %v2280, 0.7978846
        %v2409 = vmul.f32 %v2281, 0.7978846
        %v2410 = vmul.f32 %v2282, 0.7978846
        %v2411 = vmul.f32 %v2283, 0.7978846
        %v2412 = vmul.f32 %v2284, 0.7978846
        %v2413 = vmul.f32 %v2285, 0.7978846
        %v2414 = vtanh.pop %v2286
        %v2415 = vtanh.pop %v2287
        %v2416 = vtanh.pop %v2288
        %v2417 = vtanh.pop %v2289
        %v2418 = vtanh.pop %v2290
        %v2419 = vtanh.pop %v2291
        %v2420 = vtanh.pop %v2292
        %v2421 = vtanh.pop %v2293
        %v2422 = vtanh.pop %v2294
        %v2423 = vtanh.pop %v2295
        %v2424 = vtanh.pop %v2296
        %v2425 = vtanh.pop %v2297
        %v2426 = vtanh.pop %v2298
        %v2427 = vtanh.pop %v2299
        %v2428 = vtanh.pop %v2300
        %v2429 = vtanh.pop %v2301
        %v2430 = vtanh.pop %v2302
        %v2431 = vtanh.pop %v2303
        %v2432 = vtanh.pop %v2304
        %v2433 = vtanh.pop %v2305
        %v2434 = vtanh.pop %v2306
        %v2435 = vtanh.pop %v2307
        %v2436 = vtanh.pop %v2308
        %v2437 = vtanh.pop %v2309
        %v2438 = vtanh.pop %v2310
        %v2439 = vtanh.pop %v2311
        %v2440 = vtanh.pop %v2312
        %v2441 = vtanh.pop %v2313
        %v2442 = vtanh.pop %v2314
        %v2443 = vtanh.pop %v2315
        %v2444 = vtanh.pop %v2316
        %v2445 = vtanh.pop %v2317
        %v2446 = vtanh.pop %v2318
        %v2447 = vtanh.pop %v2319
        %v2448 = vtanh.pop %v2320
        %v2449 = vtanh.pop %v2321
        %v2450 = vtanh.pop %v2322
        %v2451 = vtanh.pop %v2323
        %v2452 = vtanh.pop %v2324
        %v2453 = vtanh.pop %v2325
        %v2454 = vtanh.pop %v2326
        %v2455 = vtanh.pop %v2327
        %v2456 = vtanh.pop %v2328
        %v2457 = vtanh.pop %v2329
        %v2458 = vtanh.pop %v2330
        %v2459 = vtanh.pop %v2331
        %v2460 = vtanh.pop %v2332
        %v2461 = vtanh.pop %v2333
        %v2462 = vtanh.pop %v2334
        %v2463 = vtanh.pop %v2335
        %v2464 = vtanh.pop %v2336
        %v2465 = vtanh.pop %v2337
        %v2466 = vtanh.pop %v2338
        %v2467 = vtanh.pop %v2339
        %v2468 = vtanh.pop %v2340
        %v2469 = vtanh.pop %v2341
        %v2470 = vtanh.pop %v2342
        %v2471 = vtanh.pop %v2343
        %v2472 = vtanh.pop %v2344
        %v2473 = vtanh.pop %v2345
        %v2474 = vtanh.pop %v2346
        %v2475 = vtanh.pop %v2347
        %v2476 = vtanh.pop %v2348
        %v2477 = vtanh.pop %v2349
        %v2478 = vtanh.pop %v2350
        %v2479 = vtanh.pop %v2351
        %v2480 = vtanh.pop %v2352
        %v2481 = vtanh.pop %v2353
        %v2482 = vtanh.pop %v2354
        %v2483 = vtanh.pop %v2355
        %v2484 = vtanh.pop %v2356
        %v2485 = vtanh.pop %v2357
        %v2486 = vtanh.pop %v2358
        %v2487 = vtanh.pop %v2359
        %v2488 = vtanh.pop %v2360
        %v2489 = vtanh.pop %v2361
        %v2490 = vtanh.pop %v2362
        %v2491 = vtanh.pop %v2363
        %v2492 = vtanh.pop %v2364
        %v2493 = vtanh.pop %v2365
        %v2494 = vtanh.pop %v2366
        %v2495 = vtanh.pop %v2367
        %v2496 = vtanh.pop %v2368
        %v2497 = vtanh.pop %v2369
        %v2498 = vtanh.pop %v2370
        %v2499 = vtanh.pop %v2371
        %v2500 = vtanh.pop %v2372
        %v2501 = vtanh.pop %v2373
        %v2502 = vtanh.pop %v2374
        %v2503 = vtanh.pop %v2375
        %v2504 = vtanh.pop %v2376
        %v2505 = vtanh.pop %v2377
        %v2506 = vtanh.pop %v2378
        %v2507 = vtanh.pop %v2379
        %v2508 = vtanh.pop %v2380
        %v2509 = vtanh.pop %v2381
        %v2510 = vtanh.pop %v2382
        %v2511 = vtanh.pop %v2383
        %v2512 = vtanh.pop %v2384
        %v2513 = vtanh.pop %v2385
        %v2514 = vtanh.pop %v2386
        %v2515 = vtanh.pop %v2387
        %v2516 = vtanh.pop %v2388
        %v2517 = vtanh.pop %v2389
        %v2518 = vtanh.pop %v2390
        %v2519 = vtanh.pop %v2391
        %v2520 = vtanh.pop %v2392
        %v2521 = vtanh.pop %v2393
        %v2522 = vtanh.pop %v2394
        %v2523 = vtanh.pop %v2395
        %v2524 = vtanh.pop %v2396
        %v2525 = vtanh.pop %v2397
        %v2526 = vtanh.pop %v2398
        %v2527 = vtanh.pop %v2399
        %v2528 = vtanh.pop %v2400
        %v2529 = vtanh.pop %v2401
        %v2530 = vtanh.pop %v2402
        %v2531 = vtanh.pop %v2403
        %v2532 = vtanh.pop %v2404
        %v2533 = vtanh.pop %v2405
        %v2534 = vtanh.pop %v2406
        %v2535 = vtanh.pop %v2407
        %v2536 = vtanh.pop %v2408
        %v2537 = vtanh.pop %v2409
        %v2538 = vtanh.pop %v2410
        %v2539 = vtanh.pop %v2411
        %v2540 = vtanh.pop %v2412
        %v2541 = vtanh.pop %v2413
        %v2542 = vadd.f32 %v2414, 1.0
        %v2543 = vadd.f32 %v2415, 1.0
        %v2544 = vadd.f32 %v2416, 1.0
        %v2545 = vadd.f32 %v2417, 1.0
        %v2546 = vadd.f32 %v2418, 1.0
        %v2547 = vadd.f32 %v2419, 1.0
        %v2548 = vadd.f32 %v2420, 1.0
        %v2549 = vadd.f32 %v2421, 1.0
        %v2550 = vadd.f32 %v2422, 1.0
        %v2551 = vadd.f32 %v2423, 1.0
        %v2552 = vadd.f32 %v2424, 1.0
        %v2553 = vadd.f32 %v2425, 1.0
        %v2554 = vadd.f32 %v2426, 1.0
        %v2555 = vadd.f32 %v2427, 1.0
        %v2556 = vadd.f32 %v2428, 1.0
        %v2557 = vadd.f32 %v2429, 1.0
        %v2558 = vadd.f32 %v2430, 1.0
        %v2559 = vadd.f32 %v2431, 1.0
        %v2560 = vadd.f32 %v2432, 1.0
        %v2561 = vadd.f32 %v2433, 1.0
        %v2562 = vadd.f32 %v2434, 1.0
        %v2563 = vadd.f32 %v2435, 1.0
        %v2564 = vadd.f32 %v2436, 1.0
        %v2565 = vadd.f32 %v2437, 1.0
        %v2566 = vadd.f32 %v2438, 1.0
        %v2567 = vadd.f32 %v2439, 1.0
        %v2568 = vadd.f32 %v2440, 1.0
        %v2569 = vadd.f32 %v2441, 1.0
        %v2570 = vadd.f32 %v2442, 1.0
        %v2571 = vadd.f32 %v2443, 1.0
        %v2572 = vadd.f32 %v2444, 1.0
        %v2573 = vadd.f32 %v2445, 1.0
        %v2574 = vadd.f32 %v2446, 1.0
        %v2575 = vadd.f32 %v2447, 1.0
        %v2576 = vadd.f32 %v2448, 1.0
        %v2577 = vadd.f32 %v2449, 1.0
        %v2578 = vadd.f32 %v2450, 1.0
        %v2579 = vadd.f32 %v2451, 1.0
        %v2580 = vadd.f32 %v2452, 1.0
        %v2581 = vadd.f32 %v2453, 1.0
        %v2582 = vadd.f32 %v2454, 1.0
        %v2583 = vadd.f32 %v2455, 1.0
        %v2584 = vadd.f32 %v2456, 1.0
        %v2585 = vadd.f32 %v2457, 1.0
        %v2586 = vadd.f32 %v2458, 1.0
        %v2587 = vadd.f32 %v2459, 1.0
        %v2588 = vadd.f32 %v2460, 1.0
        %v2589 = vadd.f32 %v2461, 1.0
        %v2590 = vadd.f32 %v2462, 1.0
        %v2591 = vadd.f32 %v2463, 1.0
        %v2592 = vadd.f32 %v2464, 1.0
        %v2593 = vadd.f32 %v2465, 1.0
        %v2594 = vadd.f32 %v2466, 1.0
        %v2595 = vadd.f32 %v2467, 1.0
        %v2596 = vadd.f32 %v2468, 1.0
        %v2597 = vadd.f32 %v2469, 1.0
        %v2598 = vadd.f32 %v2470, 1.0
        %v2599 = vadd.f32 %v2471, 1.0
        %v2600 = vadd.f32 %v2472, 1.0
        %v2601 = vadd.f32 %v2473, 1.0
        %v2602 = vadd.f32 %v2474, 1.0
        %v2603 = vadd.f32 %v2475, 1.0
        %v2604 = vadd.f32 %v2476, 1.0
        %v2605 = vadd.f32 %v2477, 1.0
        %v2606 = vadd.f32 %v2478, 1.0
        %v2607 = vadd.f32 %v2479, 1.0
        %v2608 = vadd.f32 %v2480, 1.0
        %v2609 = vadd.f32 %v2481, 1.0
        %v2610 = vadd.f32 %v2482, 1.0
        %v2611 = vadd.f32 %v2483, 1.0
        %v2612 = vadd.f32 %v2484, 1.0
        %v2613 = vadd.f32 %v2485, 1.0
        %v2614 = vadd.f32 %v2486, 1.0
        %v2615 = vadd.f32 %v2487, 1.0
        %v2616 = vadd.f32 %v2488, 1.0
        %v2617 = vadd.f32 %v2489, 1.0
        %v2618 = vadd.f32 %v2490, 1.0
        %v2619 = vadd.f32 %v2491, 1.0
        %v2620 = vadd.f32 %v2492, 1.0
        %v2621 = vadd.f32 %v2493, 1.0
        %v2622 = vadd.f32 %v2494, 1.0
        %v2623 = vadd.f32 %v2495, 1.0
        %v2624 = vadd.f32 %v2496, 1.0
        %v2625 = vadd.f32 %v2497, 1.0
        %v2626 = vadd.f32 %v2498, 1.0
        %v2627 = vadd.f32 %v2499, 1.0
        %v2628 = vadd.f32 %v2500, 1.0
        %v2629 = vadd.f32 %v2501, 1.0
        %v2630 = vadd.f32 %v2502, 1.0
        %v2631 = vadd.f32 %v2503, 1.0
        %v2632 = vadd.f32 %v2504, 1.0
        %v2633 = vadd.f32 %v2505, 1.0
        %v2634 = vadd.f32 %v2506, 1.0
        %v2635 = vadd.f32 %v2507, 1.0
        %v2636 = vadd.f32 %v2508, 1.0
        %v2637 = vadd.f32 %v2509, 1.0
        %v2638 = vadd.f32 %v2510, 1.0
        %v2639 = vadd.f32 %v2511, 1.0
        %v2640 = vadd.f32 %v2512, 1.0
        %v2641 = vadd.f32 %v2513, 1.0
        %v2642 = vadd.f32 %v2514, 1.0
        %v2643 = vadd.f32 %v2515, 1.0
        %v2644 = vadd.f32 %v2516, 1.0
        %v2645 = vadd.f32 %v2517, 1.0
        %v2646 = vadd.f32 %v2518, 1.0
        %v2647 = vadd.f32 %v2519, 1.0
        %v2648 = vadd.f32 %v2520, 1.0
        %v2649 = vadd.f32 %v2521, 1.0
        %v2650 = vadd.f32 %v2522, 1.0
        %v2651 = vadd.f32 %v2523, 1.0
        %v2652 = vadd.f32 %v2524, 1.0
        %v2653 = vadd.f32 %v2525, 1.0
        %v2654 = vadd.f32 %v2526, 1.0
        %v2655 = vadd.f32 %v2527, 1.0
        %v2656 = vadd.f32 %v2528, 1.0
        %v2657 = vadd.f32 %v2529, 1.0
        %v2658 = vadd.f32 %v2530, 1.0
        %v2659 = vadd.f32 %v2531, 1.0
        %v2660 = vadd.f32 %v2532, 1.0
        %v2661 = vadd.f32 %v2533, 1.0
        %v2662 = vadd.f32 %v2534, 1.0
        %v2663 = vadd.f32 %v2535, 1.0
        %v2664 = vadd.f32 %v2536, 1.0
        %v2665 = vadd.f32 %v2537, 1.0
        %v2666 = vadd.f32 %v2538, 1.0
        %v2667 = vadd.f32 %v2539, 1.0
        %v2668 = vadd.f32 %v2540, 1.0
        %v2669 = vadd.f32 %v2541, 1.0
        %v2670 = vmul.f32 %v1902, %v2542
        %v2671 = vmul.f32 %v1903, %v2543
        %v2672 = vmul.f32 %v1904, %v2544
        %v2673 = vmul.f32 %v1905, %v2545
        %v2674 = vmul.f32 %v1906, %v2546
        %v2675 = vmul.f32 %v1907, %v2547
        %v2676 = vmul.f32 %v1908, %v2548
        %v2677 = vmul.f32 %v1909, %v2549
        %v2678 = vmul.f32 %v1910, %v2550
        %v2679 = vmul.f32 %v1911, %v2551
        %v2680 = vmul.f32 %v1912, %v2552
        %v2681 = vmul.f32 %v1913, %v2553
        %v2682 = vmul.f32 %v1914, %v2554
        %v2683 = vmul.f32 %v1915, %v2555
        %v2684 = vmul.f32 %v1916, %v2556
        %v2685 = vmul.f32 %v1917, %v2557
        %v2686 = vmul.f32 %v1918, %v2558
        %v2687 = vmul.f32 %v1919, %v2559
        %v2688 = vmul.f32 %v1920, %v2560
        %v2689 = vmul.f32 %v1921, %v2561
        %v2690 = vmul.f32 %v1922, %v2562
        %v2691 = vmul.f32 %v1923, %v2563
        %v2692 = vmul.f32 %v1924, %v2564
        %v2693 = vmul.f32 %v1925, %v2565
        %v2694 = vmul.f32 %v1926, %v2566
        %v2695 = vmul.f32 %v1927, %v2567
        %v2696 = vmul.f32 %v1928, %v2568
        %v2697 = vmul.f32 %v1929, %v2569
        %v2698 = vmul.f32 %v1930, %v2570
        %v2699 = vmul.f32 %v1931, %v2571
        %v2700 = vmul.f32 %v1932, %v2572
        %v2701 = vmul.f32 %v1933, %v2573
        %v2702 = vmul.f32 %v1934, %v2574
        %v2703 = vmul.f32 %v1935, %v2575
        %v2704 = vmul.f32 %v1936, %v2576
        %v2705 = vmul.f32 %v1937, %v2577
        %v2706 = vmul.f32 %v1938, %v2578
        %v2707 = vmul.f32 %v1939, %v2579
        %v2708 = vmul.f32 %v1940, %v2580
        %v2709 = vmul.f32 %v1941, %v2581
        %v2710 = vmul.f32 %v1942, %v2582
        %v2711 = vmul.f32 %v1943, %v2583
        %v2712 = vmul.f32 %v1944, %v2584
        %v2713 = vmul.f32 %v1945, %v2585
        %v2714 = vmul.f32 %v1946, %v2586
        %v2715 = vmul.f32 %v1947, %v2587
        %v2716 = vmul.f32 %v1948, %v2588
        %v2717 = vmul.f32 %v1949, %v2589
        %v2718 = vmul.f32 %v1950, %v2590
        %v2719 = vmul.f32 %v1951, %v2591
        %v2720 = vmul.f32 %v1952, %v2592
        %v2721 = vmul.f32 %v1953, %v2593
        %v2722 = vmul.f32 %v1954, %v2594
        %v2723 = vmul.f32 %v1955, %v2595
        %v2724 = vmul.f32 %v1956, %v2596
        %v2725 = vmul.f32 %v1957, %v2597
        %v2726 = vmul.f32 %v1958, %v2598
        %v2727 = vmul.f32 %v1959, %v2599
        %v2728 = vmul.f32 %v1960, %v2600
        %v2729 = vmul.f32 %v1961, %v2601
        %v2730 = vmul.f32 %v1962, %v2602
        %v2731 = vmul.f32 %v1963, %v2603
        %v2732 = vmul.f32 %v1964, %v2604
        %v2733 = vmul.f32 %v1965, %v2605
        %v2734 = vmul.f32 %v1966, %v2606
        %v2735 = vmul.f32 %v1967, %v2607
        %v2736 = vmul.f32 %v1968, %v2608
        %v2737 = vmul.f32 %v1969, %v2609
        %v2738 = vmul.f32 %v1970, %v2610
        %v2739 = vmul.f32 %v1971, %v2611
        %v2740 = vmul.f32 %v1972, %v2612
        %v2741 = vmul.f32 %v1973, %v2613
        %v2742 = vmul.f32 %v1974, %v2614
        %v2743 = vmul.f32 %v1975, %v2615
        %v2744 = vmul.f32 %v1976, %v2616
        %v2745 = vmul.f32 %v1977, %v2617
        %v2746 = vmul.f32 %v1978, %v2618
        %v2747 = vmul.f32 %v1979, %v2619
        %v2748 = vmul.f32 %v1980, %v2620
        %v2749 = vmul.f32 %v1981, %v2621
        %v2750 = vmul.f32 %v1982, %v2622
        %v2751 = vmul.f32 %v1983, %v2623
        %v2752 = vmul.f32 %v1984, %v2624
        %v2753 = vmul.f32 %v1985, %v2625
        %v2754 = vmul.f32 %v1986, %v2626
        %v2755 = vmul.f32 %v1987, %v2627
        %v2756 = vmul.f32 %v1988, %v2628
        %v2757 = vmul.f32 %v1989, %v2629
        %v2758 = vmul.f32 %v1990, %v2630
        %v2759 = vmul.f32 %v1991, %v2631
        %v2760 = vmul.f32 %v1992, %v2632
        %v2761 = vmul.f32 %v1993, %v2633
        %v2762 = vmul.f32 %v1994, %v2634
        %v2763 = vmul.f32 %v1995, %v2635
        %v2764 = vmul.f32 %v1996, %v2636
        %v2765 = vmul.f32 %v1997, %v2637
        %v2766 = vmul.f32 %v1998, %v2638
        %v2767 = vmul.f32 %v1999, %v2639
        %v2768 = vmul.f32 %v2000, %v2640
        %v2769 = vmul.f32 %v2001, %v2641
        %v2770 = vmul.f32 %v2002, %v2642
        %v2771 = vmul.f32 %v2003, %v2643
        %v2772 = vmul.f32 %v2004, %v2644
        %v2773 = vmul.f32 %v2005, %v2645
        %v2774 = vmul.f32 %v2006, %v2646
        %v2775 = vmul.f32 %v2007, %v2647
        %v2776 = vmul.f32 %v2008, %v2648
        %v2777 = vmul.f32 %v2009, %v2649
        %v2778 = vmul.f32 %v2010, %v2650
        %v2779 = vmul.f32 %v2011, %v2651
        %v2780 = vmul.f32 %v2012, %v2652
        %v2781 = vmul.f32 %v2013, %v2653
        %v2782 = vmul.f32 %v2014, %v2654
        %v2783 = vmul.f32 %v2015, %v2655
        %v2784 = vmul.f32 %v2016, %v2656
        %v2785 = vmul.f32 %v2017, %v2657
        %v2786 = vmul.f32 %v2018, %v2658
        %v2787 = vmul.f32 %v2019, %v2659
        %v2788 = vmul.f32 %v2020, %v2660
        %v2789 = vmul.f32 %v2021, %v2661
        %v2790 = vmul.f32 %v2022, %v2662
        %v2791 = vmul.f32 %v2023, %v2663
        %v2792 = vmul.f32 %v2024, %v2664
        %v2793 = vmul.f32 %v2025, %v2665
        %v2794 = vmul.f32 %v2026, %v2666
        %v2795 = vmul.f32 %v2027, %v2667
        %v2796 = vmul.f32 %v2028, %v2668
        %v2797 = vmul.f32 %v2029, %v2669
        %v2798 = vpack.c.bf16 %v2678, %v2670
        %v2799 = vpack.c.bf16 %v2679, %v2671
        %v2800 = vpack.c.bf16 %v2680, %v2672
        %v2801 = vpack.c.bf16 %v2681, %v2673
        %v2802 = vpack.c.bf16 %v2682, %v2674
        %v2803 = vpack.c.bf16 %v2683, %v2675
        %v2804 = vpack.c.bf16 %v2684, %v2676
        %v2805 = vpack.c.bf16 %v2685, %v2677
        %v2806 = vpack.c.bf16 %v2694, %v2686
        %v2807 = vpack.c.bf16 %v2695, %v2687
        %v2808 = vpack.c.bf16 %v2696, %v2688
        %v2809 = vpack.c.bf16 %v2697, %v2689
        %v2810 = vpack.c.bf16 %v2698, %v2690
        %v2811 = vpack.c.bf16 %v2699, %v2691
        %v2812 = vpack.c.bf16 %v2700, %v2692
        %v2813 = vpack.c.bf16 %v2701, %v2693
        %v2814 = vpack.c.bf16 %v2710, %v2702
        %v2815 = vpack.c.bf16 %v2711, %v2703
        %v2816 = vpack.c.bf16 %v2712, %v2704
        %v2817 = vpack.c.bf16 %v2713, %v2705
        %v2818 = vpack.c.bf16 %v2714, %v2706
        %v2819 = vpack.c.bf16 %v2715, %v2707
        %v2820 = vpack.c.bf16 %v2716, %v2708
        %v2821 = vpack.c.bf16 %v2717, %v2709
        %v2822 = vpack.c.bf16 %v2726, %v2718
        %v2823 = vpack.c.bf16 %v2727, %v2719
        %v2824 = vpack.c.bf16 %v2728, %v2720
        %v2825 = vpack.c.bf16 %v2729, %v2721
        %v2826 = vpack.c.bf16 %v2730, %v2722
        %v2827 = vpack.c.bf16 %v2731, %v2723
        %v2828 = vpack.c.bf16 %v2732, %v2724
        %v2829 = vpack.c.bf16 %v2733, %v2725
        %v2830 = vpack.c.bf16 %v2742, %v2734
        %v2831 = vpack.c.bf16 %v2743, %v2735
        %v2832 = vpack.c.bf16 %v2744, %v2736
        %v2833 = vpack.c.bf16 %v2745, %v2737
        %v2834 = vpack.c.bf16 %v2746, %v2738
        %v2835 = vpack.c.bf16 %v2747, %v2739
        %v2836 = vpack.c.bf16 %v2748, %v2740
        %v2837 = vpack.c.bf16 %v2749, %v2741
        %v2838 = vpack.c.bf16 %v2758, %v2750
        %v2839 = vpack.c.bf16 %v2759, %v2751
        %v2840 = vpack.c.bf16 %v2760, %v2752
        %v2841 = vpack.c.bf16 %v2761, %v2753
        %v2842 = vpack.c.bf16 %v2762, %v2754
        %v2843 = vpack.c.bf16 %v2763, %v2755
        %v2844 = vpack.c.bf16 %v2764, %v2756
        %v2845 = vpack.c.bf16 %v2765, %v2757
        %v2846 = vpack.c.bf16 %v2774, %v2766
        %v2847 = vpack.c.bf16 %v2775, %v2767
        %v2848 = vpack.c.bf16 %v2776, %v2768
        %v2849 = vpack.c.bf16 %v2777, %v2769
        %v2850 = vpack.c.bf16 %v2778, %v2770
        %v2851 = vpack.c.bf16 %v2779, %v2771
        %v2852 = vpack.c.bf16 %v2780, %v2772
        %v2853 = vpack.c.bf16 %v2781, %v2773
        %v2854 = vpack.c.bf16 %v2790, %v2782
        %v2855 = vpack.c.bf16 %v2791, %v2783
        %v2856 = vpack.c.bf16 %v2792, %v2784
        %v2857 = vpack.c.bf16 %v2793, %v2785
        %v2858 = vpack.c.bf16 %v2794, %v2786
        %v2859 = vpack.c.bf16 %v2795, %v2787
        %v2860 = vpack.c.bf16 %v2796, %v2788
        %v2861 = vpack.c.bf16 %v2797, %v2789
        %v2862 = vld [vmem:[#allocation8] sm:$0xff]
        %v2863 = vld [vmem:[#allocation8 + $0x8] sm:$0xff]
        %v2864 = vld [vmem:[#allocation8 + $0x10] sm:$0xff]
        %v2865 = vld [vmem:[#allocation8 + $0x18] sm:$0xff]
        %v2866 = vld [vmem:[#allocation8 + $0x20] sm:$0xff]
        %v2867 = vld [vmem:[#allocation8 + $0x28] sm:$0xff]
        %v2868 = vld [vmem:[#allocation8 + $0x30] sm:$0xff]
        %v2869 = vld [vmem:[#allocation8 + $0x38] sm:$0xff]
        %v2870 = vld [vmem:[#allocation8 + $0x40] sm:$0xff]
        %v2871 = vld [vmem:[#allocation8 + $0x48] sm:$0xff]
        %v2872 = vld [vmem:[#allocation8 + $0x50] sm:$0xff]
        %v2873 = vld [vmem:[#allocation8 + $0x58] sm:$0xff]
        %v2874 = vld [vmem:[#allocation8 + $0x60] sm:$0xff]
        %v2875 = vld [vmem:[#allocation8 + $0x68] sm:$0xff]
        %v2876 = vld [vmem:[#allocation8 + $0x70] sm:$0xff]
        %v2877 = vld [vmem:[#allocation8 + $0x78] sm:$0xff]
        %v2878 = vld [vmem:[#allocation8 + $0x80] sm:$0xff]
        %v2879 = vld [vmem:[#allocation8 + $0x88] sm:$0xff]
        %v2880 = vld [vmem:[#allocation8 + $0x90] sm:$0xff]
        %v2881 = vld [vmem:[#allocation8 + $0x98] sm:$0xff]
        %v2882 = vld [vmem:[#allocation8 + $0xa0] sm:$0xff]
        %v2883 = vld [vmem:[#allocation8 + $0xa8] sm:$0xff]
        %v2884 = vld [vmem:[#allocation8 + $0xb0] sm:$0xff]
        %v2885 = vld [vmem:[#allocation8 + $0xb8] sm:$0xff]
        %v2886 = vld [vmem:[#allocation8 + $0xc0] sm:$0xff]
        %v2887 = vld [vmem:[#allocation8 + $0xc8] sm:$0xff]
        %v2888 = vld [vmem:[#allocation8 + $0xd0] sm:$0xff]
        %v2889 = vld [vmem:[#allocation8 + $0xd8] sm:$0xff]
        %v2890 = vld [vmem:[#allocation8 + $0xe0] sm:$0xff]
        %v2891 = vld [vmem:[#allocation8 + $0xe8] sm:$0xff]
        %v2892 = vld [vmem:[#allocation8 + $0xf0] sm:$0xff]
        %v2893 = vld [vmem:[#allocation8 + $0xf8] sm:$0xff]
        %v2894 = vld [vmem:[#allocation8 + $0x100] sm:$0xff]
        %v2895 = vld [vmem:[#allocation8 + $0x108] sm:$0xff]
        %v2896 = vld [vmem:[#allocation8 + $0x110] sm:$0xff]
        %v2897 = vld [vmem:[#allocation8 + $0x118] sm:$0xff]
        %v2898 = vld [vmem:[#allocation8 + $0x120] sm:$0xff]
        %v2899 = vld [vmem:[#allocation8 + $0x128] sm:$0xff]
        %v2900 = vld [vmem:[#allocation8 + $0x130] sm:$0xff]
        %v2901 = vld [vmem:[#allocation8 + $0x138] sm:$0xff]
        %v2902 = vld [vmem:[#allocation8 + $0x140] sm:$0xff]
        %v2903 = vld [vmem:[#allocation8 + $0x148] sm:$0xff]
        %v2904 = vld [vmem:[#allocation8 + $0x150] sm:$0xff]
        %v2905 = vld [vmem:[#allocation8 + $0x158] sm:$0xff]
        %v2906 = vld [vmem:[#allocation8 + $0x160] sm:$0xff]
        %v2907 = vld [vmem:[#allocation8 + $0x168] sm:$0xff]
        %v2908 = vld [vmem:[#allocation8 + $0x170] sm:$0xff]
        %v2909 = vld [vmem:[#allocation8 + $0x178] sm:$0xff]
        %v2910 = vld [vmem:[#allocation8 + $0x180] sm:$0xff]
        %v2911 = vld [vmem:[#allocation8 + $0x188] sm:$0xff]
        %v2912 = vld [vmem:[#allocation8 + $0x190] sm:$0xff]
        %v2913 = vld [vmem:[#allocation8 + $0x198] sm:$0xff]
        %v2914 = vld [vmem:[#allocation8 + $0x1a0] sm:$0xff]
        %v2915 = vld [vmem:[#allocation8 + $0x1a8] sm:$0xff]
        %v2916 = vld [vmem:[#allocation8 + $0x1b0] sm:$0xff]
        %v2917 = vld [vmem:[#allocation8 + $0x1b8] sm:$0xff]
        %v2918 = vld [vmem:[#allocation8 + $0x1c0] sm:$0xff]
        %v2919 = vld [vmem:[#allocation8 + $0x1c8] sm:$0xff]
        %v2920 = vld [vmem:[#allocation8 + $0x1d0] sm:$0xff]
        %v2921 = vld [vmem:[#allocation8 + $0x1d8] sm:$0xff]
        %v2922 = vld [vmem:[#allocation8 + $0x1e0] sm:$0xff]
        %v2923 = vld [vmem:[#allocation8 + $0x1e8] sm:$0xff]
        %v2924 = vld [vmem:[#allocation8 + $0x1f0] sm:$0xff]
        %v2925 = vld [vmem:[#allocation8 + $0x1f8] sm:$0xff]
        %v2926 = vld [vmem:[#allocation8 + $0x200] sm:$0xff]
        %v2927 = vld [vmem:[#allocation8 + $0x208] sm:$0xff]
        %v2928 = vld [vmem:[#allocation8 + $0x210] sm:$0xff]
        %v2929 = vld [vmem:[#allocation8 + $0x218] sm:$0xff]
        %v2930 = vld [vmem:[#allocation8 + $0x220] sm:$0xff]
        %v2931 = vld [vmem:[#allocation8 + $0x228] sm:$0xff]
        %v2932 = vld [vmem:[#allocation8 + $0x230] sm:$0xff]
        %v2933 = vld [vmem:[#allocation8 + $0x238] sm:$0xff]
        %v2934 = vld [vmem:[#allocation8 + $0x240] sm:$0xff]
        %v2935 = vld [vmem:[#allocation8 + $0x248] sm:$0xff]
        %v2936 = vld [vmem:[#allocation8 + $0x250] sm:$0xff]
        %v2937 = vld [vmem:[#allocation8 + $0x258] sm:$0xff]
        %v2938 = vld [vmem:[#allocation8 + $0x260] sm:$0xff]
        %v2939 = vld [vmem:[#allocation8 + $0x268] sm:$0xff]
        %v2940 = vld [vmem:[#allocation8 + $0x270] sm:$0xff]
        %v2941 = vld [vmem:[#allocation8 + $0x278] sm:$0xff]
        %v2942 = vld [vmem:[#allocation8 + $0x280] sm:$0xff]
        %v2943 = vld [vmem:[#allocation8 + $0x288] sm:$0xff]
        %v2944 = vld [vmem:[#allocation8 + $0x290] sm:$0xff]
        %v2945 = vld [vmem:[#allocation8 + $0x298] sm:$0xff]
        %v2946 = vld [vmem:[#allocation8 + $0x2a0] sm:$0xff]
        %v2947 = vld [vmem:[#allocation8 + $0x2a8] sm:$0xff]
        %v2948 = vld [vmem:[#allocation8 + $0x2b0] sm:$0xff]
        %v2949 = vld [vmem:[#allocation8 + $0x2b8] sm:$0xff]
        %v2950 = vld [vmem:[#allocation8 + $0x2c0] sm:$0xff]
        %v2951 = vld [vmem:[#allocation8 + $0x2c8] sm:$0xff]
        %v2952 = vld [vmem:[#allocation8 + $0x2d0] sm:$0xff]
        %v2953 = vld [vmem:[#allocation8 + $0x2d8] sm:$0xff]
        %v2954 = vld [vmem:[#allocation8 + $0x2e0] sm:$0xff]
        %v2955 = vld [vmem:[#allocation8 + $0x2e8] sm:$0xff]
        %v2956 = vld [vmem:[#allocation8 + $0x2f0] sm:$0xff]
        %v2957 = vld [vmem:[#allocation8 + $0x2f8] sm:$0xff]
        %v2958 = vld [vmem:[#allocation8 + $0x300] sm:$0xff]
        %v2959 = vld [vmem:[#allocation8 + $0x308] sm:$0xff]
        %v2960 = vld [vmem:[#allocation8 + $0x310] sm:$0xff]
        %v2961 = vld [vmem:[#allocation8 + $0x318] sm:$0xff]
        %v2962 = vld [vmem:[#allocation8 + $0x320] sm:$0xff]
        %v2963 = vld [vmem:[#allocation8 + $0x328] sm:$0xff]
        %v2964 = vld [vmem:[#allocation8 + $0x330] sm:$0xff]
        %v2965 = vld [vmem:[#allocation8 + $0x338] sm:$0xff]
        %v2966 = vld [vmem:[#allocation8 + $0x340] sm:$0xff]
        %v2967 = vld [vmem:[#allocation8 + $0x348] sm:$0xff]
        %v2968 = vld [vmem:[#allocation8 + $0x350] sm:$0xff]
        %v2969 = vld [vmem:[#allocation8 + $0x358] sm:$0xff]
        %v2970 = vld [vmem:[#allocation8 + $0x360] sm:$0xff]
        %v2971 = vld [vmem:[#allocation8 + $0x368] sm:$0xff]
        %v2972 = vld [vmem:[#allocation8 + $0x370] sm:$0xff]
        %v2973 = vld [vmem:[#allocation8 + $0x378] sm:$0xff]
        %v2974 = vld [vmem:[#allocation8 + $0x380] sm:$0xff]
        %v2975 = vld [vmem:[#allocation8 + $0x388] sm:$0xff]
        %v2976 = vld [vmem:[#allocation8 + $0x390] sm:$0xff]
        %v2977 = vld [vmem:[#allocation8 + $0x398] sm:$0xff]
        %v2978 = vld [vmem:[#allocation8 + $0x3a0] sm:$0xff]
        %v2979 = vld [vmem:[#allocation8 + $0x3a8] sm:$0xff]
        %v2980 = vld [vmem:[#allocation8 + $0x3b0] sm:$0xff]
        %v2981 = vld [vmem:[#allocation8 + $0x3b8] sm:$0xff]
        %v2982 = vld [vmem:[#allocation8 + $0x3c0] sm:$0xff]
        %v2983 = vld [vmem:[#allocation8 + $0x3c8] sm:$0xff]
        %v2984 = vld [vmem:[#allocation8 + $0x3d0] sm:$0xff]
        %v2985 = vld [vmem:[#allocation8 + $0x3d8] sm:$0xff]
        %v2986 = vld [vmem:[#allocation8 + $0x3e0] sm:$0xff]
        %v2987 = vld [vmem:[#allocation8 + $0x3e8] sm:$0xff]
        %v2988 = vld [vmem:[#allocation8 + $0x3f0] sm:$0xff]
        %v2989 = vld [vmem:[#allocation8 + $0x3f8] sm:$0xff]
        %v2990 = vld [vmem:[%s4] sm:$0x3]
        %v2992 = vlaneseq
        %v2993 = vshrl.u32 %v2992, 7
        %v2994 = vsub.s32 0, %v2993
        %v2995 = vrot.slane %v2990, %v2994
        %v2996 = vlaneseq
        %v2997 = vshrl.u32 %v2996, 7
        %v2998 = vsub.s32 1, %v2997
        %v2999 = vrot.slane %v2990, %v2998
        %v3130 = vunpack.c.l.b16 %v2862
        %v3131 = vunpack.c.h.b16 %v2862
        %v3132 = vunpack.c.l.b16 %v2863
        %v3133 = vunpack.c.h.b16 %v2863
        %v3134 = vunpack.c.l.b16 %v2864
        %v3135 = vunpack.c.h.b16 %v2864
        %v3136 = vunpack.c.l.b16 %v2865
        %v3137 = vunpack.c.h.b16 %v2865
        %v3138 = vunpack.c.l.b16 %v2866
        %v3139 = vunpack.c.h.b16 %v2866
        %v3140 = vunpack.c.l.b16 %v2867
        %v3141 = vunpack.c.h.b16 %v2867
        %v3142 = vunpack.c.l.b16 %v2868
        %v3143 = vunpack.c.h.b16 %v2868
        %v3144 = vunpack.c.l.b16 %v2869
        %v3145 = vunpack.c.h.b16 %v2869
        %v3146 = vunpack.c.l.b16 %v2870
        %v3147 = vunpack.c.h.b16 %v2870
        %v3148 = vunpack.c.l.b16 %v2871
        %v3149 = vunpack.c.h.b16 %v2871
        %v3150 = vunpack.c.l.b16 %v2872
        %v3151 = vunpack.c.h.b16 %v2872
        %v3152 = vunpack.c.l.b16 %v2873
        %v3153 = vunpack.c.h.b16 %v2873
        %v3154 = vunpack.c.l.b16 %v2874
        %v3155 = vunpack.c.h.b16 %v2874
        %v3156 = vunpack.c.l.b16 %v2875
        %v3157 = vunpack.c.h.b16 %v2875
        %v3158 = vunpack.c.l.b16 %v2876
        %v3159 = vunpack.c.h.b16 %v2876
        %v3160 = vunpack.c.l.b16 %v2877
        %v3161 = vunpack.c.h.b16 %v2877
        %v3162 = vunpack.c.l.b16 %v2878
        %v3163 = vunpack.c.h.b16 %v2878
        %v3164 = vunpack.c.l.b16 %v2879
        %v3165 = vunpack.c.h.b16 %v2879
        %v3166 = vunpack.c.l.b16 %v2880
        %v3167 = vunpack.c.h.b16 %v2880
        %v3168 = vunpack.c.l.b16 %v2881
        %v3169 = vunpack.c.h.b16 %v2881
        %v3170 = vunpack.c.l.b16 %v2882
        %v3171 = vunpack.c.h.b16 %v2882
        %v3172 = vunpack.c.l.b16 %v2883
        %v3173 = vunpack.c.h.b16 %v2883
        %v3174 = vunpack.c.l.b16 %v2884
        %v3175 = vunpack.c.h.b16 %v2884
        %v3176 = vunpack.c.l.b16 %v2885
        %v3177 = vunpack.c.h.b16 %v2885
        %v3178 = vunpack.c.l.b16 %v2886
        %v3179 = vunpack.c.h.b16 %v2886
        %v3180 = vunpack.c.l.b16 %v2887
        %v3181 = vunpack.c.h.b16 %v2887
        %v3182 = vunpack.c.l.b16 %v2888
        %v3183 = vunpack.c.h.b16 %v2888
        %v3184 = vunpack.c.l.b16 %v2889
        %v3185 = vunpack.c.h.b16 %v2889
        %v3186 = vunpack.c.l.b16 %v2890
        %v3187 = vunpack.c.h.b16 %v2890
        %v3188 = vunpack.c.l.b16 %v2891
        %v3189 = vunpack.c.h.b16 %v2891
        %v3190 = vunpack.c.l.b16 %v2892
        %v3191 = vunpack.c.h.b16 %v2892
        %v3192 = vunpack.c.l.b16 %v2893
        %v3193 = vunpack.c.h.b16 %v2893
        %v3194 = vunpack.c.l.b16 %v2894
        %v3195 = vunpack.c.h.b16 %v2894
        %v3196 = vunpack.c.l.b16 %v2895
        %v3197 = vunpack.c.h.b16 %v2895
        %v3198 = vunpack.c.l.b16 %v2896
        %v3199 = vunpack.c.h.b16 %v2896
        %v3200 = vunpack.c.l.b16 %v2897
        %v3201 = vunpack.c.h.b16 %v2897
        %v3202 = vunpack.c.l.b16 %v2898
        %v3203 = vunpack.c.h.b16 %v2898
        %v3204 = vunpack.c.l.b16 %v2899
        %v3205 = vunpack.c.h.b16 %v2899
        %v3206 = vunpack.c.l.b16 %v2900
        %v3207 = vunpack.c.h.b16 %v2900
        %v3208 = vunpack.c.l.b16 %v2901
        %v3209 = vunpack.c.h.b16 %v2901
        %v3210 = vunpack.c.l.b16 %v2902
        %v3211 = vunpack.c.h.b16 %v2902
        %v3212 = vunpack.c.l.b16 %v2903
        %v3213 = vunpack.c.h.b16 %v2903
        %v3214 = vunpack.c.l.b16 %v2904
        %v3215 = vunpack.c.h.b16 %v2904
        %v3216 = vunpack.c.l.b16 %v2905
        %v3217 = vunpack.c.h.b16 %v2905
        %v3218 = vunpack.c.l.b16 %v2906
        %v3219 = vunpack.c.h.b16 %v2906
        %v3220 = vunpack.c.l.b16 %v2907
        %v3221 = vunpack.c.h.b16 %v2907
        %v3222 = vunpack.c.l.b16 %v2908
        %v3223 = vunpack.c.h.b16 %v2908
        %v3224 = vunpack.c.l.b16 %v2909
        %v3225 = vunpack.c.h.b16 %v2909
        %v3226 = vunpack.c.l.b16 %v2910
        %v3227 = vunpack.c.h.b16 %v2910
        %v3228 = vunpack.c.l.b16 %v2911
        %v3229 = vunpack.c.h.b16 %v2911
        %v3230 = vunpack.c.l.b16 %v2912
        %v3231 = vunpack.c.h.b16 %v2912
        %v3232 = vunpack.c.l.b16 %v2913
        %v3233 = vunpack.c.h.b16 %v2913
        %v3234 = vunpack.c.l.b16 %v2914
        %v3235 = vunpack.c.h.b16 %v2914
        %v3236 = vunpack.c.l.b16 %v2915
        %v3237 = vunpack.c.h.b16 %v2915
        %v3238 = vunpack.c.l.b16 %v2916
        %v3239 = vunpack.c.h.b16 %v2916
        %v3240 = vunpack.c.l.b16 %v2917
        %v3241 = vunpack.c.h.b16 %v2917
        %v3242 = vunpack.c.l.b16 %v2918
        %v3243 = vunpack.c.h.b16 %v2918
        %v3244 = vunpack.c.l.b16 %v2919
        %v3245 = vunpack.c.h.b16 %v2919
        %v3246 = vunpack.c.l.b16 %v2920
        %v3247 = vunpack.c.h.b16 %v2920
        %v3248 = vunpack.c.l.b16 %v2921
        %v3249 = vunpack.c.h.b16 %v2921
        %v3250 = vunpack.c.l.b16 %v2922
        %v3251 = vunpack.c.h.b16 %v2922
        %v3252 = vunpack.c.l.b16 %v2923
        %v3253 = vunpack.c.h.b16 %v2923
        %v3254 = vunpack.c.l.b16 %v2924
        %v3255 = vunpack.c.h.b16 %v2924
        %v3256 = vunpack.c.l.b16 %v2925
        %v3257 = vunpack.c.h.b16 %v2925
        %v3258 = vunpack.c.l.b16 %v2926
        %v3259 = vunpack.c.h.b16 %v2926
        %v3260 = vunpack.c.l.b16 %v2927
        %v3261 = vunpack.c.h.b16 %v2927
        %v3262 = vunpack.c.l.b16 %v2928
        %v3263 = vunpack.c.h.b16 %v2928
        %v3264 = vunpack.c.l.b16 %v2929
        %v3265 = vunpack.c.h.b16 %v2929
        %v3266 = vunpack.c.l.b16 %v2930
        %v3267 = vunpack.c.h.b16 %v2930
        %v3268 = vunpack.c.l.b16 %v2931
        %v3269 = vunpack.c.h.b16 %v2931
        %v3270 = vunpack.c.l.b16 %v2932
        %v3271 = vunpack.c.h.b16 %v2932
        %v3272 = vunpack.c.l.b16 %v2933
        %v3273 = vunpack.c.h.b16 %v2933
        %v3274 = vunpack.c.l.b16 %v2934
        %v3275 = vunpack.c.h.b16 %v2934
        %v3276 = vunpack.c.l.b16 %v2935
        %v3277 = vunpack.c.h.b16 %v2935
        %v3278 = vunpack.c.l.b16 %v2936
        %v3279 = vunpack.c.h.b16 %v2936
        %v3280 = vunpack.c.l.b16 %v2937
        %v3281 = vunpack.c.h.b16 %v2937
        %v3282 = vunpack.c.l.b16 %v2938
        %v3283 = vunpack.c.h.b16 %v2938
        %v3284 = vunpack.c.l.b16 %v2939
        %v3285 = vunpack.c.h.b16 %v2939
        %v3286 = vunpack.c.l.b16 %v2940
        %v3287 = vunpack.c.h.b16 %v2940
        %v3288 = vunpack.c.l.b16 %v2941
        %v3289 = vunpack.c.h.b16 %v2941
        %v3290 = vunpack.c.l.b16 %v2942
        %v3291 = vunpack.c.h.b16 %v2942
        %v3292 = vunpack.c.l.b16 %v2943
        %v3293 = vunpack.c.h.b16 %v2943
        %v3294 = vunpack.c.l.b16 %v2944
        %v3295 = vunpack.c.h.b16 %v2944
        %v3296 = vunpack.c.l.b16 %v2945
        %v3297 = vunpack.c.h.b16 %v2945
        %v3298 = vunpack.c.l.b16 %v2946
        %v3299 = vunpack.c.h.b16 %v2946
        %v3300 = vunpack.c.l.b16 %v2947
        %v3301 = vunpack.c.h.b16 %v2947
        %v3302 = vunpack.c.l.b16 %v2948
        %v3303 = vunpack.c.h.b16 %v2948
        %v3304 = vunpack.c.l.b16 %v2949
        %v3305 = vunpack.c.h.b16 %v2949
        %v3306 = vunpack.c.l.b16 %v2950
        %v3307 = vunpack.c.h.b16 %v2950
        %v3308 = vunpack.c.l.b16 %v2951
        %v3309 = vunpack.c.h.b16 %v2951
        %v3310 = vunpack.c.l.b16 %v2952
        %v3311 = vunpack.c.h.b16 %v2952
        %v3312 = vunpack.c.l.b16 %v2953
        %v3313 = vunpack.c.h.b16 %v2953
        %v3314 = vunpack.c.l.b16 %v2954
        %v3315 = vunpack.c.h.b16 %v2954
        %v3316 = vunpack.c.l.b16 %v2955
        %v3317 = vunpack.c.h.b16 %v2955
        %v3318 = vunpack.c.l.b16 %v2956
        %v3319 = vunpack.c.h.b16 %v2956
        %v3320 = vunpack.c.l.b16 %v2957
        %v3321 = vunpack.c.h.b16 %v2957
        %v3322 = vunpack.c.l.b16 %v2958
        %v3323 = vunpack.c.h.b16 %v2958
        %v3324 = vunpack.c.l.b16 %v2959
        %v3325 = vunpack.c.h.b16 %v2959
        %v3326 = vunpack.c.l.b16 %v2960
        %v3327 = vunpack.c.h.b16 %v2960
        %v3328 = vunpack.c.l.b16 %v2961
        %v3329 = vunpack.c.h.b16 %v2961
        %v3330 = vunpack.c.l.b16 %v2962
        %v3331 = vunpack.c.h.b16 %v2962
        %v3332 = vunpack.c.l.b16 %v2963
        %v3333 = vunpack.c.h.b16 %v2963
        %v3334 = vunpack.c.l.b16 %v2964
        %v3335 = vunpack.c.h.b16 %v2964
        %v3336 = vunpack.c.l.b16 %v2965
        %v3337 = vunpack.c.h.b16 %v2965
        %v3338 = vunpack.c.l.b16 %v2966
        %v3339 = vunpack.c.h.b16 %v2966
        %v3340 = vunpack.c.l.b16 %v2967
        %v3341 = vunpack.c.h.b16 %v2967
        %v3342 = vunpack.c.l.b16 %v2968
        %v3343 = vunpack.c.h.b16 %v2968
        %v3344 = vunpack.c.l.b16 %v2969
        %v3345 = vunpack.c.h.b16 %v2969
        %v3346 = vunpack.c.l.b16 %v2970
        %v3347 = vunpack.c.h.b16 %v2970
        %v3348 = vunpack.c.l.b16 %v2971
        %v3349 = vunpack.c.h.b16 %v2971
        %v3350 = vunpack.c.l.b16 %v2972
        %v3351 = vunpack.c.h.b16 %v2972
        %v3352 = vunpack.c.l.b16 %v2973
        %v3353 = vunpack.c.h.b16 %v2973
        %v3354 = vunpack.c.l.b16 %v2974
        %v3355 = vunpack.c.h.b16 %v2974
        %v3356 = vunpack.c.l.b16 %v2975
        %v3357 = vunpack.c.h.b16 %v2975
        %v3358 = vunpack.c.l.b16 %v2976
        %v3359 = vunpack.c.h.b16 %v2976
        %v3360 = vunpack.c.l.b16 %v2977
        %v3361 = vunpack.c.h.b16 %v2977
        %v3362 = vunpack.c.l.b16 %v2978
        %v3363 = vunpack.c.h.b16 %v2978
        %v3364 = vunpack.c.l.b16 %v2979
        %v3365 = vunpack.c.h.b16 %v2979
        %v3366 = vunpack.c.l.b16 %v2980
        %v3367 = vunpack.c.h.b16 %v2980
        %v3368 = vunpack.c.l.b16 %v2981
        %v3369 = vunpack.c.h.b16 %v2981
        %v3370 = vunpack.c.l.b16 %v2982
        %v3371 = vunpack.c.h.b16 %v2982
        %v3372 = vunpack.c.l.b16 %v2983
        %v3373 = vunpack.c.h.b16 %v2983
        %v3374 = vunpack.c.l.b16 %v2984
        %v3375 = vunpack.c.h.b16 %v2984
        %v3376 = vunpack.c.l.b16 %v2985
        %v3377 = vunpack.c.h.b16 %v2985
        %v3378 = vunpack.c.l.b16 %v2986
        %v3379 = vunpack.c.h.b16 %v2986
        %v3380 = vunpack.c.l.b16 %v2987
        %v3381 = vunpack.c.h.b16 %v2987
        %v3382 = vunpack.c.l.b16 %v2988
        %v3383 = vunpack.c.h.b16 %v2988
        %v3384 = vunpack.c.l.b16 %v2989
        %v3385 = vunpack.c.h.b16 %v2989
        %v3386 = vpack.c.b16 %v3132, %v3130
        %v3387 = vpack.c.b16 %v3133, %v3131
        %v3388 = vpack.c.b16 %v3136, %v3134
        %v3389 = vpack.c.b16 %v3137, %v3135
        %v3390 = vpack.c.b16 %v3140, %v3138
        %v3391 = vpack.c.b16 %v3141, %v3139
        %v3392 = vpack.c.b16 %v3144, %v3142
        %v3393 = vpack.c.b16 %v3145, %v3143
        %v3394 = vpack.c.b16 %v3148, %v3146
        %v3395 = vpack.c.b16 %v3149, %v3147
        %v3396 = vpack.c.b16 %v3152, %v3150
        %v3397 = vpack.c.b16 %v3153, %v3151
        %v3398 = vpack.c.b16 %v3156, %v3154
        %v3399 = vpack.c.b16 %v3157, %v3155
        %v3400 = vpack.c.b16 %v3160, %v3158
        %v3401 = vpack.c.b16 %v3161, %v3159
        %v3402 = vpack.c.b16 %v3164, %v3162
        %v3403 = vpack.c.b16 %v3165, %v3163
        %v3404 = vpack.c.b16 %v3168, %v3166
        %v3405 = vpack.c.b16 %v3169, %v3167
        %v3406 = vpack.c.b16 %v3172, %v3170
        %v3407 = vpack.c.b16 %v3173, %v3171
        %v3408 = vpack.c.b16 %v3176, %v3174
        %v3409 = vpack.c.b16 %v3177, %v3175
        %v3410 = vpack.c.b16 %v3180, %v3178
        %v3411 = vpack.c.b16 %v3181, %v3179
        %v3412 = vpack.c.b16 %v3184, %v3182
        %v3413 = vpack.c.b16 %v3185, %v3183
        %v3414 = vpack.c.b16 %v3188, %v3186
        %v3415 = vpack.c.b16 %v3189, %v3187
        %v3416 = vpack.c.b16 %v3192, %v3190
        %v3417 = vpack.c.b16 %v3193, %v3191
        %v3418 = vpack.c.b16 %v3196, %v3194
        %v3419 = vpack.c.b16 %v3197, %v3195
        %v3420 = vpack.c.b16 %v3200, %v3198
        %v3421 = vpack.c.b16 %v3201, %v3199
        %v3422 = vpack.c.b16 %v3204, %v3202
        %v3423 = vpack.c.b16 %v3205, %v3203
        %v3424 = vpack.c.b16 %v3208, %v3206
        %v3425 = vpack.c.b16 %v3209, %v3207
        %v3426 = vpack.c.b16 %v3212, %v3210
        %v3427 = vpack.c.b16 %v3213, %v3211
        %v3428 = vpack.c.b16 %v3216, %v3214
        %v3429 = vpack.c.b16 %v3217, %v3215
        %v3430 = vpack.c.b16 %v3220, %v3218
        %v3431 = vpack.c.b16 %v3221, %v3219
        %v3432 = vpack.c.b16 %v3224, %v3222
        %v3433 = vpack.c.b16 %v3225, %v3223
        %v3434 = vpack.c.b16 %v3228, %v3226
        %v3435 = vpack.c.b16 %v3229, %v3227
        %v3436 = vpack.c.b16 %v3232, %v3230
        %v3437 = vpack.c.b16 %v3233, %v3231
        %v3438 = vpack.c.b16 %v3236, %v3234
        %v3439 = vpack.c.b16 %v3237, %v3235
        %v3440 = vpack.c.b16 %v3240, %v3238
        %v3441 = vpack.c.b16 %v3241, %v3239
        %v3442 = vpack.c.b16 %v3244, %v3242
        %v3443 = vpack.c.b16 %v3245, %v3243
        %v3444 = vpack.c.b16 %v3248, %v3246
        %v3445 = vpack.c.b16 %v3249, %v3247
        %v3446 = vpack.c.b16 %v3252, %v3250
        %v3447 = vpack.c.b16 %v3253, %v3251
        %v3448 = vpack.c.b16 %v3256, %v3254
        %v3449 = vpack.c.b16 %v3257, %v3255
        %v3450 = vpack.c.b16 %v3260, %v3258
        %v3451 = vpack.c.b16 %v3261, %v3259
        %v3452 = vpack.c.b16 %v3264, %v3262
        %v3453 = vpack.c.b16 %v3265, %v3263
        %v3454 = vpack.c.b16 %v3268, %v3266
        %v3455 = vpack.c.b16 %v3269, %v3267
        %v3456 = vpack.c.b16 %v3272, %v3270
        %v3457 = vpack.c.b16 %v3273, %v3271
        %v3458 = vpack.c.b16 %v3276, %v3274
        %v3459 = vpack.c.b16 %v3277, %v3275
        %v3460 = vpack.c.b16 %v3280, %v3278
        %v3461 = vpack.c.b16 %v3281, %v3279
        %v3462 = vpack.c.b16 %v3284, %v3282
        %v3463 = vpack.c.b16 %v3285, %v3283
        %v3464 = vpack.c.b16 %v3288, %v3286
        %v3465 = vpack.c.b16 %v3289, %v3287
        %v3466 = vpack.c.b16 %v3292, %v3290
        %v3467 = vpack.c.b16 %v3293, %v3291
        %v3468 = vpack.c.b16 %v3296, %v3294
        %v3469 = vpack.c.b16 %v3297, %v3295
        %v3470 = vpack.c.b16 %v3300, %v3298
        %v3471 = vpack.c.b16 %v3301, %v3299
        %v3472 = vpack.c.b16 %v3304, %v3302
        %v3473 = vpack.c.b16 %v3305, %v3303
        %v3474 = vpack.c.b16 %v3308, %v3306
        %v3475 = vpack.c.b16 %v3309, %v3307
        %v3476 = vpack.c.b16 %v3312, %v3310
        %v3477 = vpack.c.b16 %v3313, %v3311
        %v3478 = vpack.c.b16 %v3316, %v3314
        %v3479 = vpack.c.b16 %v3317, %v3315
        %v3480 = vpack.c.b16 %v3320, %v3318
        %v3481 = vpack.c.b16 %v3321, %v3319
        %v3482 = vpack.c.b16 %v3324, %v3322
        %v3483 = vpack.c.b16 %v3325, %v3323
        %v3484 = vpack.c.b16 %v3328, %v3326
        %v3485 = vpack.c.b16 %v3329, %v3327
        %v3486 = vpack.c.b16 %v3332, %v3330
        %v3487 = vpack.c.b16 %v3333, %v3331
        %v3488 = vpack.c.b16 %v3336, %v3334
        %v3489 = vpack.c.b16 %v3337, %v3335
        %v3490 = vpack.c.b16 %v3340, %v3338
        %v3491 = vpack.c.b16 %v3341, %v3339
        %v3492 = vpack.c.b16 %v3344, %v3342
        %v3493 = vpack.c.b16 %v3345, %v3343
        %v3494 = vpack.c.b16 %v3348, %v3346
        %v3495 = vpack.c.b16 %v3349, %v3347
        %v3496 = vpack.c.b16 %v3352, %v3350
        %v3497 = vpack.c.b16 %v3353, %v3351
        %v3498 = vpack.c.b16 %v3356, %v3354
        %v3499 = vpack.c.b16 %v3357, %v3355
        %v3500 = vpack.c.b16 %v3360, %v3358
        %v3501 = vpack.c.b16 %v3361, %v3359
        %v3502 = vpack.c.b16 %v3364, %v3362
        %v3503 = vpack.c.b16 %v3365, %v3363
        %v3504 = vpack.c.b16 %v3368, %v3366
        %v3505 = vpack.c.b16 %v3369, %v3367
        %v3506 = vpack.c.b16 %v3372, %v3370
        %v3507 = vpack.c.b16 %v3373, %v3371
        %v3508 = vpack.c.b16 %v3376, %v3374
        %v3509 = vpack.c.b16 %v3377, %v3375
        %v3510 = vpack.c.b16 %v3380, %v3378
        %v3511 = vpack.c.b16 %v3381, %v3379
        %v3512 = vpack.c.b16 %v3384, %v3382
        %v3513 = vpack.c.b16 %v3385, %v3383
        %3642 = vmatprep.subr.bf16.mxu0 %v3387
        %3643 = vmatpush1.bf16.msra.mxu0 %v3386
        %3644 = vmatprep.subr.bf16.mxu0 %v3389
        %3645 = vmatpush1.bf16.msra.mxu0 %v3388
        %3646 = vmatprep.subr.bf16.mxu0 %v3391
        %3647 = vmatpush1.bf16.msra.mxu0 %v3390
        %3648 = vmatprep.subr.bf16.mxu0 %v3393
        %3649 = vmatpush1.bf16.msra.mxu0 %v3392
        %3650 = vmatprep.subr.bf16.mxu0 %v3395
        %3651 = vmatpush1.bf16.msra.mxu0 %v3394
        %3652 = vmatprep.subr.bf16.mxu0 %v3397
        %3653 = vmatpush1.bf16.msra.mxu0 %v3396
        %3654 = vmatprep.subr.bf16.mxu0 %v3399
        %3655 = vmatpush1.bf16.msra.mxu0 %v3398
        %3656 = vmatprep.subr.bf16.mxu0 %v3401
        %3657 = vmatpush1.bf16.msra.mxu0 %v3400
        %3658 = vmatprep.subr.bf16.mxu0 %v3403
        %3659 = vmatpush1.bf16.msra.mxu0 %v3402
        %3660 = vmatprep.subr.bf16.mxu0 %v3405
        %3661 = vmatpush1.bf16.msra.mxu0 %v3404
        %3662 = vmatprep.subr.bf16.mxu0 %v3407
        %3663 = vmatpush1.bf16.msra.mxu0 %v3406
        %3664 = vmatprep.subr.bf16.mxu0 %v3409
        %3665 = vmatpush1.bf16.msra.mxu0 %v3408
        %3666 = vmatprep.subr.bf16.mxu0 %v3411
        %3667 = vmatpush1.bf16.msra.mxu0 %v3410
        %3668 = vmatprep.subr.bf16.mxu0 %v3413
        %3669 = vmatpush1.bf16.msra.mxu0 %v3412
        %3670 = vmatprep.subr.bf16.mxu0 %v3415
        %3671 = vmatpush1.bf16.msra.mxu0 %v3414
        %3672 = vmatprep.subr.bf16.mxu0 %v3417
        %3673 = vmatpush1.bf16.msra.mxu0 %v3416
        %3674 = vmatprep.mubr.bf16.mxu0 %v2799
        %3675 = vmatmul.mubr.bf16.gmra.mrb[0].mxu0 %v2798
        %v3676 = vpop.f32.mrb[0].mxu0
        %v3677 = vadd.f32 %v2995, %v3676
        %v3678 = vpop.f32.mrb[0].mxu0
        %v3679 = vadd.f32 %v2999, %v3678
        %v3680 = vpop.f32.mrb[0].mxu0
        %v3681 = vadd.f32 %v2995, %v3680
        %v3682 = vpop.f32.mrb[0].mxu0
        %v3683 = vadd.f32 %v2999, %v3682
        %3684 = vmatprep.mubr.bf16.mxu0 %v2807
        %3685 = vmatmul.mubr.bf16.gmra.mrb[0].mxu0 %v2806
        %v3686 = vpop.f32.mrb[0].mxu0
        %v3687 = vadd.f32 %v2995, %v3686
        %v3688 = vpop.f32.mrb[0].mxu0
        %v3689 = vadd.f32 %v2999, %v3688
        %v3690 = vpop.f32.mrb[0].mxu0
        %v3691 = vadd.f32 %v2995, %v3690
        %v3692 = vpop.f32.mrb[0].mxu0
        %v3693 = vadd.f32 %v2999, %v3692
        %3694 = vmatprep.mubr.bf16.mxu0 %v2815
        %3695 = vmatmul.mubr.bf16.gmra.mrb[0].mxu0 %v2814
        %v3696 = vpop.f32.mrb[0].mxu0
        %v3697 = vadd.f32 %v2995, %v3696
        %v3698 = vpop.f32.mrb[0].mxu0
        %v3699 = vadd.f32 %v2999, %v3698
        %v3700 = vpop.f32.mrb[0].mxu0
        %v3701 = vadd.f32 %v2995, %v3700
        %v3702 = vpop.f32.mrb[0].mxu0
        %v3703 = vadd.f32 %v2999, %v3702
        %3704 = vmatprep.mubr.bf16.mxu0 %v2823
        %3705 = vmatmul.mubr.bf16.gmra.mrb[0].mxu0 %v2822
        %v3706 = vpop.f32.mrb[0].mxu0
        %v3707 = vadd.f32 %v2995, %v3706
        %v3708 = vpop.f32.mrb[0].mxu0
        %v3709 = vadd.f32 %v2999, %v3708
        %v3710 = vpop.f32.mrb[0].mxu0
        %v3711 = vadd.f32 %v2995, %v3710
        %v3712 = vpop.f32.mrb[0].mxu0
        %v3713 = vadd.f32 %v2999, %v3712
        %3714 = vmatprep.mubr.bf16.mxu0 %v2831
        %3715 = vmatmul.mubr.bf16.gmra.mrb[0].mxu0 %v2830
        %v3716 = vpop.f32.mrb[0].mxu0
        %v3717 = vadd.f32 %v2995, %v3716
        %v3718 = vpop.f32.mrb[0].mxu0
        %v3719 = vadd.f32 %v2999, %v3718
        %v3720 = vpop.f32.mrb[0].mxu0
        %v3721 = vadd.f32 %v2995, %v3720
        %v3722 = vpop.f32.mrb[0].mxu0
        %v3723 = vadd.f32 %v2999, %v3722
        %3724 = vmatprep.mubr.bf16.mxu0 %v2839
        %3725 = vmatmul.mubr.bf16.gmra.mrb[0].mxu0 %v2838
        %v3726 = vpop.f32.mrb[0].mxu0
        %v3727 = vadd.f32 %v2995, %v3726
        %v3728 = vpop.f32.mrb[0].mxu0
        %v3729 = vadd.f32 %v2999, %v3728
        %v3730 = vpop.f32.mrb[0].mxu0
        %v3731 = vadd.f32 %v2995, %v3730
        %v3732 = vpop.f32.mrb[0].mxu0
        %v3733 = vadd.f32 %v2999, %v3732
        %3734 = vmatprep.mubr.bf16.mxu0 %v2847
        %3735 = vmatmul.mubr.bf16.gmra.mrb[0].mxu0 %v2846
        %v3736 = vpop.f32.mrb[0].mxu0
        %v3737 = vadd.f32 %v2995, %v3736
        %v3738 = vpop.f32.mrb[0].mxu0
        %v3739 = vadd.f32 %v2999, %v3738
        %v3740 = vpop.f32.mrb[0].mxu0
        %v3741 = vadd.f32 %v2995, %v3740
        %v3742 = vpop.f32.mrb[0].mxu0
        %v3743 = vadd.f32 %v2999, %v3742
        %3744 = vmatprep.mubr.bf16.mxu0 %v2855
        %3745 = vmatmul.mubr.bf16.gmra.mrb[0].mxu0 %v2854
        %v3746 = vpop.f32.mrb[0].mxu0
        %v3747 = vadd.f32 %v2995, %v3746
        %v3748 = vpop.f32.mrb[0].mxu0
        %v3749 = vadd.f32 %v2999, %v3748
        %v3750 = vpop.f32.mrb[0].mxu0
        %v3751 = vadd.f32 %v2995, %v3750
        %v3752 = vpop.f32.mrb[0].mxu0
        %v3753 = vadd.f32 %v2999, %v3752
        %3754 = vdwg.mxu0
        %3755 = vmatprep.subr.bf16.mxu0 %v3419
        %3756 = vmatpush1.bf16.msra.mxu0 %v3418
        %3757 = vmatprep.subr.bf16.mxu0 %v3421
        %3758 = vmatpush1.bf16.msra.mxu0 %v3420
        %3759 = vmatprep.subr.bf16.mxu0 %v3423
        %3760 = vmatpush1.bf16.msra.mxu0 %v3422
        %3761 = vmatprep.subr.bf16.mxu0 %v3425
        %3762 = vmatpush1.bf16.msra.mxu0 %v3424
        %3763 = vmatprep.subr.bf16.mxu0 %v3427
        %3764 = vmatpush1.bf16.msra.mxu0 %v3426
        %3765 = vmatprep.subr.bf16.mxu0 %v3429
        %3766 = vmatpush1.bf16.msra.mxu0 %v3428
        %3767 = vmatprep.subr.bf16.mxu0 %v3431
        %3768 = vmatpush1.bf16.msra.mxu0 %v3430
        %3769 = vmatprep.subr.bf16.mxu0 %v3433
        %3770 = vmatpush1.bf16.msra.mxu0 %v3432
        %3771 = vmatprep.subr.bf16.mxu0 %v3435
        %3772 = vmatpush1.bf16.msra.mxu0 %v3434
        %3773 = vmatprep.subr.bf16.mxu0 %v3437
        %3774 = vmatpush1.bf16.msra.mxu0 %v3436
        %3775 = vmatprep.subr.bf16.mxu0 %v3439
        %3776 = vmatpush1.bf16.msra.mxu0 %v3438
        %3777 = vmatprep.subr.bf16.mxu0 %v3441
        %3778 = vmatpush1.bf16.msra.mxu0 %v3440
        %3779 = vmatprep.subr.bf16.mxu0 %v3443
        %3780 = vmatpush1.bf16.msra.mxu0 %v3442
        %3781 = vmatprep.subr.bf16.mxu0 %v3445
        %3782 = vmatpush1.bf16.msra.mxu0 %v3444
        %3783 = vmatprep.subr.bf16.mxu0 %v3447
        %3784 = vmatpush1.bf16.msra.mxu0 %v3446
        %3785 = vmatprep.subr.bf16.mxu0 %v3449
        %3786 = vmatpush1.bf16.msra.mxu0 %v3448
        %3787 = vmatprep.mubr.bf16.mxu0 %v2801
        %3788 = vmatmul.mubr.bf16.gmra.mrb[0].mxu0 %v2800
        %v3789 = vpop.f32.mrb[0].mxu0
        %v3790 = vadd.f32 %v3677, %v3789
        %v3791 = vpop.f32.mrb[0].mxu0
        %v3792 = vadd.f32 %v3679, %v3791
        %v3793 = vpop.f32.mrb[0].mxu0
        %v3794 = vadd.f32 %v3681, %v3793
        %v3795 = vpop.f32.mrb[0].mxu0
        %v3796 = vadd.f32 %v3683, %v3795
        %3797 = vmatprep.mubr.bf16.mxu0 %v2809
        %3798 = vmatmul.mubr.bf16.gmra.mrb[0].mxu0 %v2808
        %v3799 = vpop.f32.mrb[0].mxu0
        %v3800 = vadd.f32 %v3687, %v3799
        %v3801 = vpop.f32.mrb[0].mxu0
        %v3802 = vadd.f32 %v3689, %v3801
        %v3803 = vpop.f32.mrb[0].mxu0
        %v3804 = vadd.f32 %v3691, %v3803
        %v3805 = vpop.f32.mrb[0].mxu0
        %v3806 = vadd.f32 %v3693, %v3805
        %3807 = vmatprep.mubr.bf16.mxu0 %v2817
        %3808 = vmatmul.mubr.bf16.gmra.mrb[0].mxu0 %v2816
        %v3809 = vpop.f32.mrb[0].mxu0
        %v3810 = vadd.f32 %v3697, %v3809
        %v3811 = vpop.f32.mrb[0].mxu0
        %v3812 = vadd.f32 %v3699, %v3811
        %v3813 = vpop.f32.mrb[0].mxu0
        %v3814 = vadd.f32 %v3701, %v3813
        %v3815 = vpop.f32.mrb[0].mxu0
        %v3816 = vadd.f32 %v3703, %v3815
        %3817 = vmatprep.mubr.bf16.mxu0 %v2825
        %3818 = vmatmul.mubr.bf16.gmra.mrb[0].mxu0 %v2824
        %v3819 = vpop.f32.mrb[0].mxu0
        %v3820 = vadd.f32 %v3707, %v3819
        %v3821 = vpop.f32.mrb[0].mxu0
        %v3822 = vadd.f32 %v3709, %v3821
        %v3823 = vpop.f32.mrb[0].mxu0
        %v3824 = vadd.f32 %v3711, %v3823
        %v3825 = vpop.f32.mrb[0].mxu0
        %v3826 = vadd.f32 %v3713, %v3825
        %3827 = vmatprep.mubr.bf16.mxu0 %v2833
        %3828 = vmatmul.mubr.bf16.gmra.mrb[0].mxu0 %v2832
        %v3829 = vpop.f32.mrb[0].mxu0
        %v3830 = vadd.f32 %v3717, %v3829
        %v3831 = vpop.f32.mrb[0].mxu0
        %v3832 = vadd.f32 %v3719, %v3831
        %v3833 = vpop.f32.mrb[0].mxu0
        %v3834 = vadd.f32 %v3721, %v3833
        %v3835 = vpop.f32.mrb[0].mxu0
        %v3836 = vadd.f32 %v3723, %v3835
        %3837 = vmatprep.mubr.bf16.mxu0 %v2841
        %3838 = vmatmul.mubr.bf16.gmra.mrb[0].mxu0 %v2840
        %v3839 = vpop.f32.mrb[0].mxu0
        %v3840 = vadd.f32 %v3727, %v3839
        %v3841 = vpop.f32.mrb[0].mxu0
        %v3842 = vadd.f32 %v3729, %v3841
        %v3843 = vpop.f32.mrb[0].mxu0
        %v3844 = vadd.f32 %v3731, %v3843
        %v3845 = vpop.f32.mrb[0].mxu0
        %v3846 = vadd.f32 %v3733, %v3845
        %3847 = vmatprep.mubr.bf16.mxu0 %v2849
        %3848 = vmatmul.mubr.bf16.gmra.mrb[0].mxu0 %v2848
        %v3849 = vpop.f32.mrb[0].mxu0
        %v3850 = vadd.f32 %v3737, %v3849
        %v3851 = vpop.f32.mrb[0].mxu0
        %v3852 = vadd.f32 %v3739, %v3851
        %v3853 = vpop.f32.mrb[0].mxu0
        %v3854 = vadd.f32 %v3741, %v3853
        %v3855 = vpop.f32.mrb[0].mxu0
        %v3856 = vadd.f32 %v3743, %v3855
        %3857 = vmatprep.mubr.bf16.mxu0 %v2857
        %3858 = vmatmul.mubr.bf16.gmra.mrb[0].mxu0 %v2856
        %v3859 = vpop.f32.mrb[0].mxu0
        %v3860 = vadd.f32 %v3747, %v3859
        %v3861 = vpop.f32.mrb[0].mxu0
        %v3862 = vadd.f32 %v3749, %v3861
        %v3863 = vpop.f32.mrb[0].mxu0
        %v3864 = vadd.f32 %v3751, %v3863
        %v3865 = vpop.f32.mrb[0].mxu0
        %v3866 = vadd.f32 %v3753, %v3865
        %3867 = vdwg.mxu0
        %3868 = vmatprep.subr.bf16.mxu0 %v3451
        %3869 = vmatpush1.bf16.msra.mxu0 %v3450
        %3870 = vmatprep.subr.bf16.mxu0 %v3453
        %3871 = vmatpush1.bf16.msra.mxu0 %v3452
        %3872 = vmatprep.subr.bf16.mxu0 %v3455
        %3873 = vmatpush1.bf16.msra.mxu0 %v3454
        %3874 = vmatprep.subr.bf16.mxu0 %v3457
        %3875 = vmatpush1.bf16.msra.mxu0 %v3456
        %3876 = vmatprep.subr.bf16.mxu0 %v3459
        %3877 = vmatpush1.bf16.msra.mxu0 %v3458
        %3878 = vmatprep.subr.bf16.mxu0 %v3461
        %3879 = vmatpush1.bf16.msra.mxu0 %v3460
        %3880 = vmatprep.subr.bf16.mxu0 %v3463
        %3881 = vmatpush1.bf16.msra.mxu0 %v3462
        %3882 = vmatprep.subr.bf16.mxu0 %v3465
        %3883 = vmatpush1.bf16.msra.mxu0 %v3464
        %3884 = vmatprep.subr.bf16.mxu0 %v3467
        %3885 = vmatpush1.bf16.msra.mxu0 %v3466
        %3886 = vmatprep.subr.bf16.mxu0 %v3469
        %3887 = vmatpush1.bf16.msra.mxu0 %v3468
        %3888 = vmatprep.subr.bf16.mxu0 %v3471
        %3889 = vmatpush1.bf16.msra.mxu0 %v3470
        %3890 = vmatprep.subr.bf16.mxu0 %v3473
        %3891 = vmatpush1.bf16.msra.mxu0 %v3472
        %3892 = vmatprep.subr.bf16.mxu0 %v3475
        %3893 = vmatpush1.bf16.msra.mxu0 %v3474
        %3894 = vmatprep.subr.bf16.mxu0 %v3477
        %3895 = vmatpush1.bf16.msra.mxu0 %v3476
        %3896 = vmatprep.subr.bf16.mxu0 %v3479
        %3897 = vmatpush1.bf16.msra.mxu0 %v3478
        %3898 = vmatprep.subr.bf16.mxu0 %v3481
        %3899 = vmatpush1.bf16.msra.mxu0 %v3480
        %3900 = vmatprep.mubr.bf16.mxu0 %v2803
        %3901 = vmatmul.mubr.bf16.gmra.mrb[0].mxu0 %v2802
        %v3902 = vpop.f32.mrb[0].mxu0
        %v3903 = vadd.f32 %v3790, %v3902
        %v3904 = vpop.f32.mrb[0].mxu0
        %v3905 = vadd.f32 %v3792, %v3904
        %v3906 = vpop.f32.mrb[0].mxu0
        %v3907 = vadd.f32 %v3794, %v3906
        %v3908 = vpop.f32.mrb[0].mxu0
        %v3909 = vadd.f32 %v3796, %v3908
        %3910 = vmatprep.mubr.bf16.mxu0 %v2811
        %3911 = vmatmul.mubr.bf16.gmra.mrb[0].mxu0 %v2810
        %v3912 = vpop.f32.mrb[0].mxu0
        %v3913 = vadd.f32 %v3800, %v3912
        %v3914 = vpop.f32.mrb[0].mxu0
        %v3915 = vadd.f32 %v3802, %v3914
        %v3916 = vpop.f32.mrb[0].mxu0
        %v3917 = vadd.f32 %v3804, %v3916
        %v3918 = vpop.f32.mrb[0].mxu0
        %v3919 = vadd.f32 %v3806, %v3918
        %3920 = vmatprep.mubr.bf16.mxu0 %v2819
        %3921 = vmatmul.mubr.bf16.gmra.mrb[0].mxu0 %v2818
        %v3922 = vpop.f32.mrb[0].mxu0
        %v3923 = vadd.f32 %v3810, %v3922
        %v3924 = vpop.f32.mrb[0].mxu0
        %v3925 = vadd.f32 %v3812, %v3924
        %v3926 = vpop.f32.mrb[0].mxu0
        %v3927 = vadd.f32 %v3814, %v3926
        %v3928 = vpop.f32.mrb[0].mxu0
        %v3929 = vadd.f32 %v3816, %v3928
        %3930 = vmatprep.mubr.bf16.mxu0 %v2827
        %3931 = vmatmul.mubr.bf16.gmra.mrb[0].mxu0 %v2826
        %v3932 = vpop.f32.mrb[0].mxu0
        %v3933 = vadd.f32 %v3820, %v3932
        %v3934 = vpop.f32.mrb[0].mxu0
        %v3935 = vadd.f32 %v3822, %v3934
        %v3936 = vpop.f32.mrb[0].mxu0
        %v3937 = vadd.f32 %v3824, %v3936
        %v3938 = vpop.f32.mrb[0].mxu0
        %v3939 = vadd.f32 %v3826, %v3938
        %3940 = vmatprep.mubr.bf16.mxu0 %v2835
        %3941 = vmatmul.mubr.bf16.gmra.mrb[0].mxu0 %v2834
        %v3942 = vpop.f32.mrb[0].mxu0
        %v3943 = vadd.f32 %v3830, %v3942
        %v3944 = vpop.f32.mrb[0].mxu0
        %v3945 = vadd.f32 %v3832, %v3944
        %v3946 = vpop.f32.mrb[0].mxu0
        %v3947 = vadd.f32 %v3834, %v3946
        %v3948 = vpop.f32.mrb[0].mxu0
        %v3949 = vadd.f32 %v3836, %v3948
        %3950 = vmatprep.mubr.bf16.mxu0 %v2843
        %3951 = vmatmul.mubr.bf16.gmra.mrb[0].mxu0 %v2842
        %v3952 = vpop.f32.mrb[0].mxu0
        %v3953 = vadd.f32 %v3840, %v3952
        %v3954 = vpop.f32.mrb[0].mxu0
        %v3955 = vadd.f32 %v3842, %v3954
        %v3956 = vpop.f32.mrb[0].mxu0
        %v3957 = vadd.f32 %v3844, %v3956
        %v3958 = vpop.f32.mrb[0].mxu0
        %v3959 = vadd.f32 %v3846, %v3958
        %3960 = vmatprep.mubr.bf16.mxu0 %v2851
        %3961 = vmatmul.mubr.bf16.gmra.mrb[0].mxu0 %v2850
        %v3962 = vpop.f32.mrb[0].mxu0
        %v3963 = vadd.f32 %v3850, %v3962
        %v3964 = vpop.f32.mrb[0].mxu0
        %v3965 = vadd.f32 %v3852, %v3964
        %v3966 = vpop.f32.mrb[0].mxu0
        %v3967 = vadd.f32 %v3854, %v3966
        %v3968 = vpop.f32.mrb[0].mxu0
        %v3969 = vadd.f32 %v3856, %v3968
        %3970 = vmatprep.mubr.bf16.mxu0 %v2859
        %3971 = vmatmul.mubr.bf16.gmra.mrb[0].mxu0 %v2858
        %v3972 = vpop.f32.mrb[0].mxu0
        %v3973 = vadd.f32 %v3860, %v3972
        %v3974 = vpop.f32.mrb[0].mxu0
        %v3975 = vadd.f32 %v3862, %v3974
        %v3976 = vpop.f32.mrb[0].mxu0
        %v3977 = vadd.f32 %v3864, %v3976
        %v3978 = vpop.f32.mrb[0].mxu0
        %v3979 = vadd.f32 %v3866, %v3978
        %3980 = vdwg.mxu0
        %3981 = vmatprep.subr.bf16.mxu0 %v3483
        %3982 = vmatpush1.bf16.msra.mxu0 %v3482
        %3983 = vmatprep.subr.bf16.mxu0 %v3485
        %3984 = vmatpush1.bf16.msra.mxu0 %v3484
        %3985 = vmatprep.subr.bf16.mxu0 %v3487
        %3986 = vmatpush1.bf16.msra.mxu0 %v3486
        %3987 = vmatprep.subr.bf16.mxu0 %v3489
        %3988 = vmatpush1.bf16.msra.mxu0 %v3488
        %3989 = vmatprep.subr.bf16.mxu0 %v3491
        %3990 = vmatpush1.bf16.msra.mxu0 %v3490
        %3991 = vmatprep.subr.bf16.mxu0 %v3493
        %3992 = vmatpush1.bf16.msra.mxu0 %v3492
        %3993 = vmatprep.subr.bf16.mxu0 %v3495
        %3994 = vmatpush1.bf16.msra.mxu0 %v3494
        %3995 = vmatprep.subr.bf16.mxu0 %v3497
        %3996 = vmatpush1.bf16.msra.mxu0 %v3496
        %3997 = vmatprep.subr.bf16.mxu0 %v3499
        %3998 = vmatpush1.bf16.msra.mxu0 %v3498
        %3999 = vmatprep.subr.bf16.mxu0 %v3501
        %4000 = vmatpush1.bf16.msra.mxu0 %v3500
        %4001 = vmatprep.subr.bf16.mxu0 %v3503
        %4002 = vmatpush1.bf16.msra.mxu0 %v3502
        %4003 = vmatprep.subr.bf16.mxu0 %v3505
        %4004 = vmatpush1.bf16.msra.mxu0 %v3504
        %4005 = vmatprep.subr.bf16.mxu0 %v3507
        %4006 = vmatpush1.bf16.msra.mxu0 %v3506
        %4007 = vmatprep.subr.bf16.mxu0 %v3509
        %4008 = vmatpush1.bf16.msra.mxu0 %v3508
        %4009 = vmatprep.subr.bf16.mxu0 %v3511
        %4010 = vmatpush1.bf16.msra.mxu0 %v3510
        %4011 = vmatprep.subr.bf16.mxu0 %v3513
        %4012 = vmatpush1.bf16.msra.mxu0 %v3512
        %4013 = vmatprep.mubr.bf16.mxu0 %v2805
        %4014 = vmatmul.mubr.bf16.gmra.mrb[0].mxu0 %v2804
        %v4015 = vpop.f32.mrb[0].mxu0
        %v4016 = vadd.f32 %v3903, %v4015
        %v4017 = vpop.f32.mrb[0].mxu0
        %v4018 = vadd.f32 %v3905, %v4017
        %v4019 = vpop.f32.mrb[0].mxu0
        %v4020 = vadd.f32 %v3907, %v4019
        %v4021 = vpop.f32.mrb[0].mxu0
        %v4022 = vadd.f32 %v3909, %v4021
        %4023 = vmatprep.mubr.bf16.mxu0 %v2813
        %4024 = vmatmul.mubr.bf16.gmra.mrb[0].mxu0 %v2812
        %v4025 = vpop.f32.mrb[0].mxu0
        %v4026 = vadd.f32 %v3913, %v4025
        %v4027 = vpop.f32.mrb[0].mxu0
        %v4028 = vadd.f32 %v3915, %v4027
        %v4029 = vpop.f32.mrb[0].mxu0
        %v4030 = vadd.f32 %v3917, %v4029
        %v4031 = vpop.f32.mrb[0].mxu0
        %v4032 = vadd.f32 %v3919, %v4031
        %4033 = vmatprep.mubr.bf16.mxu0 %v2821
        %4034 = vmatmul.mubr.bf16.gmra.mrb[0].mxu0 %v2820
        %v4035 = vpop.f32.mrb[0].mxu0
        %v4036 = vadd.f32 %v3923, %v4035
        %v4037 = vpop.f32.mrb[0].mxu0
        %v4038 = vadd.f32 %v3925, %v4037
        %v4039 = vpop.f32.mrb[0].mxu0
        %v4040 = vadd.f32 %v3927, %v4039
        %v4041 = vpop.f32.mrb[0].mxu0
        %v4042 = vadd.f32 %v3929, %v4041
        %4043 = vmatprep.mubr.bf16.mxu0 %v2829
        %4044 = vmatmul.mubr.bf16.gmra.mrb[0].mxu0 %v2828
        %v4045 = vpop.f32.mrb[0].mxu0
        %v4046 = vadd.f32 %v3933, %v4045
        %v4047 = vpop.f32.mrb[0].mxu0
        %v4048 = vadd.f32 %v3935, %v4047
        %v4049 = vpop.f32.mrb[0].mxu0
        %v4050 = vadd.f32 %v3937, %v4049
        %v4051 = vpop.f32.mrb[0].mxu0
        %v4052 = vadd.f32 %v3939, %v4051
        %4053 = vmatprep.mubr.bf16.mxu0 %v2837
        %4054 = vmatmul.mubr.bf16.gmra.mrb[0].mxu0 %v2836
        %v4055 = vpop.f32.mrb[0].mxu0
        %v4056 = vadd.f32 %v3943, %v4055
        %v4057 = vpop.f32.mrb[0].mxu0
        %v4058 = vadd.f32 %v3945, %v4057
        %v4059 = vpop.f32.mrb[0].mxu0
        %v4060 = vadd.f32 %v3947, %v4059
        %v4061 = vpop.f32.mrb[0].mxu0
        %v4062 = vadd.f32 %v3949, %v4061
        %4063 = vmatprep.mubr.bf16.mxu0 %v2845
        %4064 = vmatmul.mubr.bf16.gmra.mrb[0].mxu0 %v2844
        %v4065 = vpop.f32.mrb[0].mxu0
        %v4066 = vadd.f32 %v3953, %v4065
        %v4067 = vpop.f32.mrb[0].mxu0
        %v4068 = vadd.f32 %v3955, %v4067
        %v4069 = vpop.f32.mrb[0].mxu0
        %v4070 = vadd.f32 %v3957, %v4069
        %v4071 = vpop.f32.mrb[0].mxu0
        %v4072 = vadd.f32 %v3959, %v4071
        %4073 = vmatprep.mubr.bf16.mxu0 %v2853
        %4074 = vmatmul.mubr.bf16.gmra.mrb[0].mxu0 %v2852
        %v4075 = vpop.f32.mrb[0].mxu0
        %v4076 = vadd.f32 %v3963, %v4075
        %v4077 = vpop.f32.mrb[0].mxu0
        %v4078 = vadd.f32 %v3965, %v4077
        %v4079 = vpop.f32.mrb[0].mxu0
        %v4080 = vadd.f32 %v3967, %v4079
        %v4081 = vpop.f32.mrb[0].mxu0
        %v4082 = vadd.f32 %v3969, %v4081
        %4083 = vmatprep.mubr.bf16.mxu0 %v2861
        %4084 = vmatmul.mubr.bf16.gmra.mrb[0].mxu0 %v2860
        %v4085 = vpop.f32.mrb[0].mxu0
        %v4086 = vadd.f32 %v3973, %v4085
        %v4087 = vpop.f32.mrb[0].mxu0
        %v4088 = vadd.f32 %v3975, %v4087
        %v4089 = vpop.f32.mrb[0].mxu0
        %v4090 = vadd.f32 %v3977, %v4089
        %v4091 = vpop.f32.mrb[0].mxu0
        %v4092 = vadd.f32 %v3979, %v4091
        %4093 = vdwg.mxu0
        %4094 = vst [vmem:[%s285] sm:$0xff] %v4016
        %4095 = vst [vmem:[%s285 + $0x8] sm:$0xff] %v4018
        %4096 = vst [vmem:[%s285 + $0x10] sm:$0xff] %v4020
        %4097 = vst [vmem:[%s285 + $0x18] sm:$0xff] %v4022
        %4098 = vst [vmem:[%s285 + $0x20] sm:$0xff] %v4026
        %4099 = vst [vmem:[%s285 + $0x28] sm:$0xff] %v4028
        %4100 = vst [vmem:[%s285 + $0x30] sm:$0xff] %v4030
        %4101 = vst [vmem:[%s285 + $0x38] sm:$0xff] %v4032
        %4102 = vst [vmem:[%s285 + $0x40] sm:$0xff] %v4036
        %4103 = vst [vmem:[%s285 + $0x48] sm:$0xff] %v4038
        %4104 = vst [vmem:[%s285 + $0x50] sm:$0xff] %v4040
        %4105 = vst [vmem:[%s285 + $0x58] sm:$0xff] %v4042
        %4106 = vst [vmem:[%s285 + $0x60] sm:$0xff] %v4046
        %4107 = vst [vmem:[%s285 + $0x68] sm:$0xff] %v4048
        %4108 = vst [vmem:[%s285 + $0x70] sm:$0xff] %v4050
        %4109 = vst [vmem:[%s285 + $0x78] sm:$0xff] %v4052
        %4110 = vst [vmem:[%s285 + $0x80] sm:$0xff] %v4056
        %4111 = vst [vmem:[%s285 + $0x88] sm:$0xff] %v4058
        %4112 = vst [vmem:[%s285 + $0x90] sm:$0xff] %v4060
        %4113 = vst [vmem:[%s285 + $0x98] sm:$0xff] %v4062
        %4114 = vst [vmem:[%s285 + $0xa0] sm:$0xff] %v4066
        %4115 = vst [vmem:[%s285 + $0xa8] sm:$0xff] %v4068
        %4116 = vst [vmem:[%s285 + $0xb0] sm:$0xff] %v4070
        %4117 = vst [vmem:[%s285 + $0xb8] sm:$0xff] %v4072
        %4118 = vst [vmem:[%s285 + $0xc0] sm:$0xff] %v4076
        %4119 = vst [vmem:[%s285 + $0xc8] sm:$0xff] %v4078
        %4120 = vst [vmem:[%s285 + $0xd0] sm:$0xff] %v4080
        %4121 = vst [vmem:[%s285 + $0xd8] sm:$0xff] %v4082
        %4122 = vst [vmem:[%s285 + $0xe0] sm:$0xff] %v4086
        %4123 = vst [vmem:[%s285 + $0xe8] sm:$0xff] %v4088
        %4124 = vst [vmem:[%s285 + $0xf0] sm:$0xff] %v4090
        %4125 = vst [vmem:[%s285 + $0xf8] sm:$0xff] %v4092
        %s4126 = sand.u32 %s142, 1
        %s4127 = scalar_lea.sflag [#allocation4], %s4126
        %s4128 = sand.u32 %s142, 1
        %s4129 = smul.addr %s4128, 256
        %s4130 = scalar_lea.vmem [#allocation10], %s4129
        // Predicated region
        $region57: #{tpu_custom_call.1} parent=39 // pred_check
          %p4131 = pneg %p152
        $region58: #{tpu_custom_call.1} parent=39 // pred_check_branch
          %4133 = sbr.rel (%p4131) target = $region60
        $region59: #{tpu_custom_call.1} parent=39 // pred_region
          %s4134 = smul.u32 16, %s24
          %s4136 = ssub.s32 4096, 4096
          %4137 = vsyncadd %s4127, %s4136
          %s4138 = smul.addr %s4134, 2
          %s4139 = smul.addr %s4138, 128
          %s4140 = scalar_lea.hbm %s5, %s4139
          %s4141 = sshll.u32 %s4130, 4
          %s4142 = int_to_ptr.vmem [resolvable:$true] %s4141
          %4147 = dma.vmem_to_hbm [thread:$0]  %s4142, 4096, %s4140, %s4127, 256, 256, 16
        $region60: #{tpu_custom_call.1} parent=39 // pred_fallthru
          _
      $region40: #{tpu_custom_call.1} parent=5 // pred_fallthru
        _
      %p4148 = scmp.le.s32.totalorder 2, %s19
      // Predicated region
      $region61: #{tpu_custom_call.1} parent=5 // pred_check
        %p4149 = pneg %p4148
      $region62: #{tpu_custom_call.1} parent=5 // pred_check_branch
        %4151 = sbr.rel (%p4149) target = $region64
      $region63: #{tpu_custom_call.1} parent=5 // pred_region
        %s4152 = ssub.s32 %s19, 2
        // Predicated region
        $region65: #{tpu_custom_call.1} parent=63 // pred_check
          %p4153 = pneg %p158
        $region66: #{tpu_custom_call.1} parent=63 // pred_check_branch
          %4155 = sbr.rel (%p4153) target = $region68
        $region67: #{tpu_custom_call.1} parent=63 // pred_region
          %s4156 = sand.u32 %s143, 1
          %s4157 = scalar_lea.sflag [#allocation4], %s4156
          %s4158 = sand.u32 %s143, 1
          %s4159 = smul.addr %s4158, 256
          %s4160 = scalar_lea.vmem [#allocation10], %s4159
          %4161 = dma.done %s4157, 4096
        $region68: #{tpu_custom_call.1} parent=63 // pred_fallthru
          _
      $region64: #{tpu_custom_call.1} parent=5 // pred_fallthru
        _
    $region6: #{tpu_custom_call.1} parent=1 // loop_footer
      %s23 = sadd.s32 1, %s19
    $region7: #{tpu_custom_call.1} parent=1 // loop_footer_branch
      %18 = sbr.rel target = $region3
    $region8: #{tpu_custom_call.1} parent=1 // loop_exit
      _
    %4162 = vsyncpa [#allocation3], 1
    %s4163 = scalar_lea.sflag [#allocation3], 1
    %4164 = vsyncpa %s4163, 1
    %4165 = vsyncpa [#allocation6], 1
    %4166 = vsyncpa [#allocation9], 1
    %4167 = vsyncpa [#allocation4], 1
    %s4168 = scalar_lea.sflag [#allocation4], 1
    %4169 = vsyncpa %s4168, 1

</llo_original>
